<compile_context>
chip_gen: v6e
topology: v6e:2x2x1
jax: 0.10.0
libtpu: 0.0.40
codegen_flags: <defaults>
</compile_context>

<pallas_src>
import functools
import math

import jax
import jax.numpy as jnp
from jax.experimental import pallas as pl
from jax.experimental.pallas import tpu as pltpu


def _round_up(x, m):
    return ((x + m - 1) // m) * m


def _hardware_config():
    """Generation-aware VMEM limit and default tile sizes."""
    vmem_capacity = 128 * 1024 * 1024
    try:
        vmem_capacity = int(pltpu.get_tpu_info().vmem_capacity_bytes)
    except Exception:
        pass
    if vmem_capacity <= 64 * 1024 * 1024:
        # v7x-class: 64 MiB per TensorCore -> stay well under it so the
        # compiler keeps room for internal scratch / spills.
        return dict(vmem_limit=26 * 1024 * 1024, batch_tile=8, time_tile=256)
    # v5e / v6e: 128 MiB -> afford bigger tiles (bigger MXU M, fewer grid steps).
    return dict(vmem_limit=48 * 1024 * 1024, batch_tile=16, time_tile=256)


def _vmem_estimate(bt, tt, d_pad, nh_pad, wmax, out_itemsize, use_im2col):
    x_blk = bt * (tt + 8) * d_pad * 2                 # bf16 main + halo tile
    w_blk = wmax * d_pad * nh_pad * 2                 # bf16 stacked weights
    conv_tmp = bt * tt * nh_pad * 4                   # f32 conv intermediate
    patch = bt * tt * wmax * d_pad * 2 if use_im2col else 0
    out_blk = bt * nh_pad * out_itemsize
    acc = bt * nh_pad * 4
    consts = 2 * nh_pad * 8
    return 2 * x_blk + 2 * w_blk + conv_tmp + patch + 2 * out_blk + acc + consts


def _fused_kernel(xm_ref, xh_ref, w_ref, b_ref, vlen_ref, o_ref, mmax_ref,
                  *maybe_patch, time_tile, wmax, d_pad, use_im2col, valid_min):
    """One (batch_tile, time_tile) grid step for all window sizes at once.

    xm_ref:   (bt, tt, Dp)    bf16  main time tile of the zero-padded input
    xh_ref:   (bt, 8, Dp)     bf16  8-row halo starting at element (t+1)*tt
    w_ref:    (wmax*Dp, NHp)  bf16  stacked im2col conv weights
    b_ref:    (1, NHp)        f32   concatenated biases
    vlen_ref: (1, NHp)        i32   per-column valid length (L + W - 1)
    o_ref:    (bt, NHp)       out   pooled result (stored on last time tile)
    mmax_ref: (bt, NHp)       f32   running-max scratch
    maybe_patch: optional (bt, tt, wmax*Dp) bf16 im2col scratch (small-D path)
    """
    t_idx = pl.program_id(1)
    tt = time_tile
    nh = o_ref.shape[1]

    @pl.when(t_idx == 0)
    def _():
        mmax_ref[...] = jnp.full(mmax_ref.shape, -jnp.inf, mmax_ref.dtype)

    # Window of padded input covering the conv taps of output rows [t0, t0+tt).
    xw = jnp.concatenate([xm_ref[...], xh_ref[...]], axis=1)    # (bt, tt+8, Dp)

    if use_im2col:
        # Small D: one big-K MXU matmul per tile via an explicit im2col patch.
        patch_ref = maybe_patch[0]
        for o in range(wmax):
            patch_ref[:, :, o * d_pad:(o + 1) * d_pad] = xw[:, o:o + tt, :]
        conv = jax.lax.dot_general(
            patch_ref[...], w_ref[...],
            dimension_numbers=(((2,), (0,)), ((), ())),
            preferred_element_type=jnp.float32)                  # (bt, tt, NHp)
    else:
        # Large D: wmax accumulating dots straight off the loaded window; no
        # patch scratch and no wmax-fold store/reload traffic.
        conv = jax.lax.dot_general(
            xw[:, 0:tt, :], w_ref[0:d_pad, :],
            dimension_numbers=(((2,), (0,)), ((), ())),
            preferred_element_type=jnp.float32)
        for o in range(1, wmax):
            conv = conv + jax.lax.dot_general(
                xw[:, o:o + tt, :], w_ref[o * d_pad:(o + 1) * d_pad, :],
                dimension_numbers=(((2,), (0,)), ((), ())),
                preferred_element_type=jnp.float32)

    # Only tail tiles contain positions past some window's valid length
    # T_out = L + W - 1 (or time-tile padding); interior tiles skip the mask.
    needs_mask = (t_idx + 1) * tt > valid_min

    @pl.when(needs_mask)
    def _():
        pos = t_idx * tt + jax.lax.broadcasted_iota(jnp.int32, (tt, nh), 0)
        valid = pos < vlen_ref[...]                              # (tt, NHp)
        masked = jnp.where(valid[None], conv, -jnp.inf)
        mmax_ref[...] = jnp.maximum(mmax_ref[...], jnp.max(masked, axis=1))

    @pl.when(jnp.logical_not(needs_mask))
    def _():
        mmax_ref[...] = jnp.maximum(mmax_ref[...], jnp.max(conv, axis=1))

    @pl.when(t_idx == pl.num_programs(1) - 1)
    def _():
        # Bias after the max: identical since the bias is time-invariant.
        o_ref[...] = (mmax_ref[...] + b_ref[...]).astype(o_ref.dtype)


def multi_size_cnn_encoder(x, params, *, batch_tile=None, time_tile=None,
                           use_im2col=None):
    """x: (B, L, D); params: list of (w_k (W, D, H), bias (1, H)) per window.

    Returns (B, H * num_windows) — max-pooled multi-window CNN features.
    """
    # TODO(synk): lengths-masked pooling (lengths != None in the PyTorch
    # forward) is not implemented; only the lengths=None max-pool path is.
    B, L, D = x.shape
    windows = [w.shape[0] for (w, _) in params]
    H = params[0][0].shape[2]
    wmax, wmin = max(windows), min(windows)
    if wmax - 1 > 8:
        raise NotImplementedError("window sizes > 9 need a wider halo block")
    nh = H * len(params)

    cfg = _hardware_config()
    bt = batch_tile if batch_tile is not None else cfg["batch_tile"]
    tt = time_tile if time_tile is not None else cfg["time_tile"]
    if use_im2col is None:
        use_im2col = D < 128            # big-K im2col only pays off for small D

    # MXU / lane alignment: pad K (per-tap D) to 8 (128 when D >= 128) and
    # N (3H) to a multiple of 128 so output stores are lane-dense.
    d_pad = _round_up(D, 128) if D >= 128 else _round_up(D, 8)
    nh_pad = _round_up(nh, 128)
    out_itemsize = jnp.dtype(x.dtype).itemsize

    t_total = L + wmax - 1              # output length of the biggest window
    tt = max(8, min(tt, _round_up(t_total, 8)))

    # Batch tiling: keep >= 2 parallel batch blocks when the batch allows
    # (v7x shards the "parallel" grid axis over its 2 TensorCores).
    bt = max(8, min(bt, _round_up(B, 8)))
    while bt > 8 and _round_up(B, bt) // bt < 2:
        bt //= 2
    # Shrink tiles until the (double-buffered) working set fits the VMEM budget.
    while (_vmem_estimate(bt, tt, d_pad, nh_pad, wmax, out_itemsize, use_im2col)
           > (cfg["vmem_limit"] * 7) // 10) and tt > 64:
        tt = max(64, tt // 2)
    while (_vmem_estimate(bt, tt, d_pad, nh_pad, wmax, out_itemsize, use_im2col)
           > (cfg["vmem_limit"] * 7) // 10) and bt > 8:
        bt = max(8, bt // 2)

    bp = _round_up(B, bt)
    n_t = pl.cdiv(t_total, tt)
    l_pad = n_t * tt + 8                # + halo block past the last time tile

    # Pad + cast once (single fused XLA pad): shared left halo of wmax-1 zeros,
    # right tail so every (main + halo) block is in bounds, batch pad to bp.
    # TODO(synk): the remaining HBM round-trip of this padded copy could be
    # removed by handling the left/right halos fully inside the kernel.
    x_pad = jnp.pad(x.astype(jnp.bfloat16),
                    ((0, bp - B),
                     (wmax - 1, l_pad - (wmax - 1) - L),
                     (0, d_pad - D)))

    # Stacked im2col weight: window g (size Wg) occupies tap offsets
    # o = k + (wmax - Wg); zero rows elsewhere keep the smaller windows exact
    # under the shared wmax-1 padding.
    w_stack = jnp.zeros((wmax * d_pad, nh_pad), jnp.float32)
    for g, (w_g, _) in enumerate(params):
        wg = w_g.shape[0]
        for k in range(wg):
            o = k + (wmax - wg)
            w_stack = w_stack.at[o * d_pad:o * d_pad + D,
                                 g * H:(g + 1) * H].set(w_g[k])
    w_stack = w_stack.astype(jnp.bfloat16)

    bias = jnp.zeros((1, nh_pad), jnp.float32)
    bias = bias.at[:, :nh].set(jnp.concatenate([b for (_, b) in params], axis=1))
    vlen = jnp.zeros((1, nh_pad), jnp.int32)
    vlen = vlen.at[:, :nh].set(jnp.concatenate(
        [jnp.full((1, H), L + wg - 1, jnp.int32) for wg in windows], axis=1))

    kernel = functools.partial(
        _fused_kernel, time_tile=tt, wmax=wmax, d_pad=d_pad,
        use_im2col=use_im2col, valid_min=L + wmin - 1)

    scratch = [pltpu.VMEM((bt, nh_pad), jnp.float32)]             # running max
    if use_im2col:
        scratch.append(pltpu.VMEM((bt, tt, wmax * d_pad), jnp.bfloat16))

    tt8 = tt // 8

    def run(single_buffer_consts):
        def const_spec(shape):
            if single_buffer_consts:
                return pl.BlockSpec(shape, lambda b, t: (0, 0),
                                    pipeline_mode=pl.Buffered(buffer_count=1))
            return pl.BlockSpec(shape, lambda b, t: (0, 0))

        grid_spec = pltpu.PrefetchScalarGridSpec(
            num_scalar_prefetch=0,
            grid=(bp // bt, n_t),
            in_specs=[
                # main time tile of x (advances with t)
                pl.BlockSpec((bt, tt, d_pad), lambda b, t: (b, t, 0)),
                # 8-row halo at element offset (t + 1) * tt
                pl.BlockSpec((bt, 8, d_pad), lambda b, t: (b, (t + 1) * tt8, 0)),
                const_spec((wmax * d_pad, nh_pad)),
                const_spec((1, nh_pad)),
                const_spec((1, nh_pad)),
            ],
            out_specs=pl.BlockSpec((bt, nh_pad), lambda b, t: (b, 0)),
            scratch_shapes=scratch,
        )
        return pl.pallas_call(
            kernel,
            out_shape=jax.ShapeDtypeStruct((bp, nh_pad), x.dtype),
            grid_spec=grid_spec,
            compiler_params=pltpu.CompilerParams(
                dimension_semantics=("parallel", "arbitrary"),
                vmem_limit_bytes=cfg["vmem_limit"]),
        )(x_pad, x_pad, w_stack, bias, vlen)

    try:
        out = run(single_buffer_consts=True)
    except Exception:
        # pipeline_mode=pl.Buffered(1) not supported on this jax version ->
        # retry with default double buffering (identical semantics).
        out = run(single_buffer_consts=False)

    return out[:B, :nh]


def init_params(key, input_size, hidden_size, window_sizes):
    """Deterministic init matching nn.Conv2d + xavier_uniform_ on the weight."""
    params = []
    for i, W in enumerate(window_sizes):
        kw, kb = jax.random.split(jax.random.fold_in(key, i))
        fan_in = 1 * W * input_size
        fan_out = hidden_size * W * input_size
        bound = math.sqrt(6.0 / (fan_in + fan_out))
        w_conv = jax.random.uniform(
            kw, (hidden_size, 1, W, input_size), jnp.float32, -bound, bound)
        b_bound = 1.0 / math.sqrt(fan_in)
        bias = jax.random.uniform(
            kb, (hidden_size,), jnp.float32, -b_bound, b_bound)
        # Kernel layout: w_k[w, d, h] = w_conv[h, 0, w, d]
        w_k = jnp.transpose(w_conv[:, 0], (1, 2, 0))
        params.append((w_k, bias.reshape(1, hidden_size)))
    return params


def _reference(x, params):
    """Pure-JAX f32 reference of the same forward pass."""
    outs = []
    for w_k, bias in params:
        W = w_k.shape[0]
        B, L, D = x.shape
        t_out = L + W - 1
        x_pad = jnp.pad(x, ((0, 0), (W - 1, W - 1), (0, 0)))
        conv = sum(
            jnp.einsum("btd,dh->bth", x_pad[:, k:k + t_out, :], w_k[k])
            for k in range(W)
        ) + bias[None, :, :]
        outs.append(jnp.max(conv, axis=1))
    return jnp.concatenate(outs, axis=1)


if __name__ == "__main__":
    window_sizes = [3, 4, 5]
    key = jax.random.PRNGKey(0)

    # --- Test 1: small shapes, single time tile; exercise both conv paths. ---
    B, L, D, H = 2, 16, 32, 64
    k_x, k_p, key = jax.random.split(key, 3)
    x = jax.random.normal(k_x, (B, L, D), dtype=jnp.float32)
    params = init_params(k_p, D, H, window_sizes)
    ref = _reference(x, params)

    out = jax.block_until_ready(multi_size_cnn_encoder(x, params))
    assert out.shape == (B, H * len(window_sizes)), out.shape
    assert jnp.allclose(out, ref, atol=2e-2, rtol=2e-2), "im2col path mismatch"

    out2 = jax.block_until_ready(
        multi_size_cnn_encoder(x, params, use_im2col=False))
    assert jnp.allclose(out2, ref, atol=2e-2, rtol=2e-2), "direct path mismatch"

    # --- Test 2: multiple time tiles + halo crossing + gated tail masking +
    #     two parallel batch blocks (batch padding), both conv paths. ---
    B2, L2, D2, H2 = 10, 100, 32, 32
    k_x2, k_p2, key = jax.random.split(key, 3)
    x2 = jax.random.normal(k_x2, (B2, L2, D2), dtype=jnp.float32)
    params2 = init_params(k_p2, D2, H2, window_sizes)
    ref2 = _reference(x2, params2)

    out3 = jax.block_until_ready(
        multi_size_cnn_encoder(x2, params2, time_tile=32))
    assert out3.shape == (B2, H2 * len(window_sizes)), out3.shape
    assert jnp.allclose(out3, ref2, atol=2e-2, rtol=2e-2), "tiled im2col mismatch"

    out4 = jax.block_until_ready(
        multi_size_cnn_encoder(x2, params2, time_tile=32, use_im2col=False))
    assert jnp.allclose(out4, ref2, atol=2e-2, rtol=2e-2), "tiled direct mismatch"

    print("KERNEL_OK")
</pallas_src>

<mosaic_0001>
module attributes {stable_mosaic.version = 11 : i64} {
  func.func @_fused_kernel(%arg0: i32, %arg1: i32, %arg2: memref<8x24x32xbf16, #tpu.memory_space<vmem>>, %arg3: memref<8x8x32xbf16, #tpu.memory_space<vmem>>, %arg4: memref<160x256xbf16, #tpu.memory_space<vmem>>, %arg5: memref<1x256xf32, #tpu.memory_space<vmem>>, %arg6: memref<1x256xi32, #tpu.memory_space<vmem>>, %arg7: memref<8x256xf32, #tpu.memory_space<vmem>>, %arg8: memref<8x256xf32, #tpu.memory_space<vmem>>, %arg9: memref<8x24x160xbf16, #tpu.memory_space<vmem>>) attributes {dimension_semantics = [#tpu.dimension_semantics<parallel>, #tpu.dimension_semantics<arbitrary>], iteration_bounds = array<i64: 1, 1>, scalar_prefetch = 0 : i64, scratch_operands = 2 : i64, tpu.core_type = #tpu.core_type<tc>, window_params = [{transform_indices = @transform_0, window_bounds = array<i64: 8, 24, 32>}, {transform_indices = @transform_1, window_bounds = array<i64: 8, 8, 32>}, {pipeline_mode = #tpu.pipeline_mode<synchronous>, transform_indices = @transform_2, window_bounds = array<i64: 160, 256>}, {pipeline_mode = #tpu.pipeline_mode<synchronous>, transform_indices = @transform_3, window_bounds = array<i64: 1, 256>}, {pipeline_mode = #tpu.pipeline_mode<synchronous>, transform_indices = @transform_4, window_bounds = array<i64: 1, 256>}, {transform_indices = @transform_5, window_bounds = array<i64: 8, 256>}]} {
    %c0_i32 = arith.constant 0 : i32
    %0 = arith.cmpi eq, %arg1, %c0_i32 : i32
    %1 = arith.extui %0 : i1 to i32
    %c0_i32_0 = arith.constant 0 : i32
    %2 = arith.cmpi ne, %1, %c0_i32_0 : i32
    scf.if %2 {
      %cst_26 = arith.constant 0xFF800000 : f32
      %30 = vector.broadcast %cst_26 : f32 to vector<8x256xf32>
      %c0_27 = arith.constant 0 : index
      %c0_28 = arith.constant 0 : index
      %31 = vector.load %arg8[%c0_27, %c0_28] : memref<8x256xf32, #tpu.memory_space<vmem>>, vector<8x256xf32>
      tpu.vector_store %arg8[%c0_27, %c0_28], %30 {strides = array<i32>} : memref<8x256xf32, #tpu.memory_space<vmem>>, vector<8x256xf32>,
    } else {
    }
    %c0 = arith.constant 0 : index
    %c0_1 = arith.constant 0 : index
    %c0_2 = arith.constant 0 : index
    %3 = vector.load %arg2[%c0, %c0_1, %c0_2] : memref<8x24x32xbf16, #tpu.memory_space<vmem>>, vector<8x24x32xbf16>
    %c0_3 = arith.constant 0 : index
    %c0_4 = arith.constant 0 : index
    %c0_5 = arith.constant 0 : index
    %4 = vector.load %arg3[%c0_3, %c0_4, %c0_5] : memref<8x8x32xbf16, #tpu.memory_space<vmem>>, vector<8x8x32xbf16>
    %5 = tpu.concatenate %3, %4 in 1 : vector<8x24x32xbf16>, vector<8x8x32xbf16> -> vector<8x32x32xbf16>
    %6 = vector.extract_strided_slice %5 {offsets = [0, 0, 0], sizes = [8, 24, 32], strides = [1, 1, 1]} : vector<8x32x32xbf16> to vector<8x24x32xbf16>
    %c0_6 = arith.constant 0 : index
    %c0_7 = arith.constant 0 : index
    %c0_8 = arith.constant 0 : index
    %7 = vector.load %arg9[%c0_6, %c0_7, %c0_8] : memref<8x24x160xbf16, #tpu.memory_space<vmem>>, vector<8x24x32xbf16>
    tpu.vector_store %arg9[%c0_6, %c0_7, %c0_8], %6 {strides = array<i32>} : memref<8x24x160xbf16, #tpu.memory_space<vmem>>, vector<8x24x32xbf16>,
    %8 = vector.extract_strided_slice %5 {offsets = [0, 1, 0], sizes = [8, 24, 32], strides = [1, 1, 1]} : vector<8x32x32xbf16> to vector<8x24x32xbf16>
    %c0_9 = arith.constant 0 : index
    %c0_10 = arith.constant 0 : index
    %c32 = arith.constant 32 : index
    %9 = vector.load %arg9[%c0_9, %c0_10, %c32] : memref<8x24x160xbf16, #tpu.memory_space<vmem>>, vector<8x24x32xbf16>
    tpu.vector_store %arg9[%c0_9, %c0_10, %c32], %8 {strides = array<i32>} : memref<8x24x160xbf16, #tpu.memory_space<vmem>>, vector<8x24x32xbf16>,
    %10 = vector.extract_strided_slice %5 {offsets = [0, 2, 0], sizes = [8, 24, 32], strides = [1, 1, 1]} : vector<8x32x32xbf16> to vector<8x24x32xbf16>
    %c0_11 = arith.constant 0 : index
    %c0_12 = arith.constant 0 : index
    %c64 = arith.constant 64 : index
    %11 = vector.load %arg9[%c0_11, %c0_12, %c64] : memref<8x24x160xbf16, #tpu.memory_space<vmem>>, vector<8x24x32xbf16>
    tpu.vector_store %arg9[%c0_11, %c0_12, %c64], %10 {strides = array<i32>} : memref<8x24x160xbf16, #tpu.memory_space<vmem>>, vector<8x24x32xbf16>,
    %12 = vector.extract_strided_slice %5 {offsets = [0, 3, 0], sizes = [8, 24, 32], strides = [1, 1, 1]} : vector<8x32x32xbf16> to vector<8x24x32xbf16>
    %c0_13 = arith.constant 0 : index
    %c0_14 = arith.constant 0 : index
    %c96 = arith.constant 96 : index
    %13 = vector.load %arg9[%c0_13, %c0_14, %c96] : memref<8x24x160xbf16, #tpu.memory_space<vmem>>, vector<8x24x32xbf16>
    tpu.vector_store %arg9[%c0_13, %c0_14, %c96], %12 {strides = array<i32>} : memref<8x24x160xbf16, #tpu.memory_space<vmem>>, vector<8x24x32xbf16>,
    %14 = vector.extract_strided_slice %5 {offsets = [0, 4, 0], sizes = [8, 24, 32], strides = [1, 1, 1]} : vector<8x32x32xbf16> to vector<8x24x32xbf16>
    %c0_15 = arith.constant 0 : index
    %c0_16 = arith.constant 0 : index
    %c128 = arith.constant 128 : index
    %15 = vector.load %arg9[%c0_15, %c0_16, %c128] : memref<8x24x160xbf16, #tpu.memory_space<vmem>>, vector<8x24x32xbf16>
    tpu.vector_store %arg9[%c0_15, %c0_16, %c128], %14 {strides = array<i32>} : memref<8x24x160xbf16, #tpu.memory_space<vmem>>, vector<8x24x32xbf16>,
    %c0_17 = arith.constant 0 : index
    %c0_18 = arith.constant 0 : index
    %c0_19 = arith.constant 0 : index
    %16 = vector.load %arg9[%c0_17, %c0_18, %c0_19] : memref<8x24x160xbf16, #tpu.memory_space<vmem>>, vector<8x24x160xbf16>
    %c0_20 = arith.constant 0 : index
    %c0_21 = arith.constant 0 : index
    %17 = vector.load %arg4[%c0_20, %c0_21] : memref<160x256xbf16, #tpu.memory_space<vmem>>, vector<160x256xbf16>
    %cst = arith.constant dense<0.000000e+00> : vector<8x24x256xf32>
    %18 = tpu.matmul %16, %17, %cst {dimension_numbers = #tpu.dot_dimension_numbers<[2], [0], [0, 1], [1], [0, 0, 0, 1, 1, 1], [], []>} : vector<8x24x160xbf16>, vector<160x256xbf16>, vector<8x24x256xf32> -> vector<8x24x256xf32>
    %c1_i32 = arith.constant 1 : i32
    %19 = arith.addi %arg1, %c1_i32 : i32
    %c24_i32 = arith.constant 24 : i32
    %20 = arith.muli %19, %c24_i32 : i32
    %c18_i32 = arith.constant 18 : i32
    %21 = arith.cmpi sgt, %20, %c18_i32 : i32
    %22 = arith.extui %21 : i1 to i32
    %c0_i32_22 = arith.constant 0 : i32
    %23 = arith.cmpi ne, %22, %c0_i32_22 : i32
    scf.if %23 {
      %c24_i32_26 = arith.constant 24 : i32
      %30 = arith.muli %arg1, %c24_i32_26 : i32
      %31 = tpu.iota {dimensions = array<i32: 0>} : vector<24x256xi32>
      %32 = vector.broadcast %30 : i32 to vector<24x256xi32>
      %33 = arith.addi %32, %31 : vector<24x256xi32>
      %c0_27 = arith.constant 0 : index
      %c0_28 = arith.constant 0 : index
      %34 = vector.load %arg6[%c0_27, %c0_28] : memref<1x256xi32, #tpu.memory_space<vmem>>, vector<1x256xi32>
      %35 = vector.broadcast %34 : vector<1x256xi32> to vector<24x256xi32>
      %36 = arith.cmpi slt, %33, %35 : vector<24x256xi32>
      %37 = vector.shape_cast %36 : vector<24x256xi1> to vector<1x24x256xi1>
      %cst_29 = arith.constant 0xFF800000 : f32
      %38 = vector.shape_cast %37 : vector<1x24x256xi1> to vector<1x24x256xi1>
      %39 = vector.broadcast %38 : vector<1x24x256xi1> to vector<8x24x256xi1>
      %40 = vector.broadcast %cst_29 : f32 to vector<8x24x256xf32>
      %41 = arith.select %39, %18, %40 : vector<8x24x256xi1>, vector<8x24x256xf32>
      %c0_30 = arith.constant 0 : index
      %c0_31 = arith.constant 0 : index
      %42 = vector.load %arg8[%c0_30, %c0_31] : memref<8x256xf32, #tpu.memory_space<vmem>>, vector<8x256xf32>
      %cst_32 = arith.constant dense<0xFF800000> : vector<8x256xf32>
      %43 = vector.multi_reduction <maximumf>, %41, %cst_32 [1] : vector<8x24x256xf32> to vector<8x256xf32>
      %44 = arith.maximumf %42, %43 : vector<8x256xf32>
      %c0_33 = arith.constant 0 : index
      %c0_34 = arith.constant 0 : index
      %45 = vector.load %arg8[%c0_33, %c0_34] : memref<8x256xf32, #tpu.memory_space<vmem>>, vector<8x256xf32>
      tpu.vector_store %arg8[%c0_33, %c0_34], %44 {strides = array<i32>} : memref<8x256xf32, #tpu.memory_space<vmem>>, vector<8x256xf32>,
    } else {
    }
    %true = arith.constant true
    %24 = arith.xori %21, %true : i1
    %25 = arith.extui %24 : i1 to i32
    %c0_i32_23 = arith.constant 0 : i32
    %26 = arith.cmpi ne, %25, %c0_i32_23 : i32
    scf.if %26 {
      %c0_26 = arith.constant 0 : index
      %c0_27 = arith.constant 0 : index
      %30 = vector.load %arg8[%c0_26, %c0_27] : memref<8x256xf32, #tpu.memory_space<vmem>>, vector<8x256xf32>
      %cst_28 = arith.constant dense<0xFF800000> : vector<8x256xf32>
      %31 = vector.multi_reduction <maximumf>, %18, %cst_28 [1] : vector<8x24x256xf32> to vector<8x256xf32>
      %32 = arith.maximumf %30, %31 : vector<8x256xf32>
      %c0_29 = arith.constant 0 : index
      %c0_30 = arith.constant 0 : index
      %33 = vector.load %arg8[%c0_29, %c0_30] : memref<8x256xf32, #tpu.memory_space<vmem>>, vector<8x256xf32>
      tpu.vector_store %arg8[%c0_29, %c0_30], %32 {strides = array<i32>} : memref<8x256xf32, #tpu.memory_space<vmem>>, vector<8x256xf32>,
    } else {
    }
    %c0_i32_24 = arith.constant 0 : i32
    %27 = arith.cmpi eq, %arg1, %c0_i32_24 : i32
    %28 = arith.extui %27 : i1 to i32
    %c0_i32_25 = arith.constant 0 : i32
    %29 = arith.cmpi ne, %28, %c0_i32_25 : i32
    scf.if %29 {
      %c0_26 = arith.constant 0 : index
      %c0_27 = arith.constant 0 : index
      %30 = vector.load %arg8[%c0_26, %c0_27] : memref<8x256xf32, #tpu.memory_space<vmem>>, vector<8x256xf32>
      %c0_28 = arith.constant 0 : index
      %c0_29 = arith.constant 0 : index
      %31 = vector.load %arg5[%c0_28, %c0_29] : memref<1x256xf32, #tpu.memory_space<vmem>>, vector<1x256xf32>
      %32 = vector.broadcast %31 : vector<1x256xf32> to vector<8x256xf32>
      %33 = arith.addf %30, %32 : vector<8x256xf32>
      %c0_30 = arith.constant 0 : index
      %c0_31 = arith.constant 0 : index
      %34 = vector.load %arg7[%c0_30, %c0_31] : memref<8x256xf32, #tpu.memory_space<vmem>>, vector<8x256xf32>
      tpu.vector_store %arg7[%c0_30, %c0_31], %33 {strides = array<i32>} : memref<8x256xf32, #tpu.memory_space<vmem>>, vector<8x256xf32>,
    } else {
    }
    return
  }
  func.func @transform_0(%arg0: i32, %arg1: i32) -> (i32, i32, i32) {
    %c0_i32 = arith.constant 0 : i32
    %c0_i32_0 = arith.constant 0 : i32
    return %arg0, %arg1, %c0_i32 : i32, i32, i32
  }
  func.func @transform_1(%arg0: i32, %arg1: i32) -> (i32, i32, i32) {
    %c1_i32 = arith.constant 1 : i32
    %0 = arith.addi %arg1, %c1_i32 : i32
    %c3_i32 = arith.constant 3 : i32
    %1 = arith.muli %0, %c3_i32 : i32
    %c0_i32 = arith.constant 0 : i32
    %c0_i32_0 = arith.constant 0 : i32
    return %arg0, %1, %c0_i32 : i32, i32, i32
  }
  func.func @transform_2(%arg0: i32, %arg1: i32) -> (i32, i32) {
    %c0_i32 = arith.constant 0 : i32
    %c0_i32_0 = arith.constant 0 : i32
    %c0_i32_1 = arith.constant 0 : i32
    return %c0_i32, %c0_i32_0 : i32, i32
  }
  func.func @transform_3(%arg0: i32, %arg1: i32) -> (i32, i32) {
    %c0_i32 = arith.constant 0 : i32
    %c0_i32_0 = arith.constant 0 : i32
    %c0_i32_1 = arith.constant 0 : i32
    return %c0_i32, %c0_i32_0 : i32, i32
  }
  func.func @transform_4(%arg0: i32, %arg1: i32) -> (i32, i32) {
    %c0_i32 = arith.constant 0 : i32
    %c0_i32_0 = arith.constant 0 : i32
    %c0_i32_1 = arith.constant 0 : i32
    return %c0_i32, %c0_i32_0 : i32, i32
  }
  func.func @transform_5(%arg0: i32, %arg1: i32) -> (i32, i32) {
    %c0_i32 = arith.constant 0 : i32
    %c0_i32_0 = arith.constant 0 : i32
    return %arg0, %c0_i32 : i32, i32
  }
}

module attributes {stable_mosaic.version = 11 : i64} {
  func.func @_fused_kernel(%arg0: i32, %arg1: i32, %arg2: memref<8x24x32xbf16, #tpu.memory_space<vmem>>, %arg3: memref<8x8x32xbf16, #tpu.memory_space<vmem>>, %arg4: memref<160x256xbf16, #tpu.memory_space<vmem>>, %arg5: memref<1x256xf32, #tpu.memory_space<vmem>>, %arg6: memref<1x256xi32, #tpu.memory_space<vmem>>, %arg7: memref<8x256xf32, #tpu.memory_space<vmem>>, %arg8: memref<8x256xf32, #tpu.memory_space<vmem>>, %arg9: memref<8x24x160xbf16, #tpu.memory_space<vmem>>) attributes {dimension_semantics = [#tpu.dimension_semantics<parallel>, #tpu.dimension_semantics<arbitrary>], iteration_bounds = array<i64: 1, 1>, scalar_prefetch = 0 : i64, scratch_operands = 2 : i64, tpu.core_type = #tpu.core_type<tc>, window_params = [{transform_indices = @transform_0, window_bounds = array<i64: 8, 24, 32>}, {transform_indices = @transform_1, window_bounds = array<i64: 8, 8, 32>}, {pipeline_mode = #tpu.pipeline_mode<synchronous>, transform_indices = @transform_2, window_bounds = array<i64: 160, 256>}, {pipeline_mode = #tpu.pipeline_mode<synchronous>, transform_indices = @transform_3, window_bounds = array<i64: 1, 256>}, {pipeline_mode = #tpu.pipeline_mode<synchronous>, transform_indices = @transform_4, window_bounds = array<i64: 1, 256>}, {transform_indices = @transform_5, window_bounds = array<i64: 8, 256>}]} {
    %c0_i32 = arith.constant 0 : i32
    %0 = arith.cmpi eq, %arg1, %c0_i32 : i32
    %1 = arith.extui %0 : i1 to i32
    %c0_i32_0 = arith.constant 0 : i32
    %2 = arith.cmpi ne, %1, %c0_i32_0 : i32
    scf.if %2 {
      %cst_26 = arith.constant 0xFF800000 : f32
      %30 = vector.broadcast %cst_26 : f32 to vector<8x256xf32>
      %c0_27 = arith.constant 0 : index
      %c0_28 = arith.constant 0 : index
      %31 = vector.load %arg8[%c0_27, %c0_28] : memref<8x256xf32, #tpu.memory_space<vmem>>, vector<8x256xf32>
      tpu.vector_store %arg8[%c0_27, %c0_28], %30 {strides = array<i32>} : memref<8x256xf32, #tpu.memory_space<vmem>>, vector<8x256xf32>,
    } else {
    }
    %c0 = arith.constant 0 : index
    %c0_1 = arith.constant 0 : index
    %c0_2 = arith.constant 0 : index
    %3 = vector.load %arg2[%c0, %c0_1, %c0_2] : memref<8x24x32xbf16, #tpu.memory_space<vmem>>, vector<8x24x32xbf16>
    %c0_3 = arith.constant 0 : index
    %c0_4 = arith.constant 0 : index
    %c0_5 = arith.constant 0 : index
    %4 = vector.load %arg3[%c0_3, %c0_4, %c0_5] : memref<8x8x32xbf16, #tpu.memory_space<vmem>>, vector<8x8x32xbf16>
    %5 = tpu.concatenate %3, %4 in 1 : vector<8x24x32xbf16>, vector<8x8x32xbf16> -> vector<8x32x32xbf16>
    %6 = vector.extract_strided_slice %5 {offsets = [0, 0, 0], sizes = [8, 24, 32], strides = [1, 1, 1]} : vector<8x32x32xbf16> to vector<8x24x32xbf16>
    %c0_6 = arith.constant 0 : index
    %c0_7 = arith.constant 0 : index
    %c0_8 = arith.constant 0 : index
    %7 = vector.load %arg9[%c0_6, %c0_7, %c0_8] : memref<8x24x160xbf16, #tpu.memory_space<vmem>>, vector<8x24x32xbf16>
    tpu.vector_store %arg9[%c0_6, %c0_7, %c0_8], %6 {strides = array<i32>} : memref<8x24x160xbf16, #tpu.memory_space<vmem>>, vector<8x24x32xbf16>,
    %8 = vector.extract_strided_slice %5 {offsets = [0, 1, 0], sizes = [8, 24, 32], strides = [1, 1, 1]} : vector<8x32x32xbf16> to vector<8x24x32xbf16>
    %c0_9 = arith.constant 0 : index
    %c0_10 = arith.constant 0 : index
    %c32 = arith.constant 32 : index
    %9 = vector.load %arg9[%c0_9, %c0_10, %c32] : memref<8x24x160xbf16, #tpu.memory_space<vmem>>, vector<8x24x32xbf16>
    tpu.vector_store %arg9[%c0_9, %c0_10, %c32], %8 {strides = array<i32>} : memref<8x24x160xbf16, #tpu.memory_space<vmem>>, vector<8x24x32xbf16>,
    %10 = vector.extract_strided_slice %5 {offsets = [0, 2, 0], sizes = [8, 24, 32], strides = [1, 1, 1]} : vector<8x32x32xbf16> to vector<8x24x32xbf16>
    %c0_11 = arith.constant 0 : index
    %c0_12 = arith.constant 0 : index
    %c64 = arith.constant 64 : index
    %11 = vector.load %arg9[%c0_11, %c0_12, %c64] : memref<8x24x160xbf16, #tpu.memory_space<vmem>>, vector<8x24x32xbf16>
    tpu.vector_store %arg9[%c0_11, %c0_12, %c64], %10 {strides = array<i32>} : memref<8x24x160xbf16, #tpu.memory_space<vmem>>, vector<8x24x32xbf16>,
    %12 = vector.extract_strided_slice %5 {offsets = [0, 3, 0], sizes = [8, 24, 32], strides = [1, 1, 1]} : vector<8x32x32xbf16> to vector<8x24x32xbf16>
    %c0_13 = arith.constant 0 : index
    %c0_14 = arith.constant 0 : index
    %c96 = arith.constant 96 : index
    %13 = vector.load %arg9[%c0_13, %c0_14, %c96] : memref<8x24x160xbf16, #tpu.memory_space<vmem>>, vector<8x24x32xbf16>
    tpu.vector_store %arg9[%c0_13, %c0_14, %c96], %12 {strides = array<i32>} : memref<8x24x160xbf16, #tpu.memory_space<vmem>>, vector<8x24x32xbf16>,
    %14 = vector.extract_strided_slice %5 {offsets = [0, 4, 0], sizes = [8, 24, 32], strides = [1, 1, 1]} : vector<8x32x32xbf16> to vector<8x24x32xbf16>
    %c0_15 = arith.constant 0 : index
    %c0_16 = arith.constant 0 : index
    %c128 = arith.constant 128 : index
    %15 = vector.load %arg9[%c0_15, %c0_16, %c128] : memref<8x24x160xbf16, #tpu.memory_space<vmem>>, vector<8x24x32xbf16>
    tpu.vector_store %arg9[%c0_15, %c0_16, %c128], %14 {strides = array<i32>} : memref<8x24x160xbf16, #tpu.memory_space<vmem>>, vector<8x24x32xbf16>,
    %c0_17 = arith.constant 0 : index
    %c0_18 = arith.constant 0 : index
    %c0_19 = arith.constant 0 : index
    %16 = vector.load %arg9[%c0_17, %c0_18, %c0_19] : memref<8x24x160xbf16, #tpu.memory_space<vmem>>, vector<8x24x160xbf16>
    %c0_20 = arith.constant 0 : index
    %c0_21 = arith.constant 0 : index
    %17 = vector.load %arg4[%c0_20, %c0_21] : memref<160x256xbf16, #tpu.memory_space<vmem>>, vector<160x256xbf16>
    %cst = arith.constant dense<0.000000e+00> : vector<8x24x256xf32>
    %18 = tpu.matmul %16, %17, %cst {dimension_numbers = #tpu.dot_dimension_numbers<[2], [0], [0, 1], [1], [0, 0, 0, 1, 1, 1], [], []>} : vector<8x24x160xbf16>, vector<160x256xbf16>, vector<8x24x256xf32> -> vector<8x24x256xf32>
    %c1_i32 = arith.constant 1 : i32
    %19 = arith.addi %arg1, %c1_i32 : i32
    %c24_i32 = arith.constant 24 : i32
    %20 = arith.muli %19, %c24_i32 : i32
    %c18_i32 = arith.constant 18 : i32
    %21 = arith.cmpi sgt, %20, %c18_i32 : i32
    %22 = arith.extui %21 : i1 to i32
    %c0_i32_22 = arith.constant 0 : i32
    %23 = arith.cmpi ne, %22, %c0_i32_22 : i32
    scf.if %23 {
      %c24_i32_26 = arith.constant 24 : i32
      %30 = arith.muli %arg1, %c24_i32_26 : i32
      %31 = tpu.iota {dimensions = array<i32: 0>} : vector<24x256xi32>
      %32 = vector.broadcast %30 : i32 to vector<24x256xi32>
      %33 = arith.addi %32, %31 : vector<24x256xi32>
      %c0_27 = arith.constant 0 : index
      %c0_28 = arith.constant 0 : index
      %34 = vector.load %arg6[%c0_27, %c0_28] : memref<1x256xi32, #tpu.memory_space<vmem>>, vector<1x256xi32>
      %35 = vector.broadcast %34 : vector<1x256xi32> to vector<24x256xi32>
      %36 = arith.cmpi slt, %33, %35 : vector<24x256xi32>
      %37 = vector.shape_cast %36 : vector<24x256xi1> to vector<1x24x256xi1>
      %cst_29 = arith.constant 0xFF800000 : f32
      %38 = vector.shape_cast %37 : vector<1x24x256xi1> to vector<1x24x256xi1>
      %39 = vector.broadcast %38 : vector<1x24x256xi1> to vector<8x24x256xi1>
      %40 = vector.broadcast %cst_29 : f32 to vector<8x24x256xf32>
      %41 = arith.select %39, %18, %40 : vector<8x24x256xi1>, vector<8x24x256xf32>
      %c0_30 = arith.constant 0 : index
      %c0_31 = arith.constant 0 : index
      %42 = vector.load %arg8[%c0_30, %c0_31] : memref<8x256xf32, #tpu.memory_space<vmem>>, vector<8x256xf32>
      %cst_32 = arith.constant dense<0xFF800000> : vector<8x256xf32>
      %43 = vector.multi_reduction <maximumf>, %41, %cst_32 [1] : vector<8x24x256xf32> to vector<8x256xf32>
      %44 = arith.maximumf %42, %43 : vector<8x256xf32>
      %c0_33 = arith.constant 0 : index
      %c0_34 = arith.constant 0 : index
      %45 = vector.load %arg8[%c0_33, %c0_34] : memref<8x256xf32, #tpu.memory_space<vmem>>, vector<8x256xf32>
      tpu.vector_store %arg8[%c0_33, %c0_34], %44 {strides = array<i32>} : memref<8x256xf32, #tpu.memory_space<vmem>>, vector<8x256xf32>,
    } else {
    }
    %true = arith.constant true
    %24 = arith.xori %21, %true : i1
    %25 = arith.extui %24 : i1 to i32
    %c0_i32_23 = arith.constant 0 : i32
    %26 = arith.cmpi ne, %25, %c0_i32_23 : i32
    scf.if %26 {
      %c0_26 = arith.constant 0 : index
      %c0_27 = arith.constant 0 : index
      %30 = vector.load %arg8[%c0_26, %c0_27] : memref<8x256xf32, #tpu.memory_space<vmem>>, vector<8x256xf32>
      %cst_28 = arith.constant dense<0xFF800000> : vector<8x256xf32>
      %31 = vector.multi_reduction <maximumf>, %18, %cst_28 [1] : vector<8x24x256xf32> to vector<8x256xf32>
      %32 = arith.maximumf %30, %31 : vector<8x256xf32>
      %c0_29 = arith.constant 0 : index
      %c0_30 = arith.constant 0 : index
      %33 = vector.load %arg8[%c0_29, %c0_30] : memref<8x256xf32, #tpu.memory_space<vmem>>, vector<8x256xf32>
      tpu.vector_store %arg8[%c0_29, %c0_30], %32 {strides = array<i32>} : memref<8x256xf32, #tpu.memory_space<vmem>>, vector<8x256xf32>,
    } else {
    }
    %c0_i32_24 = arith.constant 0 : i32
    %27 = arith.cmpi eq, %arg1, %c0_i32_24 : i32
    %28 = arith.extui %27 : i1 to i32
    %c0_i32_25 = arith.constant 0 : i32
    %29 = arith.cmpi ne, %28, %c0_i32_25 : i32
    scf.if %29 {
      %c0_26 = arith.constant 0 : index
      %c0_27 = arith.constant 0 : index
      %30 = vector.load %arg8[%c0_26, %c0_27] : memref<8x256xf32, #tpu.memory_space<vmem>>, vector<8x256xf32>
      %c0_28 = arith.constant 0 : index
      %c0_29 = arith.constant 0 : index
      %31 = vector.load %arg5[%c0_28, %c0_29] : memref<1x256xf32, #tpu.memory_space<vmem>>, vector<1x256xf32>
      %32 = vector.broadcast %31 : vector<1x256xf32> to vector<8x256xf32>
      %33 = arith.addf %30, %32 : vector<8x256xf32>
      %c0_30 = arith.constant 0 : index
      %c0_31 = arith.constant 0 : index
      %34 = vector.load %arg7[%c0_30, %c0_31] : memref<8x256xf32, #tpu.memory_space<vmem>>, vector<8x256xf32>
      tpu.vector_store %arg7[%c0_30, %c0_31], %33 {strides = array<i32>} : memref<8x256xf32, #tpu.memory_space<vmem>>, vector<8x256xf32>,
    } else {
    }
    return
  }
  func.func @transform_0(%arg0: i32, %arg1: i32) -> (i32, i32, i32) {
    %c0_i32 = arith.constant 0 : i32
    %c0_i32_0 = arith.constant 0 : i32
    return %arg0, %arg1, %c0_i32 : i32, i32, i32
  }
  func.func @transform_1(%arg0: i32, %arg1: i32) -> (i32, i32, i32) {
    %c1_i32 = arith.constant 1 : i32
    %0 = arith.addi %arg1, %c1_i32 : i32
    %c3_i32 = arith.constant 3 : i32
    %1 = arith.muli %0, %c3_i32 : i32
    %c0_i32 = arith.constant 0 : i32
    %c0_i32_0 = arith.constant 0 : i32
    return %arg0, %1, %c0_i32 : i32, i32, i32
  }
  func.func @transform_2(%arg0: i32, %arg1: i32) -> (i32, i32) {
    %c0_i32 = arith.constant 0 : i32
    %c0_i32_0 = arith.constant 0 : i32
    %c0_i32_1 = arith.constant 0 : i32
    return %c0_i32, %c0_i32_0 : i32, i32
  }
  func.func @transform_3(%arg0: i32, %arg1: i32) -> (i32, i32) {
    %c0_i32 = arith.constant 0 : i32
    %c0_i32_0 = arith.constant 0 : i32
    %c0_i32_1 = arith.constant 0 : i32
    return %c0_i32, %c0_i32_0 : i32, i32
  }
  func.func @transform_4(%arg0: i32, %arg1: i32) -> (i32, i32) {
    %c0_i32 = arith.constant 0 : i32
    %c0_i32_0 = arith.constant 0 : i32
    %c0_i32_1 = arith.constant 0 : i32
    return %c0_i32, %c0_i32_0 : i32, i32
  }
  func.func @transform_5(%arg0: i32, %arg1: i32) -> (i32, i32) {
    %c0_i32 = arith.constant 0 : i32
    %c0_i32_0 = arith.constant 0 : i32
    return %arg0, %c0_i32 : i32, i32
  }
}

</mosaic_0001>

<llo_original>
// kernel: tpu_custom_call.1
$region0: #{tpu_custom_call.1}
  #allocation0 [shape = 'u32[]', space=smem, size = 0x4, offset = 0x4, fixed_abs, tag = 'smem constant byte address 0x4 - core index']
  #allocation1 [shape = 'u32[144,128]{1,0:T(1,128)}', space=vmem, size = 0x12000, scoped, tag = 'internal scratch']
  #allocation2 [shape = 'f32[8,256]{1,0:T(8,128)}', space=vmem, size = 0x2000, scoped, tag = 'scratch operand']
  #allocation3 [shape = 'bf16[8,24,160]{2,1,0:T(8,128)(2,1)}', space=vmem, size = 0x18000, scoped, tag = 'scratch operand']
  #allocation11 [shape = 's32[]', space=sflag, size = 0x4, offset = 0, fixed_abs, tag = 'sflag constant byte address 0x0 - dummy sync flag']
  %s0 = inlined_call_operand.hbm [shape: bf16[8,32,32], index: 0, kind: input, shape index: {}]
  %s1 = inlined_call_operand.hbm [shape: bf16[8,32,32], index: 1, kind: input, shape index: {}]
  %s2 = inlined_call_operand.hbm [shape: bf16[160,256], index: 2, kind: input, shape index: {}]
  %s3 = inlined_call_operand.vmem [shape: f32[1,256], index: 3, kind: input, shape index: {}]
  %s4 = inlined_call_operand.vmem [shape: s32[1,256], index: 4, kind: input, shape index: {}]
  %s5 = inlined_call_operand.hbm [shape: f32[8,256], index: 5, kind: output, shape index: {}]
  %s6 = sld [smem:[#allocation0]]
  $region58: #{tpu_custom_call.1} parent=0
    _
  %s8 = ssub.s32 1, %s6
  %s9 = scalar_select 0, %s8, %s6
  $region1: #{tpu_custom_call.1} parent=0
    #allocation4 [shape = 'u8[49152]{0}', space=vmem, size = 0xc000, scoped, tag = 'input window, operand 0, single buffered']
    #allocation5 [shape = 's32[1]{0}', space=sflag, size = 0x4, scoped, tag = 'scoped memory for tpu_custom_call.1']
    #allocation6 [shape = 's32[1]{0}', space=sflag, size = 0x4, scoped, tag = 'scoped memory for tpu_custom_call.1']
    #allocation7 [shape = 'u8[16384]{0}', space=vmem, size = 0x4000, scoped, tag = 'input window, operand 1, single buffered']
    #allocation8 [shape = 's32[1]{0}', space=sflag, size = 0x4, scoped, tag = 'scoped memory for tpu_custom_call.1']
    #allocation9 [shape = 'u8[81920]{0}', space=vmem, size = 0x14000, scoped, tag = 'input window, operand 2, single buffered']
    #allocation10 [shape = 'u8[8192]{0}', space=vmem, size = 0x2000, scoped, tag = 'output window, operand 0, single buffered']
    %10 = vsyncpa [#allocation5], 0
    %11 = vsyncpa [#allocation8], 0
    %12 = vsyncpa [#allocation6], 0
    // Predicated region
    $region2: #{tpu_custom_call.1} parent=1 // pred_check
      _
    $region3: #{tpu_custom_call.1} parent=1 // pred_check_branch
      %14 = sbr.rel (0) target = $region5
    $region4: #{tpu_custom_call.1} parent=1 // pred_region
      #allocation12 [shape = 'u32[6]{0}', space=smem, size = 0x18, scoped, tag = 'DMA stride descriptor']
      %s16 = ssub.s32 1536, 1536
      %17 = vsyncadd [#allocation5], %s16
      %s19 = sshll.u32 1, 14
      %s20 = sxor.u32 4294967295, %s19
      %s22 = sld [smem:[#allocation0]]
      %s23 = sadd.s32 2, %s22
      %s25 = sshll.u32 7, 26
      %s26 = sxor.u32 4294967295, %s25
      %s27 = sand.u32 0, %s26
      %s28 = sshll.u32 %s23, 26
      %s29 = sor.u32 %s27, %s28
      %s30 = sshll.u32 [#allocation4], 4
      %s31 = int_to_ptr.vmem [resolvable:$true] %s30
      %37 = sst [smem:[#allocation12]] 256
      %s38 = scalar_lea.smem [#allocation12], 1
      %39 = sst [smem:[%s38]] 192
      %s40 = scalar_lea.smem [#allocation12], 2
      %41 = sst [smem:[%s40]] 3
      %s42 = scalar_lea.smem [#allocation12], 3
      %43 = sst [smem:[%s42]] 64
      %s44 = scalar_lea.smem [#allocation12], 4
      %45 = sst [smem:[%s44]] 64
      %s46 = scalar_lea.smem [#allocation12], 5
      %47 = sst [smem:[%s46]] 4
      %49 = dma.general %s0, 1536, %s31, [#allocation5], 131072, [#allocation12], %s29, 0
    $region5: #{tpu_custom_call.1} parent=1 // pred_fallthru
      _
    // Predicated region
    $region6: #{tpu_custom_call.1} parent=1 // pred_check
      _
    $region7: #{tpu_custom_call.1} parent=1 // pred_check_branch
      %51 = sbr.rel (0) target = $region9
    $region8: #{tpu_custom_call.1} parent=1 // pred_region
      %s52 = sadd.s32 0, 1
      %s53 = smul.u32 %s52, 3
      %s55 = ssub.s32 512, 512
      %56 = vsyncadd [#allocation8], %s55
      %s57 = smul.addr %s53, 64
      %s58 = scalar_lea.hbm %s1, %s57
      %s59 = sshll.u32 [#allocation7], 4
      %s60 = int_to_ptr.vmem [resolvable:$true] %s59
      %65 = dma.hbm_to_vmem [thread:$0]  %s58, 512, %s60, [#allocation8], 256, 64, 4
    $region9: #{tpu_custom_call.1} parent=1 // pred_fallthru
      _
    // Predicated region
    $region10: #{tpu_custom_call.1} parent=1 // pred_check
      _
    $region11: #{tpu_custom_call.1} parent=1 // pred_check_branch
      %67 = sbr.rel (0) target = $region13
    $region12: #{tpu_custom_call.1} parent=1 // pred_region
      %s69 = ssub.s32 2560, 2560
      %70 = vsyncadd [#allocation8], %s69
      %s71 = sshll.u32 [#allocation9], 4
      %s72 = int_to_ptr.vmem [resolvable:$true] %s71
      %77 = dma.hbm_to_vmem [thread:$0]  %s2, 2560, %s72, [#allocation8], 128, 128, 8
    $region13: #{tpu_custom_call.1} parent=1 // pred_fallthru
      _
    // Predicated region
    $region14: #{tpu_custom_call.1} parent=1 // pred_check
      _
    $region15: #{tpu_custom_call.1} parent=1 // pred_check_branch
      %79 = sbr.rel (0) target = $region17
    $region16: #{tpu_custom_call.1} parent=1 // pred_region
      _
    $region17: #{tpu_custom_call.1} parent=1 // pred_fallthru
      _
    // Predicated region
    $region18: #{tpu_custom_call.1} parent=1 // pred_check
      _
    $region19: #{tpu_custom_call.1} parent=1 // pred_check_branch
      %81 = sbr.rel (0) target = $region21
    $region20: #{tpu_custom_call.1} parent=1 // pred_region
      _
    $region21: #{tpu_custom_call.1} parent=1 // pred_fallthru
      _
    // Predicated region
    $region22: #{tpu_custom_call.1} parent=1 // pred_check
      _
    $region23: #{tpu_custom_call.1} parent=1 // pred_check_branch
      %83 = sbr.rel (0) target = $region25
    $region24: #{tpu_custom_call.1} parent=1 // pred_region
      %84 = dma.done [#allocation5], 1536
    $region25: #{tpu_custom_call.1} parent=1 // pred_fallthru
      _
    // Predicated region
    $region26: #{tpu_custom_call.1} parent=1 // pred_check
      _
    $region27: #{tpu_custom_call.1} parent=1 // pred_check_branch
      %86 = sbr.rel (0) target = $region29
    $region28: #{tpu_custom_call.1} parent=1 // pred_region
      %87 = dma.done [#allocation8], 512
    $region29: #{tpu_custom_call.1} parent=1 // pred_fallthru
      _
    // Predicated region
    $region30: #{tpu_custom_call.1} parent=1 // pred_check
      _
    $region31: #{tpu_custom_call.1} parent=1 // pred_check_branch
      %89 = sbr.rel (0) target = $region33
    $region32: #{tpu_custom_call.1} parent=1 // pred_region
      %90 = dma.done [#allocation8], 2560
    $region33: #{tpu_custom_call.1} parent=1 // pred_fallthru
      _
    %s91 = sadd.s32 0, 1
    %s92 = smul.u32 %s91, 3
    %p94 = scmp.eq.s32.totalorder 0, 0
    // Predicated region
    $region34: #{tpu_custom_call.1} parent=1 // pred_check
      %p95 = pneg %p94
    $region35: #{tpu_custom_call.1} parent=1 // pred_check_branch
      %97 = sbr.rel (%p95) target = $region37
    $region36: #{tpu_custom_call.1} parent=1 // pred_region
      %98 = vst [vmem:[#allocation2] sm:$0xff] -inf
      %99 = vst [vmem:[#allocation2 + $0x8] sm:$0xff] -inf
    $region37: #{tpu_custom_call.1} parent=1 // pred_fallthru
      _
    %v100 = vld [vmem:[#allocation4] sm:$0xf]
    %v101 = vld [vmem:[#allocation4 + $0x4] sm:$0xf]
    %v102 = vld [vmem:[#allocation4 + $0x8] sm:$0xf]
    %v103 = vld [vmem:[#allocation4 + $0xc] sm:$0xf]
    %v104 = vld [vmem:[#allocation4 + $0x10] sm:$0xf]
    %v105 = vld [vmem:[#allocation4 + $0x14] sm:$0xf]
    %v106 = vld [vmem:[#allocation4 + $0x18] sm:$0xf]
    %v107 = vld [vmem:[#allocation4 + $0x1c] sm:$0xf]
    %v108 = vld [vmem:[#allocation4 + $0x20] sm:$0xf]
    %v109 = vld [vmem:[#allocation4 + $0x24] sm:$0xf]
    %v110 = vld [vmem:[#allocation4 + $0x28] sm:$0xf]
    %v111 = vld [vmem:[#allocation4 + $0x2c] sm:$0xf]
    %v112 = vld [vmem:[#allocation4 + $0x30] sm:$0xf]
    %v113 = vld [vmem:[#allocation4 + $0x34] sm:$0xf]
    %v114 = vld [vmem:[#allocation4 + $0x38] sm:$0xf]
    %v115 = vld [vmem:[#allocation4 + $0x3c] sm:$0xf]
    %v116 = vld [vmem:[#allocation4 + $0x40] sm:$0xf]
    %v117 = vld [vmem:[#allocation4 + $0x44] sm:$0xf]
    %v118 = vld [vmem:[#allocation4 + $0x48] sm:$0xf]
    %v119 = vld [vmem:[#allocation4 + $0x4c] sm:$0xf]
    %v120 = vld [vmem:[#allocation4 + $0x50] sm:$0xf]
    %v121 = vld [vmem:[#allocation4 + $0x54] sm:$0xf]
    %v122 = vld [vmem:[#allocation4 + $0x58] sm:$0xf]
    %v123 = vld [vmem:[#allocation4 + $0x5c] sm:$0xf]
    %v124 = vld [vmem:[#allocation7] sm:$0xf]
    %v125 = vld [vmem:[#allocation7 + $0x4] sm:$0xf]
    %v126 = vld [vmem:[#allocation7 + $0x8] sm:$0xf]
    %v127 = vld [vmem:[#allocation7 + $0xc] sm:$0xf]
    %v128 = vld [vmem:[#allocation7 + $0x10] sm:$0xf]
    %v129 = vld [vmem:[#allocation7 + $0x14] sm:$0xf]
    %v130 = vld [vmem:[#allocation7 + $0x18] sm:$0xf]
    %v131 = vld [vmem:[#allocation7 + $0x1c] sm:$0xf]
    %v156 = vunpack.c.l.b16 %v100
    %v157 = vunpack.c.l.b16 %v101
    %v158 = vunpack.c.l.b16 %v102
    %v159 = vunpack.c.l.b16 %v103
    %v160 = vunpack.c.l.b16 %v104
    %v161 = vunpack.c.l.b16 %v105
    %v162 = vunpack.c.l.b16 %v106
    %v163 = vunpack.c.l.b16 %v107
    %v164 = vunpack.c.l.b16 %v108
    %v165 = vunpack.c.l.b16 %v109
    %v166 = vunpack.c.l.b16 %v110
    %v167 = vunpack.c.l.b16 %v111
    %v168 = vunpack.c.l.b16 %v112
    %v169 = vunpack.c.l.b16 %v113
    %v170 = vunpack.c.l.b16 %v114
    %v171 = vunpack.c.l.b16 %v115
    %v172 = vunpack.c.l.b16 %v116
    %v173 = vunpack.c.l.b16 %v117
    %v174 = vunpack.c.l.b16 %v118
    %v175 = vunpack.c.l.b16 %v119
    %v176 = vunpack.c.l.b16 %v120
    %v177 = vunpack.c.l.b16 %v121
    %v178 = vunpack.c.l.b16 %v122
    %v179 = vunpack.c.l.b16 %v123
    %v180 = vpack.c.b16 %v158, %v158
    %v181 = vpack.c.b16 %v161, %v161
    %v182 = vpack.c.b16 %v164, %v164
    %v183 = vpack.c.b16 %v167, %v167
    %v184 = vpack.c.b16 %v170, %v170
    %v185 = vpack.c.b16 %v173, %v173
    %v186 = vpack.c.b16 %v176, %v176
    %v187 = vpack.c.b16 %v179, %v179
    %v196 = vunpack.c.l.b16 %v124
    %v197 = vunpack.c.l.b16 %v125
    %v198 = vunpack.c.l.b16 %v126
    %v199 = vunpack.c.l.b16 %v127
    %v200 = vunpack.c.l.b16 %v128
    %v201 = vunpack.c.l.b16 %v129
    %v202 = vunpack.c.l.b16 %v130
    %v203 = vunpack.c.l.b16 %v131
    %v204 = vpack.c.b16 %v196, %v196
    %v205 = vpack.c.b16 %v197, %v197
    %v206 = vpack.c.b16 %v198, %v198
    %v207 = vpack.c.b16 %v199, %v199
    %v208 = vpack.c.b16 %v200, %v200
    %v209 = vpack.c.b16 %v201, %v201
    %v210 = vpack.c.b16 %v202, %v202
    %v211 = vpack.c.b16 %v203, %v203
    %vm212 = vcmask 1043456
    %v215 = vsel %vm212, %v180, %v204
    %v218 = vsel %vm212, %v181, %v205
    %v221 = vsel %vm212, %v182, %v206
    %v224 = vsel %vm212, %v183, %v207
    %v227 = vsel %vm212, %v184, %v208
    %v230 = vsel %vm212, %v185, %v209
    %v233 = vsel %vm212, %v186, %v210
    %v236 = vsel %vm212, %v187, %v211
    %v245 = vunpack.c.l.b16 %v215
    %v246 = vunpack.c.l.b16 %v218
    %v247 = vunpack.c.l.b16 %v221
    %v248 = vunpack.c.l.b16 %v224
    %v249 = vunpack.c.l.b16 %v227
    %v250 = vunpack.c.l.b16 %v230
    %v251 = vunpack.c.l.b16 %v233
    %v252 = vunpack.c.l.b16 %v236
    %v253 = vpack.c.b16 %v156, %v156
    %v254 = vpack.c.b16 %v157, %v157
    %v255 = vpack.c.b16 %v245, %v245
    %v256 = vpack.c.b16 %v159, %v159
    %v257 = vpack.c.b16 %v160, %v160
    %v258 = vpack.c.b16 %v246, %v246
    %v259 = vpack.c.b16 %v162, %v162
    %v260 = vpack.c.b16 %v163, %v163
    %v261 = vpack.c.b16 %v247, %v247
    %v262 = vpack.c.b16 %v165, %v165
    %v263 = vpack.c.b16 %v166, %v166
    %v264 = vpack.c.b16 %v248, %v248
    %v265 = vpack.c.b16 %v168, %v168
    %v266 = vpack.c.b16 %v169, %v169
    %v267 = vpack.c.b16 %v249, %v249
    %v268 = vpack.c.b16 %v171, %v171
    %v269 = vpack.c.b16 %v172, %v172
    %v270 = vpack.c.b16 %v250, %v250
    %v271 = vpack.c.b16 %v174, %v174
    %v272 = vpack.c.b16 %v175, %v175
    %v273 = vpack.c.b16 %v251, %v251
    %v274 = vpack.c.b16 %v177, %v177
    %v275 = vpack.c.b16 %v178, %v178
    %v276 = vpack.c.b16 %v252, %v252
    %vm301 = vcmask 257024
    %302 = vst.msk [vmem:[#allocation3] sm:$0xf] %vm301, %v253
    %303 = vst.msk [vmem:[#allocation3 + $0x8] sm:$0xf] %vm301, %v254
    %304 = vst.msk [vmem:[#allocation3 + $0x10] sm:$0xf] %vm301, %v255
    %305 = vst.msk [vmem:[#allocation3 + $0x18] sm:$0xf] %vm301, %v256
    %306 = vst.msk [vmem:[#allocation3 + $0x20] sm:$0xf] %vm301, %v257
    %307 = vst.msk [vmem:[#allocation3 + $0x28] sm:$0xf] %vm301, %v258
    %308 = vst.msk [vmem:[#allocation3 + $0x30] sm:$0xf] %vm301, %v259
    %309 = vst.msk [vmem:[#allocation3 + $0x38] sm:$0xf] %vm301, %v260
    %310 = vst.msk [vmem:[#allocation3 + $0x40] sm:$0xf] %vm301, %v261
    %311 = vst.msk [vmem:[#allocation3 + $0x48] sm:$0xf] %vm301, %v262
    %312 = vst.msk [vmem:[#allocation3 + $0x50] sm:$0xf] %vm301, %v263
    %313 = vst.msk [vmem:[#allocation3 + $0x58] sm:$0xf] %vm301, %v264
    %314 = vst.msk [vmem:[#allocation3 + $0x60] sm:$0xf] %vm301, %v265
    %315 = vst.msk [vmem:[#allocation3 + $0x68] sm:$0xf] %vm301, %v266
    %316 = vst.msk [vmem:[#allocation3 + $0x70] sm:$0xf] %vm301, %v267
    %317 = vst.msk [vmem:[#allocation3 + $0x78] sm:$0xf] %vm301, %v268
    %318 = vst.msk [vmem:[#allocation3 + $0x80] sm:$0xf] %vm301, %v269
    %319 = vst.msk [vmem:[#allocation3 + $0x88] sm:$0xf] %vm301, %v270
    %320 = vst.msk [vmem:[#allocation3 + $0x90] sm:$0xf] %vm301, %v271
    %321 = vst.msk [vmem:[#allocation3 + $0x98] sm:$0xf] %vm301, %v272
    %322 = vst.msk [vmem:[#allocation3 + $0xa0] sm:$0xf] %vm301, %v273
    %323 = vst.msk [vmem:[#allocation3 + $0xa8] sm:$0xf] %vm301, %v274
    %324 = vst.msk [vmem:[#allocation3 + $0xb0] sm:$0xf] %vm301, %v275
    %325 = vst.msk [vmem:[#allocation3 + $0xb8] sm:$0xf] %vm301, %v276
    %v326 = vunpack.c.h.b16 %v215
    %v327 = vunpack.c.h.b16 %v218
    %v328 = vunpack.c.h.b16 %v221
    %v329 = vunpack.c.h.b16 %v224
    %v330 = vunpack.c.h.b16 %v227
    %v331 = vunpack.c.h.b16 %v230
    %v332 = vunpack.c.h.b16 %v233
    %v333 = vunpack.c.h.b16 %v236
    %v334 = vpack.c.b16 %v326, %v326
    %v335 = vpack.c.b16 %v327, %v327
    %v336 = vpack.c.b16 %v328, %v328
    %v337 = vpack.c.b16 %v329, %v329
    %v338 = vpack.c.b16 %v330, %v330
    %v339 = vpack.c.b16 %v331, %v331
    %v340 = vpack.c.b16 %v332, %v332
    %v341 = vpack.c.b16 %v333, %v333
    %vm342 = vsmask.f32 3328
    %vm343 = vsmask.f32 7440
    %vm344 = vmor %vm342, %vm343
    %v346 = vshrl.u32 %v253, 16
    %v348 = vrot.slane %v346, 4
    %v349 = vshll.u32 %v253, 16
    %v351 = vrot.slane %v349, 5
    %v352 = vor.u32 %v348, %v351
    %v353 = vrot.slane %v352, 4
    %v355 = vshll.u32 %v254, 16
    %v357 = vrot.slane %v355, 5
    %v358 = vsel %vm344, %v353, %v357
    %v359 = vshrl.u32 %v254, 16
    %v361 = vrot.slane %v359, 4
    %v362 = vor.u32 %v361, %v357
    %v363 = vrot.slane %v362, 4
    %v365 = vshll.u32 %v255, 16
    %v367 = vrot.slane %v365, 5
    %v368 = vsel %vm344, %v363, %v367
    %v369 = vshrl.u32 %v255, 16
    %v371 = vrot.slane %v369, 4
    %v372 = vor.u32 %v371, %v367
    %v373 = vrot.slane %v372, 4
    %v375 = vshll.u32 %v334, 16
    %v377 = vrot.slane %v375, 5
    %v378 = vsel %vm344, %v373, %v377
    %v380 = vshrl.u32 %v256, 16
    %v382 = vrot.slane %v380, 4
    %v383 = vshll.u32 %v256, 16
    %v385 = vrot.slane %v383, 5
    %v386 = vor.u32 %v382, %v385
    %v387 = vrot.slane %v386, 4
    %v389 = vshll.u32 %v257, 16
    %v391 = vrot.slane %v389, 5
    %v392 = vsel %vm344, %v387, %v391
    %v393 = vshrl.u32 %v257, 16
    %v395 = vrot.slane %v393, 4
    %v396 = vor.u32 %v395, %v391
    %v397 = vrot.slane %v396, 4
    %v399 = vshll.u32 %v258, 16
    %v401 = vrot.slane %v399, 5
    %v402 = vsel %vm344, %v397, %v401
    %v403 = vshrl.u32 %v258, 16
    %v405 = vrot.slane %v403, 4
    %v406 = vor.u32 %v405, %v401
    %v407 = vrot.slane %v406, 4
    %v409 = vshll.u32 %v335, 16
    %v411 = vrot.slane %v409, 5
    %v412 = vsel %vm344, %v407, %v411
    %v414 = vshrl.u32 %v259, 16
    %v416 = vrot.slane %v414, 4
    %v417 = vshll.u32 %v259, 16
    %v419 = vrot.slane %v417, 5
    %v420 = vor.u32 %v416, %v419
    %v421 = vrot.slane %v420, 4
    %v423 = vshll.u32 %v260, 16
    %v425 = vrot.slane %v423, 5
    %v426 = vsel %vm344, %v421, %v425
    %v427 = vshrl.u32 %v260, 16
    %v429 = vrot.slane %v427, 4
    %v430 = vor.u32 %v429, %v425
    %v431 = vrot.slane %v430, 4
    %v433 = vshll.u32 %v261, 16
    %v435 = vrot.slane %v433, 5
    %v436 = vsel %vm344, %v431, %v435
    %v437 = vshrl.u32 %v261, 16
    %v439 = vrot.slane %v437, 4
    %v440 = vor.u32 %v439, %v435
    %v441 = vrot.slane %v440, 4
    %v443 = vshll.u32 %v336, 16
    %v445 = vrot.slane %v443, 5
    %v446 = vsel %vm344, %v441, %v445
    %v448 = vshrl.u32 %v262, 16
    %v450 = vrot.slane %v448, 4
    %v451 = vshll.u32 %v262, 16
    %v453 = vrot.slane %v451, 5
    %v454 = vor.u32 %v450, %v453
    %v455 = vrot.slane %v454, 4
    %v457 = vshll.u32 %v263, 16
    %v459 = vrot.slane %v457, 5
    %v460 = vsel %vm344, %v455, %v459
    %v461 = vshrl.u32 %v263, 16
    %v463 = vrot.slane %v461, 4
    %v464 = vor.u32 %v463, %v459
    %v465 = vrot.slane %v464, 4
    %v467 = vshll.u32 %v264, 16
    %v469 = vrot.slane %v467, 5
    %v470 = vsel %vm344, %v465, %v469
    %v471 = vshrl.u32 %v264, 16
    %v473 = vrot.slane %v471, 4
    %v474 = vor.u32 %v473, %v469
    %v475 = vrot.slane %v474, 4
    %v477 = vshll.u32 %v337, 16
    %v479 = vrot.slane %v477, 5
    %v480 = vsel %vm344, %v475, %v479
    %v482 = vshrl.u32 %v265, 16
    %v484 = vrot.slane %v482, 4
    %v485 = vshll.u32 %v265, 16
    %v487 = vrot.slane %v485, 5
    %v488 = vor.u32 %v484, %v487
    %v489 = vrot.slane %v488, 4
    %v491 = vshll.u32 %v266, 16
    %v493 = vrot.slane %v491, 5
    %v494 = vsel %vm344, %v489, %v493
    %v495 = vshrl.u32 %v266, 16
    %v497 = vrot.slane %v495, 4
    %v498 = vor.u32 %v497, %v493
    %v499 = vrot.slane %v498, 4
    %v501 = vshll.u32 %v267, 16
    %v503 = vrot.slane %v501, 5
    %v504 = vsel %vm344, %v499, %v503
    %v505 = vshrl.u32 %v267, 16
    %v507 = vrot.slane %v505, 4
    %v508 = vor.u32 %v507, %v503
    %v509 = vrot.slane %v508, 4
    %v511 = vshll.u32 %v338, 16
    %v513 = vrot.slane %v511, 5
    %v514 = vsel %vm344, %v509, %v513
    %v516 = vshrl.u32 %v268, 16
    %v518 = vrot.slane %v516, 4
    %v519 = vshll.u32 %v268, 16
    %v521 = vrot.slane %v519, 5
    %v522 = vor.u32 %v518, %v521
    %v523 = vrot.slane %v522, 4
    %v525 = vshll.u32 %v269, 16
    %v527 = vrot.slane %v525, 5
    %v528 = vsel %vm344, %v523, %v527
    %v529 = vshrl.u32 %v269, 16
    %v531 = vrot.slane %v529, 4
    %v532 = vor.u32 %v531, %v527
    %v533 = vrot.slane %v532, 4
    %v535 = vshll.u32 %v270, 16
    %v537 = vrot.slane %v535, 5
    %v538 = vsel %vm344, %v533, %v537
    %v539 = vshrl.u32 %v270, 16
    %v541 = vrot.slane %v539, 4
    %v542 = vor.u32 %v541, %v537
    %v543 = vrot.slane %v542, 4
    %v545 = vshll.u32 %v339, 16
    %v547 = vrot.slane %v545, 5
    %v548 = vsel %vm344, %v543, %v547
    %v550 = vshrl.u32 %v271, 16
    %v552 = vrot.slane %v550, 4
    %v553 = vshll.u32 %v271, 16
    %v555 = vrot.slane %v553, 5
    %v556 = vor.u32 %v552, %v555
    %v557 = vrot.slane %v556, 4
    %v559 = vshll.u32 %v272, 16
    %v561 = vrot.slane %v559, 5
    %v562 = vsel %vm344, %v557, %v561
    %v563 = vshrl.u32 %v272, 16
    %v565 = vrot.slane %v563, 4
    %v566 = vor.u32 %v565, %v561
    %v567 = vrot.slane %v566, 4
    %v569 = vshll.u32 %v273, 16
    %v571 = vrot.slane %v569, 5
    %v572 = vsel %vm344, %v567, %v571
    %v573 = vshrl.u32 %v273, 16
    %v575 = vrot.slane %v573, 4
    %v576 = vor.u32 %v575, %v571
    %v577 = vrot.slane %v576, 4
    %v579 = vshll.u32 %v340, 16
    %v581 = vrot.slane %v579, 5
    %v582 = vsel %vm344, %v577, %v581
    %v584 = vshrl.u32 %v274, 16
    %v586 = vrot.slane %v584, 4
    %v587 = vshll.u32 %v274, 16
    %v589 = vrot.slane %v587, 5
    %v590 = vor.u32 %v586, %v589
    %v591 = vrot.slane %v590, 4
    %v593 = vshll.u32 %v275, 16
    %v595 = vrot.slane %v593, 5
    %v596 = vsel %vm344, %v591, %v595
    %v597 = vshrl.u32 %v275, 16
    %v599 = vrot.slane %v597, 4
    %v600 = vor.u32 %v599, %v595
    %v601 = vrot.slane %v600, 4
    %v603 = vshll.u32 %v276, 16
    %v605 = vrot.slane %v603, 5
    %v606 = vsel %vm344, %v601, %v605
    %v607 = vshrl.u32 %v276, 16
    %v609 = vrot.slane %v607, 4
    %v610 = vor.u32 %v609, %v605
    %v611 = vrot.slane %v610, 4
    %v613 = vshll.u32 %v341, 16
    %v615 = vrot.slane %v613, 5
    %v616 = vsel %vm344, %v611, %v615
    %617 = vrot.lane.b32.xlu0 %v358, 32
    %v618 = vpop.permute.xlu0 %617
    %619 = vrot.lane.b32.xlu0 %v368, 32
    %v620 = vpop.permute.xlu0 %619
    %621 = vrot.lane.b32.xlu0 %v378, 32
    %v622 = vpop.permute.xlu0 %621
    %623 = vrot.lane.b32.xlu0 %v392, 32
    %v624 = vpop.permute.xlu0 %623
    %625 = vrot.lane.b32.xlu0 %v402, 32
    %v626 = vpop.permute.xlu0 %625
    %627 = vrot.lane.b32.xlu0 %v412, 32
    %v628 = vpop.permute.xlu0 %627
    %629 = vrot.lane.b32.xlu0 %v426, 32
    %v630 = vpop.permute.xlu0 %629
    %631 = vrot.lane.b32.xlu0 %v436, 32
    %v632 = vpop.permute.xlu0 %631
    %633 = vrot.lane.b32.xlu0 %v446, 32
    %v634 = vpop.permute.xlu0 %633
    %635 = vrot.lane.b32.xlu0 %v460, 32
    %v636 = vpop.permute.xlu0 %635
    %637 = vrot.lane.b32.xlu0 %v470, 32
    %v638 = vpop.permute.xlu0 %637
    %639 = vrot.lane.b32.xlu0 %v480, 32
    %v640 = vpop.permute.xlu0 %639
    %641 = vrot.lane.b32.xlu0 %v494, 32
    %v642 = vpop.permute.xlu0 %641
    %643 = vrot.lane.b32.xlu0 %v504, 32
    %v644 = vpop.permute.xlu0 %643
    %645 = vrot.lane.b32.xlu0 %v514, 32
    %v646 = vpop.permute.xlu0 %645
    %647 = vrot.lane.b32.xlu0 %v528, 32
    %v648 = vpop.permute.xlu0 %647
    %649 = vrot.lane.b32.xlu0 %v538, 32
    %v650 = vpop.permute.xlu0 %649
    %651 = vrot.lane.b32.xlu0 %v548, 32
    %v652 = vpop.permute.xlu0 %651
    %653 = vrot.lane.b32.xlu0 %v562, 32
    %v654 = vpop.permute.xlu0 %653
    %655 = vrot.lane.b32.xlu0 %v572, 32
    %v656 = vpop.permute.xlu0 %655
    %657 = vrot.lane.b32.xlu0 %v582, 32
    %v658 = vpop.permute.xlu0 %657
    %659 = vrot.lane.b32.xlu0 %v596, 32
    %v660 = vpop.permute.xlu0 %659
    %661 = vrot.lane.b32.xlu0 %v606, 32
    %v662 = vpop.permute.xlu0 %661
    %663 = vrot.lane.b32.xlu0 %v616, 32
    %v664 = vpop.permute.xlu0 %663
    %vm689 = vcmask 519424
    %690 = vst.msk [vmem:[#allocation3] sm:$0xf] %vm689, %v618
    %691 = vst.msk [vmem:[#allocation3 + $0x8] sm:$0xf] %vm689, %v620
    %692 = vst.msk [vmem:[#allocation3 + $0x10] sm:$0xf] %vm689, %v622
    %693 = vst.msk [vmem:[#allocation3 + $0x18] sm:$0xf] %vm689, %v624
    %694 = vst.msk [vmem:[#allocation3 + $0x20] sm:$0xf] %vm689, %v626
    %695 = vst.msk [vmem:[#allocation3 + $0x28] sm:$0xf] %vm689, %v628
    %696 = vst.msk [vmem:[#allocation3 + $0x30] sm:$0xf] %vm689, %v630
    %697 = vst.msk [vmem:[#allocation3 + $0x38] sm:$0xf] %vm689, %v632
    %698 = vst.msk [vmem:[#allocation3 + $0x40] sm:$0xf] %vm689, %v634
    %699 = vst.msk [vmem:[#allocation3 + $0x48] sm:$0xf] %vm689, %v636
    %700 = vst.msk [vmem:[#allocation3 + $0x50] sm:$0xf] %vm689, %v638
    %701 = vst.msk [vmem:[#allocation3 + $0x58] sm:$0xf] %vm689, %v640
    %702 = vst.msk [vmem:[#allocation3 + $0x60] sm:$0xf] %vm689, %v642
    %703 = vst.msk [vmem:[#allocation3 + $0x68] sm:$0xf] %vm689, %v644
    %704 = vst.msk [vmem:[#allocation3 + $0x70] sm:$0xf] %vm689, %v646
    %705 = vst.msk [vmem:[#allocation3 + $0x78] sm:$0xf] %vm689, %v648
    %706 = vst.msk [vmem:[#allocation3 + $0x80] sm:$0xf] %vm689, %v650
    %707 = vst.msk [vmem:[#allocation3 + $0x88] sm:$0xf] %vm689, %v652
    %708 = vst.msk [vmem:[#allocation3 + $0x90] sm:$0xf] %vm689, %v654
    %709 = vst.msk [vmem:[#allocation3 + $0x98] sm:$0xf] %vm689, %v656
    %710 = vst.msk [vmem:[#allocation3 + $0xa0] sm:$0xf] %vm689, %v658
    %711 = vst.msk [vmem:[#allocation3 + $0xa8] sm:$0xf] %vm689, %v660
    %712 = vst.msk [vmem:[#allocation3 + $0xb0] sm:$0xf] %vm689, %v662
    %713 = vst.msk [vmem:[#allocation3 + $0xb8] sm:$0xf] %vm689, %v664
    %vm714 = vcmask 1042432
    %vm715 = vcmask 1046532
    %vm716 = vmor %vm714, %vm715
    %v717 = vrot.slane %v253, 5
    %v718 = vrot.slane %v717, 4
    %v719 = vrot.slane %v254, 5
    %v720 = vsel %vm716, %v718, %v719
    %v721 = vrot.slane %v719, 4
    %v722 = vrot.slane %v255, 5
    %v723 = vsel %vm716, %v721, %v722
    %v724 = vrot.slane %v722, 4
    %v725 = vrot.slane %v334, 5
    %v726 = vsel %vm716, %v724, %v725
    %v727 = vrot.slane %v256, 5
    %v728 = vrot.slane %v727, 4
    %v729 = vrot.slane %v257, 5
    %v730 = vsel %vm716, %v728, %v729
    %v731 = vrot.slane %v729, 4
    %v732 = vrot.slane %v258, 5
    %v733 = vsel %vm716, %v731, %v732
    %v734 = vrot.slane %v732, 4
    %v735 = vrot.slane %v335, 5
    %v736 = vsel %vm716, %v734, %v735
    %v737 = vrot.slane %v259, 5
    %v738 = vrot.slane %v737, 4
    %v739 = vrot.slane %v260, 5
    %v740 = vsel %vm716, %v738, %v739
    %v741 = vrot.slane %v739, 4
    %v742 = vrot.slane %v261, 5
    %v743 = vsel %vm716, %v741, %v742
    %v744 = vrot.slane %v742, 4
    %v745 = vrot.slane %v336, 5
    %v746 = vsel %vm716, %v744, %v745
    %v747 = vrot.slane %v262, 5
    %v748 = vrot.slane %v747, 4
    %v749 = vrot.slane %v263, 5
    %v750 = vsel %vm716, %v748, %v749
    %v751 = vrot.slane %v749, 4
    %v752 = vrot.slane %v264, 5
    %v753 = vsel %vm716, %v751, %v752
    %v754 = vrot.slane %v752, 4
    %v755 = vrot.slane %v337, 5
    %v756 = vsel %vm716, %v754, %v755
    %v757 = vrot.slane %v265, 5
    %v758 = vrot.slane %v757, 4
    %v759 = vrot.slane %v266, 5
    %v760 = vsel %vm716, %v758, %v759
    %v761 = vrot.slane %v759, 4
    %v762 = vrot.slane %v267, 5
    %v763 = vsel %vm716, %v761, %v762
    %v764 = vrot.slane %v762, 4
    %v765 = vrot.slane %v338, 5
    %v766 = vsel %vm716, %v764, %v765
    %v767 = vrot.slane %v268, 5
    %v768 = vrot.slane %v767, 4
    %v769 = vrot.slane %v269, 5
    %v770 = vsel %vm716, %v768, %v769
    %v771 = vrot.slane %v769, 4
    %v772 = vrot.slane %v270, 5
    %v773 = vsel %vm716, %v771, %v772
    %v774 = vrot.slane %v772, 4
    %v775 = vrot.slane %v339, 5
    %v776 = vsel %vm716, %v774, %v775
    %v777 = vrot.slane %v271, 5
    %v778 = vrot.slane %v777, 4
    %v779 = vrot.slane %v272, 5
    %v780 = vsel %vm716, %v778, %v779
    %v781 = vrot.slane %v779, 4
    %v782 = vrot.slane %v273, 5
    %v783 = vsel %vm716, %v781, %v782
    %v784 = vrot.slane %v782, 4
    %v785 = vrot.slane %v340, 5
    %v786 = vsel %vm716, %v784, %v785
    %v787 = vrot.slane %v274, 5
    %v788 = vrot.slane %v787, 4
    %v789 = vrot.slane %v275, 5
    %v790 = vsel %vm716, %v788, %v789
    %v791 = vrot.slane %v789, 4
    %v792 = vrot.slane %v276, 5
    %v793 = vsel %vm716, %v791, %v792
    %v794 = vrot.slane %v792, 4
    %v795 = vrot.slane %v341, 5
    %v796 = vsel %vm716, %v794, %v795
    %797 = vrot.lane.b32.xlu0 %v720, 64
    %v798 = vpop.permute.xlu0 %797
    %799 = vrot.lane.b32.xlu0 %v723, 64
    %v800 = vpop.permute.xlu0 %799
    %801 = vrot.lane.b32.xlu0 %v726, 64
    %v802 = vpop.permute.xlu0 %801
    %803 = vrot.lane.b32.xlu0 %v730, 64
    %v804 = vpop.permute.xlu0 %803
    %805 = vrot.lane.b32.xlu0 %v733, 64
    %v806 = vpop.permute.xlu0 %805
    %807 = vrot.lane.b32.xlu0 %v736, 64
    %v808 = vpop.permute.xlu0 %807
    %809 = vrot.lane.b32.xlu0 %v740, 64
    %v810 = vpop.permute.xlu0 %809
    %811 = vrot.lane.b32.xlu0 %v743, 64
    %v812 = vpop.permute.xlu0 %811
    %813 = vrot.lane.b32.xlu0 %v746, 64
    %v814 = vpop.permute.xlu0 %813
    %815 = vrot.lane.b32.xlu0 %v750, 64
    %v816 = vpop.permute.xlu0 %815
    %817 = vrot.lane.b32.xlu0 %v753, 64
    %v818 = vpop.permute.xlu0 %817
    %819 = vrot.lane.b32.xlu0 %v756, 64
    %v820 = vpop.permute.xlu0 %819
    %821 = vrot.lane.b32.xlu0 %v760, 64
    %v822 = vpop.permute.xlu0 %821
    %823 = vrot.lane.b32.xlu0 %v763, 64
    %v824 = vpop.permute.xlu0 %823
    %825 = vrot.lane.b32.xlu0 %v766, 64
    %v826 = vpop.permute.xlu0 %825
    %827 = vrot.lane.b32.xlu0 %v770, 64
    %v828 = vpop.permute.xlu0 %827
    %829 = vrot.lane.b32.xlu0 %v773, 64
    %v830 = vpop.permute.xlu0 %829
    %831 = vrot.lane.b32.xlu0 %v776, 64
    %v832 = vpop.permute.xlu0 %831
    %833 = vrot.lane.b32.xlu0 %v780, 64
    %v834 = vpop.permute.xlu0 %833
    %835 = vrot.lane.b32.xlu0 %v783, 64
    %v836 = vpop.permute.xlu0 %835
    %837 = vrot.lane.b32.xlu0 %v786, 64
    %v838 = vpop.permute.xlu0 %837
    %839 = vrot.lane.b32.xlu0 %v790, 64
    %v840 = vpop.permute.xlu0 %839
    %841 = vrot.lane.b32.xlu0 %v793, 64
    %v842 = vpop.permute.xlu0 %841
    %843 = vrot.lane.b32.xlu0 %v796, 64
    %v844 = vpop.permute.xlu0 %843
    %vm869 = vcmask 781824
    %870 = vst.msk [vmem:[#allocation3] sm:$0xf] %vm869, %v798
    %871 = vst.msk [vmem:[#allocation3 + $0x8] sm:$0xf] %vm869, %v800
    %872 = vst.msk [vmem:[#allocation3 + $0x10] sm:$0xf] %vm869, %v802
    %873 = vst.msk [vmem:[#allocation3 + $0x18] sm:$0xf] %vm869, %v804
    %874 = vst.msk [vmem:[#allocation3 + $0x20] sm:$0xf] %vm869, %v806
    %875 = vst.msk [vmem:[#allocation3 + $0x28] sm:$0xf] %vm869, %v808
    %876 = vst.msk [vmem:[#allocation3 + $0x30] sm:$0xf] %vm869, %v810
    %877 = vst.msk [vmem:[#allocation3 + $0x38] sm:$0xf] %vm869, %v812
    %878 = vst.msk [vmem:[#allocation3 + $0x40] sm:$0xf] %vm869, %v814
    %879 = vst.msk [vmem:[#allocation3 + $0x48] sm:$0xf] %vm869, %v816
    %880 = vst.msk [vmem:[#allocation3 + $0x50] sm:$0xf] %vm869, %v818
    %881 = vst.msk [vmem:[#allocation3 + $0x58] sm:$0xf] %vm869, %v820
    %882 = vst.msk [vmem:[#allocation3 + $0x60] sm:$0xf] %vm869, %v822
    %883 = vst.msk [vmem:[#allocation3 + $0x68] sm:$0xf] %vm869, %v824
    %884 = vst.msk [vmem:[#allocation3 + $0x70] sm:$0xf] %vm869, %v826
    %885 = vst.msk [vmem:[#allocation3 + $0x78] sm:$0xf] %vm869, %v828
    %886 = vst.msk [vmem:[#allocation3 + $0x80] sm:$0xf] %vm869, %v830
    %887 = vst.msk [vmem:[#allocation3 + $0x88] sm:$0xf] %vm869, %v832
    %888 = vst.msk [vmem:[#allocation3 + $0x90] sm:$0xf] %vm869, %v834
    %889 = vst.msk [vmem:[#allocation3 + $0x98] sm:$0xf] %vm869, %v836
    %890 = vst.msk [vmem:[#allocation3 + $0xa0] sm:$0xf] %vm869, %v838
    %891 = vst.msk [vmem:[#allocation3 + $0xa8] sm:$0xf] %vm869, %v840
    %892 = vst.msk [vmem:[#allocation3 + $0xb0] sm:$0xf] %vm869, %v842
    %893 = vst.msk [vmem:[#allocation3 + $0xb8] sm:$0xf] %vm869, %v844
    %vm894 = vsmask.f32 2304
    %vm895 = vsmask.f32 6416
    %vm896 = vmor %vm894, %vm895
    %v897 = vrot.slane %v346, 5
    %v898 = vrot.slane %v349, 6
    %v899 = vor.u32 %v897, %v898
    %v900 = vrot.slane %v899, 4
    %v901 = vrot.slane %v359, 5
    %v902 = vrot.slane %v355, 6
    %v903 = vor.u32 %v901, %v902
    %v904 = vsel %vm896, %v900, %v903
    %v905 = vrot.slane %v903, 4
    %v906 = vrot.slane %v369, 5
    %v907 = vrot.slane %v365, 6
    %v908 = vor.u32 %v906, %v907
    %v909 = vsel %vm896, %v905, %v908
    %v910 = vrot.slane %v908, 4
    %v911 = vshrl.u32 %v334, 16
    %v913 = vrot.slane %v911, 5
    %v914 = vrot.slane %v375, 6
    %v915 = vor.u32 %v913, %v914
    %v916 = vsel %vm896, %v910, %v915
    %v917 = vrot.slane %v380, 5
    %v918 = vrot.slane %v383, 6
    %v919 = vor.u32 %v917, %v918
    %v920 = vrot.slane %v919, 4
    %v921 = vrot.slane %v393, 5
    %v922 = vrot.slane %v389, 6
    %v923 = vor.u32 %v921, %v922
    %v924 = vsel %vm896, %v920, %v923
    %v925 = vrot.slane %v923, 4
    %v926 = vrot.slane %v403, 5
    %v927 = vrot.slane %v399, 6
    %v928 = vor.u32 %v926, %v927
    %v929 = vsel %vm896, %v925, %v928
    %v930 = vrot.slane %v928, 4
    %v931 = vshrl.u32 %v335, 16
    %v933 = vrot.slane %v931, 5
    %v934 = vrot.slane %v409, 6
    %v935 = vor.u32 %v933, %v934
    %v936 = vsel %vm896, %v930, %v935
    %v937 = vrot.slane %v414, 5
    %v938 = vrot.slane %v417, 6
    %v939 = vor.u32 %v937, %v938
    %v940 = vrot.slane %v939, 4
    %v941 = vrot.slane %v427, 5
    %v942 = vrot.slane %v423, 6
    %v943 = vor.u32 %v941, %v942
    %v944 = vsel %vm896, %v940, %v943
    %v945 = vrot.slane %v943, 4
    %v946 = vrot.slane %v437, 5
    %v947 = vrot.slane %v433, 6
    %v948 = vor.u32 %v946, %v947
    %v949 = vsel %vm896, %v945, %v948
    %v950 = vrot.slane %v948, 4
    %v951 = vshrl.u32 %v336, 16
    %v953 = vrot.slane %v951, 5
    %v954 = vrot.slane %v443, 6
    %v955 = vor.u32 %v953, %v954
    %v956 = vsel %vm896, %v950, %v955
    %v957 = vrot.slane %v448, 5
    %v958 = vrot.slane %v451, 6
    %v959 = vor.u32 %v957, %v958
    %v960 = vrot.slane %v959, 4
    %v961 = vrot.slane %v461, 5
    %v962 = vrot.slane %v457, 6
    %v963 = vor.u32 %v961, %v962
    %v964 = vsel %vm896, %v960, %v963
    %v965 = vrot.slane %v963, 4
    %v966 = vrot.slane %v471, 5
    %v967 = vrot.slane %v467, 6
    %v968 = vor.u32 %v966, %v967
    %v969 = vsel %vm896, %v965, %v968
    %v970 = vrot.slane %v968, 4
    %v971 = vshrl.u32 %v337, 16
    %v973 = vrot.slane %v971, 5
    %v974 = vrot.slane %v477, 6
    %v975 = vor.u32 %v973, %v974
    %v976 = vsel %vm896, %v970, %v975
    %v977 = vrot.slane %v482, 5
    %v978 = vrot.slane %v485, 6
    %v979 = vor.u32 %v977, %v978
    %v980 = vrot.slane %v979, 4
    %v981 = vrot.slane %v495, 5
    %v982 = vrot.slane %v491, 6
    %v983 = vor.u32 %v981, %v982
    %v984 = vsel %vm896, %v980, %v983
    %v985 = vrot.slane %v983, 4
    %v986 = vrot.slane %v505, 5
    %v987 = vrot.slane %v501, 6
    %v988 = vor.u32 %v986, %v987
    %v989 = vsel %vm896, %v985, %v988
    %v990 = vrot.slane %v988, 4
    %v991 = vshrl.u32 %v338, 16
    %v993 = vrot.slane %v991, 5
    %v994 = vrot.slane %v511, 6
    %v995 = vor.u32 %v993, %v994
    %v996 = vsel %vm896, %v990, %v995
    %v997 = vrot.slane %v516, 5
    %v998 = vrot.slane %v519, 6
    %v999 = vor.u32 %v997, %v998
    %v1000 = vrot.slane %v999, 4
    %v1001 = vrot.slane %v529, 5
    %v1002 = vrot.slane %v525, 6
    %v1003 = vor.u32 %v1001, %v1002
    %v1004 = vsel %vm896, %v1000, %v1003
    %v1005 = vrot.slane %v1003, 4
    %v1006 = vrot.slane %v539, 5
    %v1007 = vrot.slane %v535, 6
    %v1008 = vor.u32 %v1006, %v1007
    %v1009 = vsel %vm896, %v1005, %v1008
    %v1010 = vrot.slane %v1008, 4
    %v1011 = vshrl.u32 %v339, 16
    %v1013 = vrot.slane %v1011, 5
    %v1014 = vrot.slane %v545, 6
    %v1015 = vor.u32 %v1013, %v1014
    %v1016 = vsel %vm896, %v1010, %v1015
    %v1017 = vrot.slane %v550, 5
    %v1018 = vrot.slane %v553, 6
    %v1019 = vor.u32 %v1017, %v1018
    %v1020 = vrot.slane %v1019, 4
    %v1021 = vrot.slane %v563, 5
    %v1022 = vrot.slane %v559, 6
    %v1023 = vor.u32 %v1021, %v1022
    %v1024 = vsel %vm896, %v1020, %v1023
    %v1025 = vrot.slane %v1023, 4
    %v1026 = vrot.slane %v573, 5
    %v1027 = vrot.slane %v569, 6
    %v1028 = vor.u32 %v1026, %v1027
    %v1029 = vsel %vm896, %v1025, %v1028
    %v1030 = vrot.slane %v1028, 4
    %v1031 = vshrl.u32 %v340, 16
    %v1033 = vrot.slane %v1031, 5
    %v1034 = vrot.slane %v579, 6
    %v1035 = vor.u32 %v1033, %v1034
    %v1036 = vsel %vm896, %v1030, %v1035
    %v1037 = vrot.slane %v584, 5
    %v1038 = vrot.slane %v587, 6
    %v1039 = vor.u32 %v1037, %v1038
    %v1040 = vrot.slane %v1039, 4
    %v1041 = vrot.slane %v597, 5
    %v1042 = vrot.slane %v593, 6
    %v1043 = vor.u32 %v1041, %v1042
    %v1044 = vsel %vm896, %v1040, %v1043
    %v1045 = vrot.slane %v1043, 4
    %v1046 = vrot.slane %v607, 5
    %v1047 = vrot.slane %v603, 6
    %v1048 = vor.u32 %v1046, %v1047
    %v1049 = vsel %vm896, %v1045, %v1048
    %v1050 = vrot.slane %v1048, 4
    %v1051 = vshrl.u32 %v341, 16
    %v1053 = vrot.slane %v1051, 5
    %v1054 = vrot.slane %v613, 6
    %v1055 = vor.u32 %v1053, %v1054
    %v1056 = vsel %vm896, %v1050, %v1055
    %1057 = vrot.lane.b32.xlu0 %v904, 96
    %v1058 = vpop.permute.xlu0 %1057
    %1059 = vrot.lane.b32.xlu0 %v909, 96
    %v1060 = vpop.permute.xlu0 %1059
    %1061 = vrot.lane.b32.xlu0 %v916, 96
    %v1062 = vpop.permute.xlu0 %1061
    %1063 = vrot.lane.b32.xlu0 %v924, 96
    %v1064 = vpop.permute.xlu0 %1063
    %1065 = vrot.lane.b32.xlu0 %v929, 96
    %v1066 = vpop.permute.xlu0 %1065
    %1067 = vrot.lane.b32.xlu0 %v936, 96
    %v1068 = vpop.permute.xlu0 %1067
    %1069 = vrot.lane.b32.xlu0 %v944, 96
    %v1070 = vpop.permute.xlu0 %1069
    %1071 = vrot.lane.b32.xlu0 %v949, 96
    %v1072 = vpop.permute.xlu0 %1071
    %1073 = vrot.lane.b32.xlu0 %v956, 96
    %v1074 = vpop.permute.xlu0 %1073
    %1075 = vrot.lane.b32.xlu0 %v964, 96
    %v1076 = vpop.permute.xlu0 %1075
    %1077 = vrot.lane.b32.xlu0 %v969, 96
    %v1078 = vpop.permute.xlu0 %1077
    %1079 = vrot.lane.b32.xlu0 %v976, 96
    %v1080 = vpop.permute.xlu0 %1079
    %1081 = vrot.lane.b32.xlu0 %v984, 96
    %v1082 = vpop.permute.xlu0 %1081
    %1083 = vrot.lane.b32.xlu0 %v989, 96
    %v1084 = vpop.permute.xlu0 %1083
    %1085 = vrot.lane.b32.xlu0 %v996, 96
    %v1086 = vpop.permute.xlu0 %1085
    %1087 = vrot.lane.b32.xlu0 %v1004, 96
    %v1088 = vpop.permute.xlu0 %1087
    %1089 = vrot.lane.b32.xlu0 %v1009, 96
    %v1090 = vpop.permute.xlu0 %1089
    %1091 = vrot.lane.b32.xlu0 %v1016, 96
    %v1092 = vpop.permute.xlu0 %1091
    %1093 = vrot.lane.b32.xlu0 %v1024, 96
    %v1094 = vpop.permute.xlu0 %1093
    %1095 = vrot.lane.b32.xlu0 %v1029, 96
    %v1096 = vpop.permute.xlu0 %1095
    %1097 = vrot.lane.b32.xlu0 %v1036, 96
    %v1098 = vpop.permute.xlu0 %1097
    %1099 = vrot.lane.b32.xlu0 %v1044, 96
    %v1100 = vpop.permute.xlu0 %1099
    %1101 = vrot.lane.b32.xlu0 %v1049, 96
    %v1102 = vpop.permute.xlu0 %1101
    %1103 = vrot.lane.b32.xlu0 %v1056, 96
    %v1104 = vpop.permute.xlu0 %1103
    %vm1129 = vcmask 1044224
    %1130 = vst.msk [vmem:[#allocation3] sm:$0xf] %vm1129, %v1058
    %1131 = vst.msk [vmem:[#allocation3 + $0x8] sm:$0xf] %vm1129, %v1060
    %1132 = vst.msk [vmem:[#allocation3 + $0x10] sm:$0xf] %vm1129, %v1062
    %1133 = vst.msk [vmem:[#allocation3 + $0x18] sm:$0xf] %vm1129, %v1064
    %1134 = vst.msk [vmem:[#allocation3 + $0x20] sm:$0xf] %vm1129, %v1066
    %1135 = vst.msk [vmem:[#allocation3 + $0x28] sm:$0xf] %vm1129, %v1068
    %1136 = vst.msk [vmem:[#allocation3 + $0x30] sm:$0xf] %vm1129, %v1070
    %1137 = vst.msk [vmem:[#allocation3 + $0x38] sm:$0xf] %vm1129, %v1072
    %1138 = vst.msk [vmem:[#allocation3 + $0x40] sm:$0xf] %vm1129, %v1074
    %1139 = vst.msk [vmem:[#allocation3 + $0x48] sm:$0xf] %vm1129, %v1076
    %1140 = vst.msk [vmem:[#allocation3 + $0x50] sm:$0xf] %vm1129, %v1078
    %1141 = vst.msk [vmem:[#allocation3 + $0x58] sm:$0xf] %vm1129, %v1080
    %1142 = vst.msk [vmem:[#allocation3 + $0x60] sm:$0xf] %vm1129, %v1082
    %1143 = vst.msk [vmem:[#allocation3 + $0x68] sm:$0xf] %vm1129, %v1084
    %1144 = vst.msk [vmem:[#allocation3 + $0x70] sm:$0xf] %vm1129, %v1086
    %1145 = vst.msk [vmem:[#allocation3 + $0x78] sm:$0xf] %vm1129, %v1088
    %1146 = vst.msk [vmem:[#allocation3 + $0x80] sm:$0xf] %vm1129, %v1090
    %1147 = vst.msk [vmem:[#allocation3 + $0x88] sm:$0xf] %vm1129, %v1092
    %1148 = vst.msk [vmem:[#allocation3 + $0x90] sm:$0xf] %vm1129, %v1094
    %1149 = vst.msk [vmem:[#allocation3 + $0x98] sm:$0xf] %vm1129, %v1096
    %1150 = vst.msk [vmem:[#allocation3 + $0xa0] sm:$0xf] %vm1129, %v1098
    %1151 = vst.msk [vmem:[#allocation3 + $0xa8] sm:$0xf] %vm1129, %v1100
    %1152 = vst.msk [vmem:[#allocation3 + $0xb0] sm:$0xf] %vm1129, %v1102
    %1153 = vst.msk [vmem:[#allocation3 + $0xb8] sm:$0xf] %vm1129, %v1104
    %vm1154 = vcmask 1041408
    %vm1155 = vcmask 1045508
    %vm1156 = vmor %vm1154, %vm1155
    %v1157 = vrot.slane %v253, 6
    %v1158 = vrot.slane %v1157, 4
    %v1159 = vrot.slane %v254, 6
    %v1160 = vsel %vm1156, %v1158, %v1159
    %v1161 = vrot.slane %v1159, 4
    %v1162 = vrot.slane %v255, 6
    %v1163 = vsel %vm1156, %v1161, %v1162
    %v1164 = vrot.slane %v1162, 4
    %v1165 = vrot.slane %v334, 6
    %v1166 = vsel %vm1156, %v1164, %v1165
    %v1167 = vrot.slane %v256, 6
    %v1168 = vrot.slane %v1167, 4
    %v1169 = vrot.slane %v257, 6
    %v1170 = vsel %vm1156, %v1168, %v1169
    %v1171 = vrot.slane %v1169, 4
    %v1172 = vrot.slane %v258, 6
    %v1173 = vsel %vm1156, %v1171, %v1172
    %v1174 = vrot.slane %v1172, 4
    %v1175 = vrot.slane %v335, 6
    %v1176 = vsel %vm1156, %v1174, %v1175
    %v1177 = vrot.slane %v259, 6
    %v1178 = vrot.slane %v1177, 4
    %v1179 = vrot.slane %v260, 6
    %v1180 = vsel %vm1156, %v1178, %v1179
    %v1181 = vrot.slane %v1179, 4
    %v1182 = vrot.slane %v261, 6
    %v1183 = vsel %vm1156, %v1181, %v1182
    %v1184 = vrot.slane %v1182, 4
    %v1185 = vrot.slane %v336, 6
    %v1186 = vsel %vm1156, %v1184, %v1185
    %v1187 = vrot.slane %v262, 6
    %v1188 = vrot.slane %v1187, 4
    %v1189 = vrot.slane %v263, 6
    %v1190 = vsel %vm1156, %v1188, %v1189
    %v1191 = vrot.slane %v1189, 4
    %v1192 = vrot.slane %v264, 6
    %v1193 = vsel %vm1156, %v1191, %v1192
    %v1194 = vrot.slane %v1192, 4
    %v1195 = vrot.slane %v337, 6
    %v1196 = vsel %vm1156, %v1194, %v1195
    %v1197 = vrot.slane %v265, 6
    %v1198 = vrot.slane %v1197, 4
    %v1199 = vrot.slane %v266, 6
    %v1200 = vsel %vm1156, %v1198, %v1199
    %v1201 = vrot.slane %v1199, 4
    %v1202 = vrot.slane %v267, 6
    %v1203 = vsel %vm1156, %v1201, %v1202
    %v1204 = vrot.slane %v1202, 4
    %v1205 = vrot.slane %v338, 6
    %v1206 = vsel %vm1156, %v1204, %v1205
    %v1207 = vrot.slane %v268, 6
    %v1208 = vrot.slane %v1207, 4
    %v1209 = vrot.slane %v269, 6
    %v1210 = vsel %vm1156, %v1208, %v1209
    %v1211 = vrot.slane %v1209, 4
    %v1212 = vrot.slane %v270, 6
    %v1213 = vsel %vm1156, %v1211, %v1212
    %v1214 = vrot.slane %v1212, 4
    %v1215 = vrot.slane %v339, 6
    %v1216 = vsel %vm1156, %v1214, %v1215
    %v1217 = vrot.slane %v271, 6
    %v1218 = vrot.slane %v1217, 4
    %v1219 = vrot.slane %v272, 6
    %v1220 = vsel %vm1156, %v1218, %v1219
    %v1221 = vrot.slane %v1219, 4
    %v1222 = vrot.slane %v273, 6
    %v1223 = vsel %vm1156, %v1221, %v1222
    %v1224 = vrot.slane %v1222, 4
    %v1225 = vrot.slane %v340, 6
    %v1226 = vsel %vm1156, %v1224, %v1225
    %v1227 = vrot.slane %v274, 6
    %v1228 = vrot.slane %v1227, 4
    %v1229 = vrot.slane %v275, 6
    %v1230 = vsel %vm1156, %v1228, %v1229
    %v1231 = vrot.slane %v1229, 4
    %v1232 = vrot.slane %v276, 6
    %v1233 = vsel %vm1156, %v1231, %v1232
    %v1234 = vrot.slane %v1232, 4
    %v1235 = vrot.slane %v341, 6
    %v1236 = vsel %vm1156, %v1234, %v1235
    %1261 = vst.msk [vmem:[#allocation3 + $0x4] sm:$0xf] %vm301, %v1160
    %1262 = vst.msk [vmem:[#allocation3 + $0xc] sm:$0xf] %vm301, %v1163
    %1263 = vst.msk [vmem:[#allocation3 + $0x14] sm:$0xf] %vm301, %v1166
    %1264 = vst.msk [vmem:[#allocation3 + $0x1c] sm:$0xf] %vm301, %v1170
    %1265 = vst.msk [vmem:[#allocation3 + $0x24] sm:$0xf] %vm301, %v1173
    %1266 = vst.msk [vmem:[#allocation3 + $0x2c] sm:$0xf] %vm301, %v1176
    %1267 = vst.msk [vmem:[#allocation3 + $0x34] sm:$0xf] %vm301, %v1180
    %1268 = vst.msk [vmem:[#allocation3 + $0x3c] sm:$0xf] %vm301, %v1183
    %1269 = vst.msk [vmem:[#allocation3 + $0x44] sm:$0xf] %vm301, %v1186
    %1270 = vst.msk [vmem:[#allocation3 + $0x4c] sm:$0xf] %vm301, %v1190
    %1271 = vst.msk [vmem:[#allocation3 + $0x54] sm:$0xf] %vm301, %v1193
    %1272 = vst.msk [vmem:[#allocation3 + $0x5c] sm:$0xf] %vm301, %v1196
    %1273 = vst.msk [vmem:[#allocation3 + $0x64] sm:$0xf] %vm301, %v1200
    %1274 = vst.msk [vmem:[#allocation3 + $0x6c] sm:$0xf] %vm301, %v1203
    %1275 = vst.msk [vmem:[#allocation3 + $0x74] sm:$0xf] %vm301, %v1206
    %1276 = vst.msk [vmem:[#allocation3 + $0x7c] sm:$0xf] %vm301, %v1210
    %1277 = vst.msk [vmem:[#allocation3 + $0x84] sm:$0xf] %vm301, %v1213
    %1278 = vst.msk [vmem:[#allocation3 + $0x8c] sm:$0xf] %vm301, %v1216
    %1279 = vst.msk [vmem:[#allocation3 + $0x94] sm:$0xf] %vm301, %v1220
    %1280 = vst.msk [vmem:[#allocation3 + $0x9c] sm:$0xf] %vm301, %v1223
    %1281 = vst.msk [vmem:[#allocation3 + $0xa4] sm:$0xf] %vm301, %v1226
    %1282 = vst.msk [vmem:[#allocation3 + $0xac] sm:$0xf] %vm301, %v1230
    %1283 = vst.msk [vmem:[#allocation3 + $0xb4] sm:$0xf] %vm301, %v1233
    %1284 = vst.msk [vmem:[#allocation3 + $0xbc] sm:$0xf] %vm301, %v1236
    %v1285 = vld [vmem:[#allocation3] sm:$0xff]
    %v1286 = vld [vmem:[#allocation3 + $0x8] sm:$0xff]
    %v1287 = vld [vmem:[#allocation3 + $0x10] sm:$0xff]
    %v1288 = vld [vmem:[#allocation3 + $0x18] sm:$0xff]
    %v1289 = vld [vmem:[#allocation3 + $0x20] sm:$0xff]
    %v1290 = vld [vmem:[#allocation3 + $0x28] sm:$0xff]
    %v1291 = vld [vmem:[#allocation3 + $0x30] sm:$0xff]
    %v1292 = vld [vmem:[#allocation3 + $0x38] sm:$0xff]
    %v1293 = vld [vmem:[#allocation3 + $0x40] sm:$0xff]
    %v1294 = vld [vmem:[#allocation3 + $0x48] sm:$0xff]
    %v1295 = vld [vmem:[#allocation3 + $0x50] sm:$0xff]
    %v1296 = vld [vmem:[#allocation3 + $0x58] sm:$0xff]
    %v1297 = vld [vmem:[#allocation3 + $0x60] sm:$0xff]
    %v1298 = vld [vmem:[#allocation3 + $0x68] sm:$0xff]
    %v1299 = vld [vmem:[#allocation3 + $0x70] sm:$0xff]
    %v1300 = vld [vmem:[#allocation3 + $0x78] sm:$0xff]
    %v1301 = vld [vmem:[#allocation3 + $0x80] sm:$0xff]
    %v1302 = vld [vmem:[#allocation3 + $0x88] sm:$0xff]
    %v1303 = vld [vmem:[#allocation3 + $0x90] sm:$0xff]
    %v1304 = vld [vmem:[#allocation3 + $0x98] sm:$0xff]
    %v1305 = vld [vmem:[#allocation3 + $0xa0] sm:$0xff]
    %v1306 = vld [vmem:[#allocation3 + $0xa8] sm:$0xff]
    %v1307 = vld [vmem:[#allocation3 + $0xb0] sm:$0xff]
    %v1308 = vld [vmem:[#allocation3 + $0xb8] sm:$0xff]
    %v1309 = vld [vmem:[#allocation9] sm:$0xff]
    %v1310 = vld [vmem:[#allocation9 + $0x8] sm:$0xff]
    %v1311 = vld [vmem:[#allocation9 + $0x10] sm:$0xff]
    %v1312 = vld [vmem:[#allocation9 + $0x18] sm:$0xff]
    %v1313 = vld [vmem:[#allocation9 + $0x20] sm:$0xff]
    %v1314 = vld [vmem:[#allocation9 + $0x28] sm:$0xff]
    %v1315 = vld [vmem:[#allocation9 + $0x30] sm:$0xff]
    %v1316 = vld [vmem:[#allocation9 + $0x38] sm:$0xff]
    %v1317 = vld [vmem:[#allocation9 + $0x40] sm:$0xff]
    %v1318 = vld [vmem:[#allocation9 + $0x48] sm:$0xff]
    %v1319 = vld [vmem:[#allocation9 + $0x50] sm:$0xff]
    %v1320 = vld [vmem:[#allocation9 + $0x58] sm:$0xff]
    %v1321 = vld [vmem:[#allocation9 + $0x60] sm:$0xff]
    %v1322 = vld [vmem:[#allocation9 + $0x68] sm:$0xff]
    %v1323 = vld [vmem:[#allocation9 + $0x70] sm:$0xff]
    %v1324 = vld [vmem:[#allocation9 + $0x78] sm:$0xff]
    %v1325 = vld [vmem:[#allocation9 + $0x80] sm:$0xff]
    %v1326 = vld [vmem:[#allocation9 + $0x88] sm:$0xff]
    %v1327 = vld [vmem:[#allocation9 + $0x90] sm:$0xff]
    %v1328 = vld [vmem:[#allocation9 + $0x98] sm:$0xff]
    %v1353 = vunpack.c.l.b16 %v1285
    %v1354 = vunpack.c.h.b16 %v1285
    %v1355 = vunpack.c.l.b16 %v1286
    %v1356 = vunpack.c.h.b16 %v1286
    %v1357 = vunpack.c.l.b16 %v1287
    %v1358 = vunpack.c.h.b16 %v1287
    %v1359 = vunpack.c.l.b16 %v1288
    %v1360 = vunpack.c.h.b16 %v1288
    %v1361 = vunpack.c.l.b16 %v1289
    %v1362 = vunpack.c.h.b16 %v1289
    %v1363 = vunpack.c.l.b16 %v1290
    %v1364 = vunpack.c.h.b16 %v1290
    %v1365 = vunpack.c.l.b16 %v1291
    %v1366 = vunpack.c.h.b16 %v1291
    %v1367 = vunpack.c.l.b16 %v1292
    %v1368 = vunpack.c.h.b16 %v1292
    %v1369 = vunpack.c.l.b16 %v1293
    %v1370 = vunpack.c.h.b16 %v1293
    %v1371 = vunpack.c.l.b16 %v1294
    %v1372 = vunpack.c.h.b16 %v1294
    %v1373 = vunpack.c.l.b16 %v1295
    %v1374 = vunpack.c.h.b16 %v1295
    %v1375 = vunpack.c.l.b16 %v1296
    %v1376 = vunpack.c.h.b16 %v1296
    %v1377 = vunpack.c.l.b16 %v1297
    %v1378 = vunpack.c.h.b16 %v1297
    %v1379 = vunpack.c.l.b16 %v1298
    %v1380 = vunpack.c.h.b16 %v1298
    %v1381 = vunpack.c.l.b16 %v1299
    %v1382 = vunpack.c.h.b16 %v1299
    %v1383 = vunpack.c.l.b16 %v1300
    %v1384 = vunpack.c.h.b16 %v1300
    %v1385 = vunpack.c.l.b16 %v1301
    %v1386 = vunpack.c.h.b16 %v1301
    %v1387 = vunpack.c.l.b16 %v1302
    %v1388 = vunpack.c.h.b16 %v1302
    %v1389 = vunpack.c.l.b16 %v1303
    %v1390 = vunpack.c.h.b16 %v1303
    %v1391 = vunpack.c.l.b16 %v1304
    %v1392 = vunpack.c.h.b16 %v1304
    %v1393 = vunpack.c.l.b16 %v1305
    %v1394 = vunpack.c.h.b16 %v1305
    %v1395 = vunpack.c.l.b16 %v1306
    %v1396 = vunpack.c.h.b16 %v1306
    %v1397 = vunpack.c.l.b16 %v1307
    %v1398 = vunpack.c.h.b16 %v1307
    %v1399 = vunpack.c.l.b16 %v1308
    %v1400 = vunpack.c.h.b16 %v1308
    %v1401 = vpack.c.b16 %v1355, %v1353
    %v1402 = vpack.c.b16 %v1356, %v1354
    %v1403 = vpack.c.b16 %v1359, %v1357
    %v1404 = vpack.c.b16 %v1360, %v1358
    %v1405 = vpack.c.b16 %v1363, %v1361
    %v1406 = vpack.c.b16 %v1364, %v1362
    %v1407 = vpack.c.b16 %v1367, %v1365
    %v1408 = vpack.c.b16 %v1368, %v1366
    %v1409 = vpack.c.b16 %v1371, %v1369
    %v1410 = vpack.c.b16 %v1372, %v1370
    %v1411 = vpack.c.b16 %v1375, %v1373
    %v1412 = vpack.c.b16 %v1376, %v1374
    %v1413 = vpack.c.b16 %v1379, %v1377
    %v1414 = vpack.c.b16 %v1380, %v1378
    %v1415 = vpack.c.b16 %v1383, %v1381
    %v1416 = vpack.c.b16 %v1384, %v1382
    %v1417 = vpack.c.b16 %v1387, %v1385
    %v1418 = vpack.c.b16 %v1388, %v1386
    %v1419 = vpack.c.b16 %v1391, %v1389
    %v1420 = vpack.c.b16 %v1392, %v1390
    %v1421 = vpack.c.b16 %v1395, %v1393
    %v1422 = vpack.c.b16 %v1396, %v1394
    %v1423 = vpack.c.b16 %v1399, %v1397
    %v1424 = vpack.c.b16 %v1400, %v1398
    %v1457 = vunpack.c.l.b16 %v1309
    %v1458 = vunpack.c.h.b16 %v1309
    %v1459 = vunpack.c.l.b16 %v1310
    %v1460 = vunpack.c.h.b16 %v1310
    %v1461 = vunpack.c.l.b16 %v1311
    %v1462 = vunpack.c.h.b16 %v1311
    %v1463 = vunpack.c.l.b16 %v1312
    %v1464 = vunpack.c.h.b16 %v1312
    %v1465 = vunpack.c.l.b16 %v1313
    %v1466 = vunpack.c.h.b16 %v1313
    %v1467 = vunpack.c.l.b16 %v1314
    %v1468 = vunpack.c.h.b16 %v1314
    %v1469 = vunpack.c.l.b16 %v1315
    %v1470 = vunpack.c.h.b16 %v1315
    %v1471 = vunpack.c.l.b16 %v1316
    %v1472 = vunpack.c.h.b16 %v1316
    %v1473 = vunpack.c.l.b16 %v1317
    %v1474 = vunpack.c.h.b16 %v1317
    %v1475 = vunpack.c.l.b16 %v1318
    %v1476 = vunpack.c.h.b16 %v1318
    %v1477 = vunpack.c.l.b16 %v1319
    %v1478 = vunpack.c.h.b16 %v1319
    %v1479 = vunpack.c.l.b16 %v1320
    %v1480 = vunpack.c.h.b16 %v1320
    %v1481 = vunpack.c.l.b16 %v1321
    %v1482 = vunpack.c.h.b16 %v1321
    %v1483 = vunpack.c.l.b16 %v1322
    %v1484 = vunpack.c.h.b16 %v1322
    %v1485 = vunpack.c.l.b16 %v1323
    %v1486 = vunpack.c.h.b16 %v1323
    %v1487 = vunpack.c.l.b16 %v1324
    %v1488 = vunpack.c.h.b16 %v1324
    %v1489 = vunpack.c.l.b16 %v1325
    %v1490 = vunpack.c.h.b16 %v1325
    %v1491 = vunpack.c.l.b16 %v1326
    %v1492 = vunpack.c.h.b16 %v1326
    %v1493 = vunpack.c.l.b16 %v1327
    %v1494 = vunpack.c.h.b16 %v1327
    %v1495 = vunpack.c.l.b16 %v1328
    %v1496 = vunpack.c.h.b16 %v1328
    %v1497 = vpack.c.b16 %v1459, %v1457
    %v1498 = vpack.c.b16 %v1460, %v1458
    %v1499 = vpack.c.b16 %v1463, %v1461
    %v1500 = vpack.c.b16 %v1464, %v1462
    %v1501 = vpack.c.b16 %v1467, %v1465
    %v1502 = vpack.c.b16 %v1468, %v1466
    %v1503 = vpack.c.b16 %v1471, %v1469
    %v1504 = vpack.c.b16 %v1472, %v1470
    %v1505 = vpack.c.b16 %v1475, %v1473
    %v1506 = vpack.c.b16 %v1476, %v1474
    %v1507 = vpack.c.b16 %v1479, %v1477
    %v1508 = vpack.c.b16 %v1480, %v1478
    %v1509 = vpack.c.b16 %v1483, %v1481
    %v1510 = vpack.c.b16 %v1484, %v1482
    %v1511 = vpack.c.b16 %v1487, %v1485
    %v1512 = vpack.c.b16 %v1488, %v1486
    %v1513 = vpack.c.b16 %v1491, %v1489
    %v1514 = vpack.c.b16 %v1492, %v1490
    %v1515 = vpack.c.b16 %v1495, %v1493
    %v1516 = vpack.c.b16 %v1496, %v1494
    %vm1537 = vcmask 261120
    %v1539 = vsel %vm1537, %v1402, 0
    %v1542 = vsel %vm1537, %v1404, 0
    %v1545 = vsel %vm1537, %v1406, 0
    %v1548 = vsel %vm1537, %v1408, 0
    %v1551 = vsel %vm1537, %v1410, 0
    %v1554 = vsel %vm1537, %v1412, 0
    %v1557 = vsel %vm1537, %v1414, 0
    %v1560 = vsel %vm1537, %v1416, 0
    %v1563 = vsel %vm1537, %v1418, 0
    %v1566 = vsel %vm1537, %v1420, 0
    %v1569 = vsel %vm1537, %v1422, 0
    %v1572 = vsel %vm1537, %v1424, 0
    %1574 = vmatprep.subr.bf16.mxu0 %v1512
    %1575 = vmatpush1.bf16.msra.mxu0 %v1511
    %1576 = vmatprep.subr.bf16.mxu0 %v1510
    %1577 = vmatpush1.bf16.msra.mxu0 %v1509
    %1578 = vmatprep.subr.bf16.mxu0 %v1508
    %1579 = vmatpush1.bf16.msra.mxu0 %v1507
    %1580 = vmatprep.subr.bf16.mxu0 %v1506
    %1581 = vmatpush1.bf16.msra.mxu0 %v1505
    %1582 = vmatprep.subr.bf16.mxu0 %v1504
    %1583 = vmatpush1.bf16.msra.mxu0 %v1503
    %1584 = vmatprep.subr.bf16.mxu0 %v1502
    %1585 = vmatpush1.bf16.msra.mxu0 %v1501
    %1586 = vmatprep.subr.bf16.mxu0 %v1500
    %1587 = vmatpush1.bf16.msra.mxu0 %v1499
    %1588 = vmatprep.subr.bf16.mxu0 %v1498
    %1589 = vmatpush1.bf16.msra.mxu0 %v1497
    %1590 = vmatprep.subr.bf16.mxu0 0
    %1591 = vmatpush2.bf16.msra.mxu0 0
    %1592 = vmatprep.subr.bf16.mxu0 0
    %1593 = vmatpush2.bf16.msra.mxu0 0
    %1594 = vmatprep.subr.bf16.mxu0 0
    %1595 = vmatpush2.bf16.msra.mxu0 0
    %1596 = vmatprep.subr.bf16.mxu0 0
    %1597 = vmatpush2.bf16.msra.mxu0 0
    %1598 = vmatprep.subr.bf16.mxu0 0
    %1599 = vmatpush2.bf16.msra.mxu0 0
    %1600 = vmatprep.subr.bf16.mxu0 0
    %1601 = vmatpush2.bf16.msra.mxu0 0
    %1602 = vmatprep.subr.bf16.mxu0 %v1516
    %1603 = vmatpush2.bf16.msra.mxu0 %v1515
    %1604 = vmatprep.subr.bf16.mxu0 %v1514
    %1605 = vmatpush2.bf16.msra.mxu0 %v1513
    %1606 = vmatprep.mubr.bf16.mxu0 %v1539
    %1607 = vmatmul.mubr.bf16.gmra.mxu0 %v1401
    %v1608 = vpop.f32.mrf.mxu0
    %v1609 = vadd.f32 0.0, %v1608
    %v1610 = vpop.f32.mrf.mxu0
    %v1611 = vadd.f32 0.0, %v1610
    %v1612 = vpop.f32.mrf.mxu0
    %v1613 = vadd.f32 0.0, %v1612
    %v1614 = vpop.f32.mrf.mxu0
    %v1615 = vadd.f32 0.0, %v1614
    %1616 = vmatprep.mubr.bf16.mxu0 %v1542
    %1617 = vmatmul.mubr.bf16.gmra.mxu0 %v1403
    %v1618 = vpop.f32.mrf.mxu0
    %v1619 = vadd.f32 0.0, %v1618
    %v1620 = vpop.f32.mrf.mxu0
    %v1621 = vadd.f32 0.0, %v1620
    %v1622 = vpop.f32.mrf.mxu0
    %v1623 = vadd.f32 0.0, %v1622
    %v1624 = vpop.f32.mrf.mxu0
    %v1625 = vadd.f32 0.0, %v1624
    %1626 = vmatprep.mubr.bf16.mxu0 %v1545
    %1627 = vmatmul.mubr.bf16.gmra.mxu0 %v1405
    %v1628 = vpop.f32.mrf.mxu0
    %v1629 = vadd.f32 0.0, %v1628
    %v1630 = vpop.f32.mrf.mxu0
    %v1631 = vadd.f32 0.0, %v1630
    %v1632 = vpop.f32.mrf.mxu0
    %v1633 = vadd.f32 0.0, %v1632
    %v1634 = vpop.f32.mrf.mxu0
    %v1635 = vadd.f32 0.0, %v1634
    %1636 = vmatprep.mubr.bf16.mxu0 %v1548
    %1637 = vmatmul.mubr.bf16.gmra.mxu0 %v1407
    %v1638 = vpop.f32.mrf.mxu0
    %v1639 = vadd.f32 0.0, %v1638
    %v1640 = vpop.f32.mrf.mxu0
    %v1641 = vadd.f32 0.0, %v1640
    %v1642 = vpop.f32.mrf.mxu0
    %v1643 = vadd.f32 0.0, %v1642
    %v1644 = vpop.f32.mrf.mxu0
    %v1645 = vadd.f32 0.0, %v1644
    %1646 = vmatprep.mubr.bf16.mxu0 %v1551
    %1647 = vmatmul.mubr.bf16.gmra.mxu0 %v1409
    %v1648 = vpop.f32.mrf.mxu0
    %v1649 = vadd.f32 0.0, %v1648
    %v1650 = vpop.f32.mrf.mxu0
    %v1651 = vadd.f32 0.0, %v1650
    %v1652 = vpop.f32.mrf.mxu0
    %v1653 = vadd.f32 0.0, %v1652
    %v1654 = vpop.f32.mrf.mxu0
    %v1655 = vadd.f32 0.0, %v1654
    %1656 = vmatprep.mubr.bf16.mxu0 %v1554
    %1657 = vmatmul.mubr.bf16.gmra.mxu0 %v1411
    %v1658 = vpop.f32.mrf.mxu0
    %v1659 = vadd.f32 0.0, %v1658
    %v1660 = vpop.f32.mrf.mxu0
    %v1661 = vadd.f32 0.0, %v1660
    %v1662 = vpop.f32.mrf.mxu0
    %v1663 = vadd.f32 0.0, %v1662
    %v1664 = vpop.f32.mrf.mxu0
    %v1665 = vadd.f32 0.0, %v1664
    %1666 = vmatprep.mubr.bf16.mxu0 %v1557
    %1667 = vmatmul.mubr.bf16.gmra.mxu0 %v1413
    %v1668 = vpop.f32.mrf.mxu0
    %v1669 = vadd.f32 0.0, %v1668
    %v1670 = vpop.f32.mrf.mxu0
    %v1671 = vadd.f32 0.0, %v1670
    %v1672 = vpop.f32.mrf.mxu0
    %v1673 = vadd.f32 0.0, %v1672
    %v1674 = vpop.f32.mrf.mxu0
    %v1675 = vadd.f32 0.0, %v1674
    %1676 = vmatprep.mubr.bf16.mxu0 %v1560
    %1677 = vmatmul.mubr.bf16.gmra.mxu0 %v1415
    %v1678 = vpop.f32.mrf.mxu0
    %v1679 = vadd.f32 0.0, %v1678
    %v1680 = vpop.f32.mrf.mxu0
    %v1681 = vadd.f32 0.0, %v1680
    %v1682 = vpop.f32.mrf.mxu0
    %v1683 = vadd.f32 0.0, %v1682
    %v1684 = vpop.f32.mrf.mxu0
    %v1685 = vadd.f32 0.0, %v1684
    %1686 = vmatprep.mubr.bf16.mxu0 %v1563
    %1687 = vmatmul.mubr.bf16.gmra.mxu0 %v1417
    %v1688 = vpop.f32.mrf.mxu0
    %v1689 = vadd.f32 0.0, %v1688
    %v1690 = vpop.f32.mrf.mxu0
    %v1691 = vadd.f32 0.0, %v1690
    %v1692 = vpop.f32.mrf.mxu0
    %v1693 = vadd.f32 0.0, %v1692
    %v1694 = vpop.f32.mrf.mxu0
    %v1695 = vadd.f32 0.0, %v1694
    %1696 = vmatprep.mubr.bf16.mxu0 %v1566
    %1697 = vmatmul.mubr.bf16.gmra.mxu0 %v1419
    %v1698 = vpop.f32.mrf.mxu0
    %v1699 = vadd.f32 0.0, %v1698
    %v1700 = vpop.f32.mrf.mxu0
    %v1701 = vadd.f32 0.0, %v1700
    %v1702 = vpop.f32.mrf.mxu0
    %v1703 = vadd.f32 0.0, %v1702
    %v1704 = vpop.f32.mrf.mxu0
    %v1705 = vadd.f32 0.0, %v1704
    %1706 = vmatprep.mubr.bf16.mxu0 %v1569
    %1707 = vmatmul.mubr.bf16.gmra.mxu0 %v1421
    %v1708 = vpop.f32.mrf.mxu0
    %v1709 = vadd.f32 0.0, %v1708
    %v1710 = vpop.f32.mrf.mxu0
    %v1711 = vadd.f32 0.0, %v1710
    %v1712 = vpop.f32.mrf.mxu0
    %v1713 = vadd.f32 0.0, %v1712
    %v1714 = vpop.f32.mrf.mxu0
    %v1715 = vadd.f32 0.0, %v1714
    %1716 = vmatprep.mubr.bf16.mxu0 %v1572
    %1717 = vmatmul.mubr.bf16.gmra.mxu0 %v1423
    %v1718 = vpop.f32.mrf.mxu0
    %v1719 = vadd.f32 0.0, %v1718
    %v1720 = vpop.f32.mrf.mxu0
    %v1721 = vadd.f32 0.0, %v1720
    %v1722 = vpop.f32.mrf.mxu0
    %v1723 = vadd.f32 0.0, %v1722
    %v1724 = vpop.f32.mrf.mxu0
    %v1725 = vadd.f32 0.0, %v1724
    %1726 = vdwg.mxu0
    %s1727 = sadd.s32 0, 1
    %s1728 = smul.u32 %s1727, 24
    %p1729 = scmp.gt.s32.totalorder %s1728, 18
    // Predicated region
    $region38: #{tpu_custom_call.1} parent=1 // pred_check
      %p1730 = pneg %p1729
    $region39: #{tpu_custom_call.1} parent=1 // pred_check_branch
      %1732 = sbr.rel (%p1730) target = $region41
    $region40: #{tpu_custom_call.1} parent=1 // pred_region
      %s1733 = smul.u32 0, 24
      %v1734 = vlaneseq
      %v1735 = vshrl.u32 %v1734, 7
      %v1736 = vadd.s32 %v1735, 8
      %v1737 = vadd.s32 %v1735, 16
      %v1738 = vstv %s1733
      %v1739 = vadd.s32 %v1738, %v1735
      %v1740 = vadd.s32 %v1738, %v1736
      %v1741 = vadd.s32 %v1738, %v1737
      %v1742 = vld [vmem:[%s4] sm:$0x3]
      %v1743 = vlaneseq
      %v1744 = vshrl.u32 %v1743, 7
      %v1745 = vsub.s32 0, %v1744
      %v1746 = vrot.slane %v1742, %v1745
      %v1747 = vlaneseq
      %v1748 = vshrl.u32 %v1747, 7
      %v1749 = vsub.s32 1, %v1748
      %v1750 = vrot.slane %v1742, %v1749
      %vm1751 = vcmp.lt.s32.totalorder %v1739, %v1746
      %vm1752 = vcmp.lt.s32.totalorder %v1739, %v1750
      %vm1753 = vcmp.lt.s32.totalorder %v1740, %v1746
      %vm1754 = vcmp.lt.s32.totalorder %v1740, %v1750
      %vm1755 = vcmp.lt.s32.totalorder %v1741, %v1746
      %vm1756 = vcmp.lt.s32.totalorder %v1741, %v1750
      %v1757 = vsel %vm1751, 1, 0
      %v1758 = vsel %vm1752, 1, 0
      %v1759 = vsel %vm1753, 1, 0
      %v1760 = vsel %vm1754, 1, 0
      %v1761 = vsel %vm1755, 1, 0
      %v1762 = vsel %vm1756, 1, 0
      %vm1763 = vcmp.eq.s32.totalorder %v1757, 1
      %vm1764 = vcmp.eq.s32.totalorder %v1758, 1
      %vm1765 = vcmp.eq.s32.totalorder %v1759, 1
      %vm1766 = vcmp.eq.s32.totalorder %v1760, 1
      %vm1767 = vcmp.eq.s32.totalorder %v1761, 1
      %vm1768 = vcmp.eq.s32.totalorder %v1762, 1
      %v1769 = vsel %vm1763, %v1609, -inf
      %v1770 = vsel %vm1764, %v1611, -inf
      %v1771 = vsel %vm1765, %v1613, -inf
      %v1772 = vsel %vm1766, %v1615, -inf
      %v1773 = vsel %vm1767, %v1619, -inf
      %v1774 = vsel %vm1768, %v1621, -inf
      %v1775 = vsel %vm1763, %v1623, -inf
      %v1776 = vsel %vm1764, %v1625, -inf
      %v1777 = vsel %vm1765, %v1629, -inf
      %v1778 = vsel %vm1766, %v1631, -inf
      %v1779 = vsel %vm1767, %v1633, -inf
      %v1780 = vsel %vm1768, %v1635, -inf
      %v1781 = vsel %vm1763, %v1639, -inf
      %v1782 = vsel %vm1764, %v1641, -inf
      %v1783 = vsel %vm1765, %v1643, -inf
      %v1784 = vsel %vm1766, %v1645, -inf
      %v1785 = vsel %vm1767, %v1649, -inf
      %v1786 = vsel %vm1768, %v1651, -inf
      %v1787 = vsel %vm1763, %v1653, -inf
      %v1788 = vsel %vm1764, %v1655, -inf
      %v1789 = vsel %vm1765, %v1659, -inf
      %v1790 = vsel %vm1766, %v1661, -inf
      %v1791 = vsel %vm1767, %v1663, -inf
      %v1792 = vsel %vm1768, %v1665, -inf
      %v1793 = vsel %vm1763, %v1669, -inf
      %v1794 = vsel %vm1764, %v1671, -inf
      %v1795 = vsel %vm1765, %v1673, -inf
      %v1796 = vsel %vm1766, %v1675, -inf
      %v1797 = vsel %vm1767, %v1679, -inf
      %v1798 = vsel %vm1768, %v1681, -inf
      %v1799 = vsel %vm1763, %v1683, -inf
      %v1800 = vsel %vm1764, %v1685, -inf
      %v1801 = vsel %vm1765, %v1689, -inf
      %v1802 = vsel %vm1766, %v1691, -inf
      %v1803 = vsel %vm1767, %v1693, -inf
      %v1804 = vsel %vm1768, %v1695, -inf
      %v1805 = vsel %vm1763, %v1699, -inf
      %v1806 = vsel %vm1764, %v1701, -inf
      %v1807 = vsel %vm1765, %v1703, -inf
      %v1808 = vsel %vm1766, %v1705, -inf
      %v1809 = vsel %vm1767, %v1709, -inf
      %v1810 = vsel %vm1768, %v1711, -inf
      %v1811 = vsel %vm1763, %v1713, -inf
      %v1812 = vsel %vm1764, %v1715, -inf
      %v1813 = vsel %vm1765, %v1719, -inf
      %v1814 = vsel %vm1766, %v1721, -inf
      %v1815 = vsel %vm1767, %v1723, -inf
      %v1816 = vsel %vm1768, %v1725, -inf
      %v1817 = vld [vmem:[#allocation2] sm:$0xff]
      %v1818 = vld [vmem:[#allocation2 + $0x8] sm:$0xff]
      %v1819 = vmax.f32 %v1769, %v1771
      %v1820 = vmax.f32 %v1819, %v1773
      %v1821 = vrot.slane %v1820, 4
      %v1822 = vmax.f32 %v1820, %v1821
      %v1823 = vrot.slane %v1822, 2
      %v1824 = vmax.f32 %v1822, %v1823
      %v1825 = vrot.slane %v1824, 1
      %v1826 = vmax.f32 %v1824, %v1825
      %v1827 = vmax.f32 %v1770, %v1772
      %v1828 = vmax.f32 %v1827, %v1774
      %v1829 = vrot.slane %v1828, 4
      %v1830 = vmax.f32 %v1828, %v1829
      %v1831 = vrot.slane %v1830, 2
      %v1832 = vmax.f32 %v1830, %v1831
      %v1833 = vrot.slane %v1832, 1
      %v1834 = vmax.f32 %v1832, %v1833
      %v1835 = vmax.f32 %v1775, %v1777
      %v1836 = vmax.f32 %v1835, %v1779
      %v1837 = vrot.slane %v1836, 4
      %v1838 = vmax.f32 %v1836, %v1837
      %v1839 = vrot.slane %v1838, 2
      %v1840 = vmax.f32 %v1838, %v1839
      %v1841 = vrot.slane %v1840, 1
      %v1842 = vmax.f32 %v1840, %v1841
      %v1843 = vmax.f32 %v1776, %v1778
      %v1844 = vmax.f32 %v1843, %v1780
      %v1845 = vrot.slane %v1844, 4
      %v1846 = vmax.f32 %v1844, %v1845
      %v1847 = vrot.slane %v1846, 2
      %v1848 = vmax.f32 %v1846, %v1847
      %v1849 = vrot.slane %v1848, 1
      %v1850 = vmax.f32 %v1848, %v1849
      %v1851 = vmax.f32 %v1781, %v1783
      %v1852 = vmax.f32 %v1851, %v1785
      %v1853 = vrot.slane %v1852, 4
      %v1854 = vmax.f32 %v1852, %v1853
      %v1855 = vrot.slane %v1854, 2
      %v1856 = vmax.f32 %v1854, %v1855
      %v1857 = vrot.slane %v1856, 1
      %v1858 = vmax.f32 %v1856, %v1857
      %v1859 = vmax.f32 %v1782, %v1784
      %v1860 = vmax.f32 %v1859, %v1786
      %v1861 = vrot.slane %v1860, 4
      %v1862 = vmax.f32 %v1860, %v1861
      %v1863 = vrot.slane %v1862, 2
      %v1864 = vmax.f32 %v1862, %v1863
      %v1865 = vrot.slane %v1864, 1
      %v1866 = vmax.f32 %v1864, %v1865
      %v1867 = vmax.f32 %v1787, %v1789
      %v1868 = vmax.f32 %v1867, %v1791
      %v1869 = vrot.slane %v1868, 4
      %v1870 = vmax.f32 %v1868, %v1869
      %v1871 = vrot.slane %v1870, 2
      %v1872 = vmax.f32 %v1870, %v1871
      %v1873 = vrot.slane %v1872, 1
      %v1874 = vmax.f32 %v1872, %v1873
      %v1875 = vmax.f32 %v1788, %v1790
      %v1876 = vmax.f32 %v1875, %v1792
      %v1877 = vrot.slane %v1876, 4
      %v1878 = vmax.f32 %v1876, %v1877
      %v1879 = vrot.slane %v1878, 2
      %v1880 = vmax.f32 %v1878, %v1879
      %v1881 = vrot.slane %v1880, 1
      %v1882 = vmax.f32 %v1880, %v1881
      %v1883 = vmax.f32 %v1793, %v1795
      %v1884 = vmax.f32 %v1883, %v1797
      %v1885 = vrot.slane %v1884, 4
      %v1886 = vmax.f32 %v1884, %v1885
      %v1887 = vrot.slane %v1886, 2
      %v1888 = vmax.f32 %v1886, %v1887
      %v1889 = vrot.slane %v1888, 1
      %v1890 = vmax.f32 %v1888, %v1889
      %v1891 = vmax.f32 %v1794, %v1796
      %v1892 = vmax.f32 %v1891, %v1798
      %v1893 = vrot.slane %v1892, 4
      %v1894 = vmax.f32 %v1892, %v1893
      %v1895 = vrot.slane %v1894, 2
      %v1896 = vmax.f32 %v1894, %v1895
      %v1897 = vrot.slane %v1896, 1
      %v1898 = vmax.f32 %v1896, %v1897
      %v1899 = vmax.f32 %v1799, %v1801
      %v1900 = vmax.f32 %v1899, %v1803
      %v1901 = vrot.slane %v1900, 4
      %v1902 = vmax.f32 %v1900, %v1901
      %v1903 = vrot.slane %v1902, 2
      %v1904 = vmax.f32 %v1902, %v1903
      %v1905 = vrot.slane %v1904, 1
      %v1906 = vmax.f32 %v1904, %v1905
      %v1907 = vmax.f32 %v1800, %v1802
      %v1908 = vmax.f32 %v1907, %v1804
      %v1909 = vrot.slane %v1908, 4
      %v1910 = vmax.f32 %v1908, %v1909
      %v1911 = vrot.slane %v1910, 2
      %v1912 = vmax.f32 %v1910, %v1911
      %v1913 = vrot.slane %v1912, 1
      %v1914 = vmax.f32 %v1912, %v1913
      %v1915 = vmax.f32 %v1805, %v1807
      %v1916 = vmax.f32 %v1915, %v1809
      %v1917 = vrot.slane %v1916, 4
      %v1918 = vmax.f32 %v1916, %v1917
      %v1919 = vrot.slane %v1918, 2
      %v1920 = vmax.f32 %v1918, %v1919
      %v1921 = vrot.slane %v1920, 1
      %v1922 = vmax.f32 %v1920, %v1921
      %v1923 = vmax.f32 %v1806, %v1808
      %v1924 = vmax.f32 %v1923, %v1810
      %v1925 = vrot.slane %v1924, 4
      %v1926 = vmax.f32 %v1924, %v1925
      %v1927 = vrot.slane %v1926, 2
      %v1928 = vmax.f32 %v1926, %v1927
      %v1929 = vrot.slane %v1928, 1
      %v1930 = vmax.f32 %v1928, %v1929
      %v1931 = vmax.f32 %v1811, %v1813
      %v1932 = vmax.f32 %v1931, %v1815
      %v1933 = vrot.slane %v1932, 4
      %v1934 = vmax.f32 %v1932, %v1933
      %v1935 = vrot.slane %v1934, 2
      %v1936 = vmax.f32 %v1934, %v1935
      %v1937 = vrot.slane %v1936, 1
      %v1938 = vmax.f32 %v1936, %v1937
      %v1939 = vmax.f32 %v1812, %v1814
      %v1940 = vmax.f32 %v1939, %v1816
      %v1941 = vrot.slane %v1940, 4
      %v1942 = vmax.f32 %v1940, %v1941
      %v1943 = vrot.slane %v1942, 2
      %v1944 = vmax.f32 %v1942, %v1943
      %v1945 = vrot.slane %v1944, 1
      %v1946 = vmax.f32 %v1944, %v1945
      %vm1963 = vcmask 1041409
      %v1964 = vsel %vm1963, %v1842, %v1826
      %vm1965 = vcmask 1042434
      %v1966 = vsel %vm1965, %v1858, %v1964
      %vm1967 = vcmask 1043459
      %v1968 = vsel %vm1967, %v1874, %v1966
      %vm1969 = vcmask 1044484
      %v1970 = vsel %vm1969, %v1890, %v1968
      %vm1971 = vcmask 1045509
      %v1972 = vsel %vm1971, %v1906, %v1970
      %vm1973 = vcmask 1046534
      %v1974 = vsel %vm1973, %v1922, %v1972
      %vm1975 = vcmask 1047559
      %v1976 = vsel %vm1975, %v1938, %v1974
      %v1977 = vsel %vm1963, %v1850, %v1834
      %v1978 = vsel %vm1965, %v1866, %v1977
      %v1979 = vsel %vm1967, %v1882, %v1978
      %v1980 = vsel %vm1969, %v1898, %v1979
      %v1981 = vsel %vm1971, %v1914, %v1980
      %v1982 = vsel %vm1973, %v1930, %v1981
      %v1983 = vsel %vm1975, %v1946, %v1982
      %v1986 = vmax.f32 %v1817, %v1976
      %v1987 = vmax.f32 %v1818, %v1983
      %1988 = vst [vmem:[#allocation2] sm:$0xff] %v1986
      %1989 = vst [vmem:[#allocation2 + $0x8] sm:$0xff] %v1987
    $region41: #{tpu_custom_call.1} parent=1 // pred_fallthru
      _
    %p1990 = scmp.le.s32.totalorder %s1728, 18
    // Predicated region
    $region42: #{tpu_custom_call.1} parent=1 // pred_check
      %p1991 = pneg %p1990
    $region43: #{tpu_custom_call.1} parent=1 // pred_check_branch
      %1993 = sbr.rel (%p1991) target = $region45
    $region44: #{tpu_custom_call.1} parent=1 // pred_region
      %v1994 = vld [vmem:[#allocation2] sm:$0xff]
      %v1995 = vld [vmem:[#allocation2 + $0x8] sm:$0xff]
      %v1996 = vmax.f32 %v1609, %v1613
      %v1997 = vmax.f32 %v1996, %v1619
      %v1998 = vrot.slane %v1997, 4
      %v1999 = vmax.f32 %v1997, %v1998
      %v2000 = vrot.slane %v1999, 2
      %v2001 = vmax.f32 %v1999, %v2000
      %v2002 = vrot.slane %v2001, 1
      %v2003 = vmax.f32 %v2001, %v2002
      %v2004 = vmax.f32 %v1611, %v1615
      %v2005 = vmax.f32 %v2004, %v1621
      %v2006 = vrot.slane %v2005, 4
      %v2007 = vmax.f32 %v2005, %v2006
      %v2008 = vrot.slane %v2007, 2
      %v2009 = vmax.f32 %v2007, %v2008
      %v2010 = vrot.slane %v2009, 1
      %v2011 = vmax.f32 %v2009, %v2010
      %v2012 = vmax.f32 %v1623, %v1629
      %v2013 = vmax.f32 %v2012, %v1633
      %v2014 = vrot.slane %v2013, 4
      %v2015 = vmax.f32 %v2013, %v2014
      %v2016 = vrot.slane %v2015, 2
      %v2017 = vmax.f32 %v2015, %v2016
      %v2018 = vrot.slane %v2017, 1
      %v2019 = vmax.f32 %v2017, %v2018
      %v2020 = vmax.f32 %v1625, %v1631
      %v2021 = vmax.f32 %v2020, %v1635
      %v2022 = vrot.slane %v2021, 4
      %v2023 = vmax.f32 %v2021, %v2022
      %v2024 = vrot.slane %v2023, 2
      %v2025 = vmax.f32 %v2023, %v2024
      %v2026 = vrot.slane %v2025, 1
      %v2027 = vmax.f32 %v2025, %v2026
      %v2028 = vmax.f32 %v1639, %v1643
      %v2029 = vmax.f32 %v2028, %v1649
      %v2030 = vrot.slane %v2029, 4
      %v2031 = vmax.f32 %v2029, %v2030
      %v2032 = vrot.slane %v2031, 2
      %v2033 = vmax.f32 %v2031, %v2032
      %v2034 = vrot.slane %v2033, 1
      %v2035 = vmax.f32 %v2033, %v2034
      %v2036 = vmax.f32 %v1641, %v1645
      %v2037 = vmax.f32 %v2036, %v1651
      %v2038 = vrot.slane %v2037, 4
      %v2039 = vmax.f32 %v2037, %v2038
      %v2040 = vrot.slane %v2039, 2
      %v2041 = vmax.f32 %v2039, %v2040
      %v2042 = vrot.slane %v2041, 1
      %v2043 = vmax.f32 %v2041, %v2042
      %v2044 = vmax.f32 %v1653, %v1659
      %v2045 = vmax.f32 %v2044, %v1663
      %v2046 = vrot.slane %v2045, 4
      %v2047 = vmax.f32 %v2045, %v2046
      %v2048 = vrot.slane %v2047, 2
      %v2049 = vmax.f32 %v2047, %v2048
      %v2050 = vrot.slane %v2049, 1
      %v2051 = vmax.f32 %v2049, %v2050
      %v2052 = vmax.f32 %v1655, %v1661
      %v2053 = vmax.f32 %v2052, %v1665
      %v2054 = vrot.slane %v2053, 4
      %v2055 = vmax.f32 %v2053, %v2054
      %v2056 = vrot.slane %v2055, 2
      %v2057 = vmax.f32 %v2055, %v2056
      %v2058 = vrot.slane %v2057, 1
      %v2059 = vmax.f32 %v2057, %v2058
      %v2060 = vmax.f32 %v1669, %v1673
      %v2061 = vmax.f32 %v2060, %v1679
      %v2062 = vrot.slane %v2061, 4
      %v2063 = vmax.f32 %v2061, %v2062
      %v2064 = vrot.slane %v2063, 2
      %v2065 = vmax.f32 %v2063, %v2064
      %v2066 = vrot.slane %v2065, 1
      %v2067 = vmax.f32 %v2065, %v2066
      %v2068 = vmax.f32 %v1671, %v1675
      %v2069 = vmax.f32 %v2068, %v1681
      %v2070 = vrot.slane %v2069, 4
      %v2071 = vmax.f32 %v2069, %v2070
      %v2072 = vrot.slane %v2071, 2
      %v2073 = vmax.f32 %v2071, %v2072
      %v2074 = vrot.slane %v2073, 1
      %v2075 = vmax.f32 %v2073, %v2074
      %v2076 = vmax.f32 %v1683, %v1689
      %v2077 = vmax.f32 %v2076, %v1693
      %v2078 = vrot.slane %v2077, 4
      %v2079 = vmax.f32 %v2077, %v2078
      %v2080 = vrot.slane %v2079, 2
      %v2081 = vmax.f32 %v2079, %v2080
      %v2082 = vrot.slane %v2081, 1
      %v2083 = vmax.f32 %v2081, %v2082
      %v2084 = vmax.f32 %v1685, %v1691
      %v2085 = vmax.f32 %v2084, %v1695
      %v2086 = vrot.slane %v2085, 4
      %v2087 = vmax.f32 %v2085, %v2086
      %v2088 = vrot.slane %v2087, 2
      %v2089 = vmax.f32 %v2087, %v2088
      %v2090 = vrot.slane %v2089, 1
      %v2091 = vmax.f32 %v2089, %v2090
      %v2092 = vmax.f32 %v1699, %v1703
      %v2093 = vmax.f32 %v2092, %v1709
      %v2094 = vrot.slane %v2093, 4
      %v2095 = vmax.f32 %v2093, %v2094
      %v2096 = vrot.slane %v2095, 2
      %v2097 = vmax.f32 %v2095, %v2096
      %v2098 = vrot.slane %v2097, 1
      %v2099 = vmax.f32 %v2097, %v2098
      %v2100 = vmax.f32 %v1701, %v1705
      %v2101 = vmax.f32 %v2100, %v1711
      %v2102 = vrot.slane %v2101, 4
      %v2103 = vmax.f32 %v2101, %v2102
      %v2104 = vrot.slane %v2103, 2
      %v2105 = vmax.f32 %v2103, %v2104
      %v2106 = vrot.slane %v2105, 1
      %v2107 = vmax.f32 %v2105, %v2106
      %v2108 = vmax.f32 %v1713, %v1719
      %v2109 = vmax.f32 %v2108, %v1723
      %v2110 = vrot.slane %v2109, 4
      %v2111 = vmax.f32 %v2109, %v2110
      %v2112 = vrot.slane %v2111, 2
      %v2113 = vmax.f32 %v2111, %v2112
      %v2114 = vrot.slane %v2113, 1
      %v2115 = vmax.f32 %v2113, %v2114
      %v2116 = vmax.f32 %v1715, %v1721
      %v2117 = vmax.f32 %v2116, %v1725
      %v2118 = vrot.slane %v2117, 4
      %v2119 = vmax.f32 %v2117, %v2118
      %v2120 = vrot.slane %v2119, 2
      %v2121 = vmax.f32 %v2119, %v2120
      %v2122 = vrot.slane %v2121, 1
      %v2123 = vmax.f32 %v2121, %v2122
      %vm2140 = vcmask 1041409
      %v2141 = vsel %vm2140, %v2019, %v2003
      %vm2142 = vcmask 1042434
      %v2143 = vsel %vm2142, %v2035, %v2141
      %vm2144 = vcmask 1043459
      %v2145 = vsel %vm2144, %v2051, %v2143
      %vm2146 = vcmask 1044484
      %v2147 = vsel %vm2146, %v2067, %v2145
      %vm2148 = vcmask 1045509
      %v2149 = vsel %vm2148, %v2083, %v2147
      %vm2150 = vcmask 1046534
      %v2151 = vsel %vm2150, %v2099, %v2149
      %vm2152 = vcmask 1047559
      %v2153 = vsel %vm2152, %v2115, %v2151
      %v2154 = vsel %vm2140, %v2027, %v2011
      %v2155 = vsel %vm2142, %v2043, %v2154
      %v2156 = vsel %vm2144, %v2059, %v2155
      %v2157 = vsel %vm2146, %v2075, %v2156
      %v2158 = vsel %vm2148, %v2091, %v2157
      %v2159 = vsel %vm2150, %v2107, %v2158
      %v2160 = vsel %vm2152, %v2123, %v2159
      %v2163 = vmax.f32 %v1994, %v2153
      %v2164 = vmax.f32 %v1995, %v2160
      %2165 = vst [vmem:[#allocation2] sm:$0xff] %v2163
      %2166 = vst [vmem:[#allocation2 + $0x8] sm:$0xff] %v2164
    $region45: #{tpu_custom_call.1} parent=1 // pred_fallthru
      _
    // Predicated region
    $region46: #{tpu_custom_call.1} parent=1 // pred_check
      %p2167 = pneg %p94
    $region47: #{tpu_custom_call.1} parent=1 // pred_check_branch
      %2169 = sbr.rel (%p2167) target = $region49
    $region48: #{tpu_custom_call.1} parent=1 // pred_region
      %v2170 = vld [vmem:[#allocation2] sm:$0xff]
      %v2171 = vld [vmem:[#allocation2 + $0x8] sm:$0xff]
      %v2172 = vld [vmem:[%s3] sm:$0x3]
      %v2174 = vlaneseq
      %v2175 = vshrl.u32 %v2174, 7
      %v2176 = vsub.s32 0, %v2175
      %v2177 = vrot.slane %v2172, %v2176
      %v2178 = vlaneseq
      %v2179 = vshrl.u32 %v2178, 7
      %v2180 = vsub.s32 1, %v2179
      %v2181 = vrot.slane %v2172, %v2180
      %v2184 = vadd.f32 %v2170, %v2177
      %v2185 = vadd.f32 %v2171, %v2181
      %2186 = vst [vmem:[#allocation10] sm:$0xff] %v2184
      %2187 = vst [vmem:[#allocation10 + $0x8] sm:$0xff] %v2185
    $region49: #{tpu_custom_call.1} parent=1 // pred_fallthru
      _
    // Predicated region
    $region50: #{tpu_custom_call.1} parent=1 // pred_check
      _
    $region51: #{tpu_custom_call.1} parent=1 // pred_check_branch
      %2189 = sbr.rel (0) target = $region53
    $region52: #{tpu_custom_call.1} parent=1 // pred_region
      %s2191 = ssub.s32 256, 256
      %2192 = vsyncadd [#allocation6], %s2191
      %s2194 = sshll.u32 [#allocation10], 4
      %s2195 = int_to_ptr.vmem [resolvable:$true] %s2194
      %2197 = dma.vmem_to_hbm [thread:$0]  %s2195, 256, %s5, [#allocation6]
    $region53: #{tpu_custom_call.1} parent=1 // pred_fallthru
      _
    // Predicated region
    $region54: #{tpu_custom_call.1} parent=1 // pred_check
      _
    $region55: #{tpu_custom_call.1} parent=1 // pred_check_branch
      %2199 = sbr.rel (0) target = $region57
    $region56: #{tpu_custom_call.1} parent=1 // pred_region
      %2200 = dma.done [#allocation6], 256
    $region57: #{tpu_custom_call.1} parent=1 // pred_fallthru
      _
    %2201 = vsyncpa [#allocation5], 1
    %2202 = vsyncpa [#allocation8], 1
    %2203 = vsyncpa [#allocation6], 1

// kernel: tpu_custom_call.1
$region0: #{tpu_custom_call.1}
  #allocation0 [shape = 'u32[]', space=smem, size = 0x4, offset = 0x4, fixed_abs, tag = 'smem constant byte address 0x4 - core index']
  #allocation1 [shape = 'u32[144,128]{1,0:T(1,128)}', space=vmem, size = 0x12000, scoped, tag = 'internal scratch']
  #allocation2 [shape = 'f32[8,256]{1,0:T(8,128)}', space=vmem, size = 0x2000, scoped, tag = 'scratch operand']
  #allocation3 [shape = 'bf16[8,24,160]{2,1,0:T(8,128)(2,1)}', space=vmem, size = 0x18000, scoped, tag = 'scratch operand']
  #allocation11 [shape = 's32[]', space=sflag, size = 0x4, offset = 0, fixed_abs, tag = 'sflag constant byte address 0x0 - dummy sync flag']
  %s0 = inlined_call_operand.hbm [shape: bf16[8,32,32], index: 0, kind: input, shape index: {}]
  %s1 = inlined_call_operand.hbm [shape: bf16[8,32,32], index: 1, kind: input, shape index: {}]
  %s2 = inlined_call_operand.hbm [shape: bf16[160,256], index: 2, kind: input, shape index: {}]
  %s3 = inlined_call_operand.vmem [shape: f32[1,256], index: 3, kind: input, shape index: {}]
  %s4 = inlined_call_operand.vmem [shape: s32[1,256], index: 4, kind: input, shape index: {}]
  %s5 = inlined_call_operand.hbm [shape: f32[8,256], index: 5, kind: output, shape index: {}]
  %s6 = sld [smem:[#allocation0]]
  $region58: #{tpu_custom_call.1} parent=0
    _
  %s8 = ssub.s32 1, %s6
  %s9 = scalar_select 0, %s8, %s6
  $region1: #{tpu_custom_call.1} parent=0
    #allocation4 [shape = 'u8[49152]{0}', space=vmem, size = 0xc000, scoped, tag = 'input window, operand 0, single buffered']
    #allocation5 [shape = 's32[1]{0}', space=sflag, size = 0x4, scoped, tag = 'scoped memory for tpu_custom_call.1']
    #allocation6 [shape = 's32[1]{0}', space=sflag, size = 0x4, scoped, tag = 'scoped memory for tpu_custom_call.1']
    #allocation7 [shape = 'u8[16384]{0}', space=vmem, size = 0x4000, scoped, tag = 'input window, operand 1, single buffered']
    #allocation8 [shape = 's32[1]{0}', space=sflag, size = 0x4, scoped, tag = 'scoped memory for tpu_custom_call.1']
    #allocation9 [shape = 'u8[81920]{0}', space=vmem, size = 0x14000, scoped, tag = 'input window, operand 2, single buffered']
    #allocation10 [shape = 'u8[8192]{0}', space=vmem, size = 0x2000, scoped, tag = 'output window, operand 0, single buffered']
    %10 = vsyncpa [#allocation5], 0
    %11 = vsyncpa [#allocation8], 0
    %12 = vsyncpa [#allocation6], 0
    // Predicated region
    $region2: #{tpu_custom_call.1} parent=1 // pred_check
      _
    $region3: #{tpu_custom_call.1} parent=1 // pred_check_branch
      %14 = sbr.rel (0) target = $region5
    $region4: #{tpu_custom_call.1} parent=1 // pred_region
      #allocation12 [shape = 'u32[6]{0}', space=smem, size = 0x18, scoped, tag = 'DMA stride descriptor']
      %s16 = ssub.s32 1536, 1536
      %17 = vsyncadd [#allocation5], %s16
      %s19 = sshll.u32 1, 14
      %s20 = sxor.u32 4294967295, %s19
      %s22 = sld [smem:[#allocation0]]
      %s23 = sadd.s32 2, %s22
      %s25 = sshll.u32 7, 26
      %s26 = sxor.u32 4294967295, %s25
      %s27 = sand.u32 0, %s26
      %s28 = sshll.u32 %s23, 26
      %s29 = sor.u32 %s27, %s28
      %s30 = sshll.u32 [#allocation4], 4
      %s31 = int_to_ptr.vmem [resolvable:$true] %s30
      %37 = sst [smem:[#allocation12]] 256
      %s38 = scalar_lea.smem [#allocation12], 1
      %39 = sst [smem:[%s38]] 192
      %s40 = scalar_lea.smem [#allocation12], 2
      %41 = sst [smem:[%s40]] 3
      %s42 = scalar_lea.smem [#allocation12], 3
      %43 = sst [smem:[%s42]] 64
      %s44 = scalar_lea.smem [#allocation12], 4
      %45 = sst [smem:[%s44]] 64
      %s46 = scalar_lea.smem [#allocation12], 5
      %47 = sst [smem:[%s46]] 4
      %49 = dma.general %s0, 1536, %s31, [#allocation5], 131072, [#allocation12], %s29, 0
    $region5: #{tpu_custom_call.1} parent=1 // pred_fallthru
      _
    // Predicated region
    $region6: #{tpu_custom_call.1} parent=1 // pred_check
      _
    $region7: #{tpu_custom_call.1} parent=1 // pred_check_branch
      %51 = sbr.rel (0) target = $region9
    $region8: #{tpu_custom_call.1} parent=1 // pred_region
      %s52 = sadd.s32 0, 1
      %s53 = smul.u32 %s52, 3
      %s55 = ssub.s32 512, 512
      %56 = vsyncadd [#allocation8], %s55
      %s57 = smul.addr %s53, 64
      %s58 = scalar_lea.hbm %s1, %s57
      %s59 = sshll.u32 [#allocation7], 4
      %s60 = int_to_ptr.vmem [resolvable:$true] %s59
      %65 = dma.hbm_to_vmem [thread:$0]  %s58, 512, %s60, [#allocation8], 256, 64, 4
    $region9: #{tpu_custom_call.1} parent=1 // pred_fallthru
      _
    // Predicated region
    $region10: #{tpu_custom_call.1} parent=1 // pred_check
      _
    $region11: #{tpu_custom_call.1} parent=1 // pred_check_branch
      %67 = sbr.rel (0) target = $region13
    $region12: #{tpu_custom_call.1} parent=1 // pred_region
      %s69 = ssub.s32 2560, 2560
      %70 = vsyncadd [#allocation8], %s69
      %s71 = sshll.u32 [#allocation9], 4
      %s72 = int_to_ptr.vmem [resolvable:$true] %s71
      %77 = dma.hbm_to_vmem [thread:$0]  %s2, 2560, %s72, [#allocation8], 128, 128, 8
    $region13: #{tpu_custom_call.1} parent=1 // pred_fallthru
      _
    // Predicated region
    $region14: #{tpu_custom_call.1} parent=1 // pred_check
      _
    $region15: #{tpu_custom_call.1} parent=1 // pred_check_branch
      %79 = sbr.rel (0) target = $region17
    $region16: #{tpu_custom_call.1} parent=1 // pred_region
      _
    $region17: #{tpu_custom_call.1} parent=1 // pred_fallthru
      _
    // Predicated region
    $region18: #{tpu_custom_call.1} parent=1 // pred_check
      _
    $region19: #{tpu_custom_call.1} parent=1 // pred_check_branch
      %81 = sbr.rel (0) target = $region21
    $region20: #{tpu_custom_call.1} parent=1 // pred_region
      _
    $region21: #{tpu_custom_call.1} parent=1 // pred_fallthru
      _
    // Predicated region
    $region22: #{tpu_custom_call.1} parent=1 // pred_check
      _
    $region23: #{tpu_custom_call.1} parent=1 // pred_check_branch
      %83 = sbr.rel (0) target = $region25
    $region24: #{tpu_custom_call.1} parent=1 // pred_region
      %84 = dma.done [#allocation5], 1536
    $region25: #{tpu_custom_call.1} parent=1 // pred_fallthru
      _
    // Predicated region
    $region26: #{tpu_custom_call.1} parent=1 // pred_check
      _
    $region27: #{tpu_custom_call.1} parent=1 // pred_check_branch
      %86 = sbr.rel (0) target = $region29
    $region28: #{tpu_custom_call.1} parent=1 // pred_region
      %87 = dma.done [#allocation8], 512
    $region29: #{tpu_custom_call.1} parent=1 // pred_fallthru
      _
    // Predicated region
    $region30: #{tpu_custom_call.1} parent=1 // pred_check
      _
    $region31: #{tpu_custom_call.1} parent=1 // pred_check_branch
      %89 = sbr.rel (0) target = $region33
    $region32: #{tpu_custom_call.1} parent=1 // pred_region
      %90 = dma.done [#allocation8], 2560
    $region33: #{tpu_custom_call.1} parent=1 // pred_fallthru
      _
    %s91 = sadd.s32 0, 1
    %s92 = smul.u32 %s91, 3
    %p94 = scmp.eq.s32.totalorder 0, 0
    // Predicated region
    $region34: #{tpu_custom_call.1} parent=1 // pred_check
      %p95 = pneg %p94
    $region35: #{tpu_custom_call.1} parent=1 // pred_check_branch
      %97 = sbr.rel (%p95) target = $region37
    $region36: #{tpu_custom_call.1} parent=1 // pred_region
      %98 = vst [vmem:[#allocation2] sm:$0xff] -inf
      %99 = vst [vmem:[#allocation2 + $0x8] sm:$0xff] -inf
    $region37: #{tpu_custom_call.1} parent=1 // pred_fallthru
      _
    %v100 = vld [vmem:[#allocation4] sm:$0xf]
    %v101 = vld [vmem:[#allocation4 + $0x4] sm:$0xf]
    %v102 = vld [vmem:[#allocation4 + $0x8] sm:$0xf]
    %v103 = vld [vmem:[#allocation4 + $0xc] sm:$0xf]
    %v104 = vld [vmem:[#allocation4 + $0x10] sm:$0xf]
    %v105 = vld [vmem:[#allocation4 + $0x14] sm:$0xf]
    %v106 = vld [vmem:[#allocation4 + $0x18] sm:$0xf]
    %v107 = vld [vmem:[#allocation4 + $0x1c] sm:$0xf]
    %v108 = vld [vmem:[#allocation4 + $0x20] sm:$0xf]
    %v109 = vld [vmem:[#allocation4 + $0x24] sm:$0xf]
    %v110 = vld [vmem:[#allocation4 + $0x28] sm:$0xf]
    %v111 = vld [vmem:[#allocation4 + $0x2c] sm:$0xf]
    %v112 = vld [vmem:[#allocation4 + $0x30] sm:$0xf]
    %v113 = vld [vmem:[#allocation4 + $0x34] sm:$0xf]
    %v114 = vld [vmem:[#allocation4 + $0x38] sm:$0xf]
    %v115 = vld [vmem:[#allocation4 + $0x3c] sm:$0xf]
    %v116 = vld [vmem:[#allocation4 + $0x40] sm:$0xf]
    %v117 = vld [vmem:[#allocation4 + $0x44] sm:$0xf]
    %v118 = vld [vmem:[#allocation4 + $0x48] sm:$0xf]
    %v119 = vld [vmem:[#allocation4 + $0x4c] sm:$0xf]
    %v120 = vld [vmem:[#allocation4 + $0x50] sm:$0xf]
    %v121 = vld [vmem:[#allocation4 + $0x54] sm:$0xf]
    %v122 = vld [vmem:[#allocation4 + $0x58] sm:$0xf]
    %v123 = vld [vmem:[#allocation4 + $0x5c] sm:$0xf]
    %v124 = vld [vmem:[#allocation7] sm:$0xf]
    %v125 = vld [vmem:[#allocation7 + $0x4] sm:$0xf]
    %v126 = vld [vmem:[#allocation7 + $0x8] sm:$0xf]
    %v127 = vld [vmem:[#allocation7 + $0xc] sm:$0xf]
    %v128 = vld [vmem:[#allocation7 + $0x10] sm:$0xf]
    %v129 = vld [vmem:[#allocation7 + $0x14] sm:$0xf]
    %v130 = vld [vmem:[#allocation7 + $0x18] sm:$0xf]
    %v131 = vld [vmem:[#allocation7 + $0x1c] sm:$0xf]
    %v156 = vunpack.c.l.b16 %v100
    %v157 = vunpack.c.l.b16 %v101
    %v158 = vunpack.c.l.b16 %v102
    %v159 = vunpack.c.l.b16 %v103
    %v160 = vunpack.c.l.b16 %v104
    %v161 = vunpack.c.l.b16 %v105
    %v162 = vunpack.c.l.b16 %v106
    %v163 = vunpack.c.l.b16 %v107
    %v164 = vunpack.c.l.b16 %v108
    %v165 = vunpack.c.l.b16 %v109
    %v166 = vunpack.c.l.b16 %v110
    %v167 = vunpack.c.l.b16 %v111
    %v168 = vunpack.c.l.b16 %v112
    %v169 = vunpack.c.l.b16 %v113
    %v170 = vunpack.c.l.b16 %v114
    %v171 = vunpack.c.l.b16 %v115
    %v172 = vunpack.c.l.b16 %v116
    %v173 = vunpack.c.l.b16 %v117
    %v174 = vunpack.c.l.b16 %v118
    %v175 = vunpack.c.l.b16 %v119
    %v176 = vunpack.c.l.b16 %v120
    %v177 = vunpack.c.l.b16 %v121
    %v178 = vunpack.c.l.b16 %v122
    %v179 = vunpack.c.l.b16 %v123
    %v180 = vpack.c.b16 %v158, %v158
    %v181 = vpack.c.b16 %v161, %v161
    %v182 = vpack.c.b16 %v164, %v164
    %v183 = vpack.c.b16 %v167, %v167
    %v184 = vpack.c.b16 %v170, %v170
    %v185 = vpack.c.b16 %v173, %v173
    %v186 = vpack.c.b16 %v176, %v176
    %v187 = vpack.c.b16 %v179, %v179
    %v196 = vunpack.c.l.b16 %v124
    %v197 = vunpack.c.l.b16 %v125
    %v198 = vunpack.c.l.b16 %v126
    %v199 = vunpack.c.l.b16 %v127
    %v200 = vunpack.c.l.b16 %v128
    %v201 = vunpack.c.l.b16 %v129
    %v202 = vunpack.c.l.b16 %v130
    %v203 = vunpack.c.l.b16 %v131
    %v204 = vpack.c.b16 %v196, %v196
    %v205 = vpack.c.b16 %v197, %v197
    %v206 = vpack.c.b16 %v198, %v198
    %v207 = vpack.c.b16 %v199, %v199
    %v208 = vpack.c.b16 %v200, %v200
    %v209 = vpack.c.b16 %v201, %v201
    %v210 = vpack.c.b16 %v202, %v202
    %v211 = vpack.c.b16 %v203, %v203
    %vm212 = vcmask 1043456
    %v215 = vsel %vm212, %v180, %v204
    %v218 = vsel %vm212, %v181, %v205
    %v221 = vsel %vm212, %v182, %v206
    %v224 = vsel %vm212, %v183, %v207
    %v227 = vsel %vm212, %v184, %v208
    %v230 = vsel %vm212, %v185, %v209
    %v233 = vsel %vm212, %v186, %v210
    %v236 = vsel %vm212, %v187, %v211
    %v245 = vunpack.c.l.b16 %v215
    %v246 = vunpack.c.l.b16 %v218
    %v247 = vunpack.c.l.b16 %v221
    %v248 = vunpack.c.l.b16 %v224
    %v249 = vunpack.c.l.b16 %v227
    %v250 = vunpack.c.l.b16 %v230
    %v251 = vunpack.c.l.b16 %v233
    %v252 = vunpack.c.l.b16 %v236
    %v253 = vpack.c.b16 %v156, %v156
    %v254 = vpack.c.b16 %v157, %v157
    %v255 = vpack.c.b16 %v245, %v245
    %v256 = vpack.c.b16 %v159, %v159
    %v257 = vpack.c.b16 %v160, %v160
    %v258 = vpack.c.b16 %v246, %v246
    %v259 = vpack.c.b16 %v162, %v162
    %v260 = vpack.c.b16 %v163, %v163
    %v261 = vpack.c.b16 %v247, %v247
    %v262 = vpack.c.b16 %v165, %v165
    %v263 = vpack.c.b16 %v166, %v166
    %v264 = vpack.c.b16 %v248, %v248
    %v265 = vpack.c.b16 %v168, %v168
    %v266 = vpack.c.b16 %v169, %v169
    %v267 = vpack.c.b16 %v249, %v249
    %v268 = vpack.c.b16 %v171, %v171
    %v269 = vpack.c.b16 %v172, %v172
    %v270 = vpack.c.b16 %v250, %v250
    %v271 = vpack.c.b16 %v174, %v174
    %v272 = vpack.c.b16 %v175, %v175
    %v273 = vpack.c.b16 %v251, %v251
    %v274 = vpack.c.b16 %v177, %v177
    %v275 = vpack.c.b16 %v178, %v178
    %v276 = vpack.c.b16 %v252, %v252
    %vm301 = vcmask 257024
    %302 = vst.msk [vmem:[#allocation3] sm:$0xf] %vm301, %v253
    %303 = vst.msk [vmem:[#allocation3 + $0x8] sm:$0xf] %vm301, %v254
    %304 = vst.msk [vmem:[#allocation3 + $0x10] sm:$0xf] %vm301, %v255
    %305 = vst.msk [vmem:[#allocation3 + $0x18] sm:$0xf] %vm301, %v256
    %306 = vst.msk [vmem:[#allocation3 + $0x20] sm:$0xf] %vm301, %v257
    %307 = vst.msk [vmem:[#allocation3 + $0x28] sm:$0xf] %vm301, %v258
    %308 = vst.msk [vmem:[#allocation3 + $0x30] sm:$0xf] %vm301, %v259
    %309 = vst.msk [vmem:[#allocation3 + $0x38] sm:$0xf] %vm301, %v260
    %310 = vst.msk [vmem:[#allocation3 + $0x40] sm:$0xf] %vm301, %v261
    %311 = vst.msk [vmem:[#allocation3 + $0x48] sm:$0xf] %vm301, %v262
    %312 = vst.msk [vmem:[#allocation3 + $0x50] sm:$0xf] %vm301, %v263
    %313 = vst.msk [vmem:[#allocation3 + $0x58] sm:$0xf] %vm301, %v264
    %314 = vst.msk [vmem:[#allocation3 + $0x60] sm:$0xf] %vm301, %v265
    %315 = vst.msk [vmem:[#allocation3 + $0x68] sm:$0xf] %vm301, %v266
    %316 = vst.msk [vmem:[#allocation3 + $0x70] sm:$0xf] %vm301, %v267
    %317 = vst.msk [vmem:[#allocation3 + $0x78] sm:$0xf] %vm301, %v268
    %318 = vst.msk [vmem:[#allocation3 + $0x80] sm:$0xf] %vm301, %v269
    %319 = vst.msk [vmem:[#allocation3 + $0x88] sm:$0xf] %vm301, %v270
    %320 = vst.msk [vmem:[#allocation3 + $0x90] sm:$0xf] %vm301, %v271
    %321 = vst.msk [vmem:[#allocation3 + $0x98] sm:$0xf] %vm301, %v272
    %322 = vst.msk [vmem:[#allocation3 + $0xa0] sm:$0xf] %vm301, %v273
    %323 = vst.msk [vmem:[#allocation3 + $0xa8] sm:$0xf] %vm301, %v274
    %324 = vst.msk [vmem:[#allocation3 + $0xb0] sm:$0xf] %vm301, %v275
    %325 = vst.msk [vmem:[#allocation3 + $0xb8] sm:$0xf] %vm301, %v276
    %v326 = vunpack.c.h.b16 %v215
    %v327 = vunpack.c.h.b16 %v218
    %v328 = vunpack.c.h.b16 %v221
    %v329 = vunpack.c.h.b16 %v224
    %v330 = vunpack.c.h.b16 %v227
    %v331 = vunpack.c.h.b16 %v230
    %v332 = vunpack.c.h.b16 %v233
    %v333 = vunpack.c.h.b16 %v236
    %v334 = vpack.c.b16 %v326, %v326
    %v335 = vpack.c.b16 %v327, %v327
    %v336 = vpack.c.b16 %v328, %v328
    %v337 = vpack.c.b16 %v329, %v329
    %v338 = vpack.c.b16 %v330, %v330
    %v339 = vpack.c.b16 %v331, %v331
    %v340 = vpack.c.b16 %v332, %v332
    %v341 = vpack.c.b16 %v333, %v333
    %vm342 = vsmask.f32 3328
    %vm343 = vsmask.f32 7440
    %vm344 = vmor %vm342, %vm343
    %v346 = vshrl.u32 %v253, 16
    %v348 = vrot.slane %v346, 4
    %v349 = vshll.u32 %v253, 16
    %v351 = vrot.slane %v349, 5
    %v352 = vor.u32 %v348, %v351
    %v353 = vrot.slane %v352, 4
    %v355 = vshll.u32 %v254, 16
    %v357 = vrot.slane %v355, 5
    %v358 = vsel %vm344, %v353, %v357
    %v359 = vshrl.u32 %v254, 16
    %v361 = vrot.slane %v359, 4
    %v362 = vor.u32 %v361, %v357
    %v363 = vrot.slane %v362, 4
    %v365 = vshll.u32 %v255, 16
    %v367 = vrot.slane %v365, 5
    %v368 = vsel %vm344, %v363, %v367
    %v369 = vshrl.u32 %v255, 16
    %v371 = vrot.slane %v369, 4
    %v372 = vor.u32 %v371, %v367
    %v373 = vrot.slane %v372, 4
    %v375 = vshll.u32 %v334, 16
    %v377 = vrot.slane %v375, 5
    %v378 = vsel %vm344, %v373, %v377
    %v380 = vshrl.u32 %v256, 16
    %v382 = vrot.slane %v380, 4
    %v383 = vshll.u32 %v256, 16
    %v385 = vrot.slane %v383, 5
    %v386 = vor.u32 %v382, %v385
    %v387 = vrot.slane %v386, 4
    %v389 = vshll.u32 %v257, 16
    %v391 = vrot.slane %v389, 5
    %v392 = vsel %vm344, %v387, %v391
    %v393 = vshrl.u32 %v257, 16
    %v395 = vrot.slane %v393, 4
    %v396 = vor.u32 %v395, %v391
    %v397 = vrot.slane %v396, 4
    %v399 = vshll.u32 %v258, 16
    %v401 = vrot.slane %v399, 5
    %v402 = vsel %vm344, %v397, %v401
    %v403 = vshrl.u32 %v258, 16
    %v405 = vrot.slane %v403, 4
    %v406 = vor.u32 %v405, %v401
    %v407 = vrot.slane %v406, 4
    %v409 = vshll.u32 %v335, 16
    %v411 = vrot.slane %v409, 5
    %v412 = vsel %vm344, %v407, %v411
    %v414 = vshrl.u32 %v259, 16
    %v416 = vrot.slane %v414, 4
    %v417 = vshll.u32 %v259, 16
    %v419 = vrot.slane %v417, 5
    %v420 = vor.u32 %v416, %v419
    %v421 = vrot.slane %v420, 4
    %v423 = vshll.u32 %v260, 16
    %v425 = vrot.slane %v423, 5
    %v426 = vsel %vm344, %v421, %v425
    %v427 = vshrl.u32 %v260, 16
    %v429 = vrot.slane %v427, 4
    %v430 = vor.u32 %v429, %v425
    %v431 = vrot.slane %v430, 4
    %v433 = vshll.u32 %v261, 16
    %v435 = vrot.slane %v433, 5
    %v436 = vsel %vm344, %v431, %v435
    %v437 = vshrl.u32 %v261, 16
    %v439 = vrot.slane %v437, 4
    %v440 = vor.u32 %v439, %v435
    %v441 = vrot.slane %v440, 4
    %v443 = vshll.u32 %v336, 16
    %v445 = vrot.slane %v443, 5
    %v446 = vsel %vm344, %v441, %v445
    %v448 = vshrl.u32 %v262, 16
    %v450 = vrot.slane %v448, 4
    %v451 = vshll.u32 %v262, 16
    %v453 = vrot.slane %v451, 5
    %v454 = vor.u32 %v450, %v453
    %v455 = vrot.slane %v454, 4
    %v457 = vshll.u32 %v263, 16
    %v459 = vrot.slane %v457, 5
    %v460 = vsel %vm344, %v455, %v459
    %v461 = vshrl.u32 %v263, 16
    %v463 = vrot.slane %v461, 4
    %v464 = vor.u32 %v463, %v459
    %v465 = vrot.slane %v464, 4
    %v467 = vshll.u32 %v264, 16
    %v469 = vrot.slane %v467, 5
    %v470 = vsel %vm344, %v465, %v469
    %v471 = vshrl.u32 %v264, 16
    %v473 = vrot.slane %v471, 4
    %v474 = vor.u32 %v473, %v469
    %v475 = vrot.slane %v474, 4
    %v477 = vshll.u32 %v337, 16
    %v479 = vrot.slane %v477, 5
    %v480 = vsel %vm344, %v475, %v479
    %v482 = vshrl.u32 %v265, 16
    %v484 = vrot.slane %v482, 4
    %v485 = vshll.u32 %v265, 16
    %v487 = vrot.slane %v485, 5
    %v488 = vor.u32 %v484, %v487
    %v489 = vrot.slane %v488, 4
    %v491 = vshll.u32 %v266, 16
    %v493 = vrot.slane %v491, 5
    %v494 = vsel %vm344, %v489, %v493
    %v495 = vshrl.u32 %v266, 16
    %v497 = vrot.slane %v495, 4
    %v498 = vor.u32 %v497, %v493
    %v499 = vrot.slane %v498, 4
    %v501 = vshll.u32 %v267, 16
    %v503 = vrot.slane %v501, 5
    %v504 = vsel %vm344, %v499, %v503
    %v505 = vshrl.u32 %v267, 16
    %v507 = vrot.slane %v505, 4
    %v508 = vor.u32 %v507, %v503
    %v509 = vrot.slane %v508, 4
    %v511 = vshll.u32 %v338, 16
    %v513 = vrot.slane %v511, 5
    %v514 = vsel %vm344, %v509, %v513
    %v516 = vshrl.u32 %v268, 16
    %v518 = vrot.slane %v516, 4
    %v519 = vshll.u32 %v268, 16
    %v521 = vrot.slane %v519, 5
    %v522 = vor.u32 %v518, %v521
    %v523 = vrot.slane %v522, 4
    %v525 = vshll.u32 %v269, 16
    %v527 = vrot.slane %v525, 5
    %v528 = vsel %vm344, %v523, %v527
    %v529 = vshrl.u32 %v269, 16
    %v531 = vrot.slane %v529, 4
    %v532 = vor.u32 %v531, %v527
    %v533 = vrot.slane %v532, 4
    %v535 = vshll.u32 %v270, 16
    %v537 = vrot.slane %v535, 5
    %v538 = vsel %vm344, %v533, %v537
    %v539 = vshrl.u32 %v270, 16
    %v541 = vrot.slane %v539, 4
    %v542 = vor.u32 %v541, %v537
    %v543 = vrot.slane %v542, 4
    %v545 = vshll.u32 %v339, 16
    %v547 = vrot.slane %v545, 5
    %v548 = vsel %vm344, %v543, %v547
    %v550 = vshrl.u32 %v271, 16
    %v552 = vrot.slane %v550, 4
    %v553 = vshll.u32 %v271, 16
    %v555 = vrot.slane %v553, 5
    %v556 = vor.u32 %v552, %v555
    %v557 = vrot.slane %v556, 4
    %v559 = vshll.u32 %v272, 16
    %v561 = vrot.slane %v559, 5
    %v562 = vsel %vm344, %v557, %v561
    %v563 = vshrl.u32 %v272, 16
    %v565 = vrot.slane %v563, 4
    %v566 = vor.u32 %v565, %v561
    %v567 = vrot.slane %v566, 4
    %v569 = vshll.u32 %v273, 16
    %v571 = vrot.slane %v569, 5
    %v572 = vsel %vm344, %v567, %v571
    %v573 = vshrl.u32 %v273, 16
    %v575 = vrot.slane %v573, 4
    %v576 = vor.u32 %v575, %v571
    %v577 = vrot.slane %v576, 4
    %v579 = vshll.u32 %v340, 16
    %v581 = vrot.slane %v579, 5
    %v582 = vsel %vm344, %v577, %v581
    %v584 = vshrl.u32 %v274, 16
    %v586 = vrot.slane %v584, 4
    %v587 = vshll.u32 %v274, 16
    %v589 = vrot.slane %v587, 5
    %v590 = vor.u32 %v586, %v589
    %v591 = vrot.slane %v590, 4
    %v593 = vshll.u32 %v275, 16
    %v595 = vrot.slane %v593, 5
    %v596 = vsel %vm344, %v591, %v595
    %v597 = vshrl.u32 %v275, 16
    %v599 = vrot.slane %v597, 4
    %v600 = vor.u32 %v599, %v595
    %v601 = vrot.slane %v600, 4
    %v603 = vshll.u32 %v276, 16
    %v605 = vrot.slane %v603, 5
    %v606 = vsel %vm344, %v601, %v605
    %v607 = vshrl.u32 %v276, 16
    %v609 = vrot.slane %v607, 4
    %v610 = vor.u32 %v609, %v605
    %v611 = vrot.slane %v610, 4
    %v613 = vshll.u32 %v341, 16
    %v615 = vrot.slane %v613, 5
    %v616 = vsel %vm344, %v611, %v615
    %617 = vrot.lane.b32.xlu0 %v358, 32
    %v618 = vpop.permute.xlu0 %617
    %619 = vrot.lane.b32.xlu0 %v368, 32
    %v620 = vpop.permute.xlu0 %619
    %621 = vrot.lane.b32.xlu0 %v378, 32
    %v622 = vpop.permute.xlu0 %621
    %623 = vrot.lane.b32.xlu0 %v392, 32
    %v624 = vpop.permute.xlu0 %623
    %625 = vrot.lane.b32.xlu0 %v402, 32
    %v626 = vpop.permute.xlu0 %625
    %627 = vrot.lane.b32.xlu0 %v412, 32
    %v628 = vpop.permute.xlu0 %627
    %629 = vrot.lane.b32.xlu0 %v426, 32
    %v630 = vpop.permute.xlu0 %629
    %631 = vrot.lane.b32.xlu0 %v436, 32
    %v632 = vpop.permute.xlu0 %631
    %633 = vrot.lane.b32.xlu0 %v446, 32
    %v634 = vpop.permute.xlu0 %633
    %635 = vrot.lane.b32.xlu0 %v460, 32
    %v636 = vpop.permute.xlu0 %635
    %637 = vrot.lane.b32.xlu0 %v470, 32
    %v638 = vpop.permute.xlu0 %637
    %639 = vrot.lane.b32.xlu0 %v480, 32
    %v640 = vpop.permute.xlu0 %639
    %641 = vrot.lane.b32.xlu0 %v494, 32
    %v642 = vpop.permute.xlu0 %641
    %643 = vrot.lane.b32.xlu0 %v504, 32
    %v644 = vpop.permute.xlu0 %643
    %645 = vrot.lane.b32.xlu0 %v514, 32
    %v646 = vpop.permute.xlu0 %645
    %647 = vrot.lane.b32.xlu0 %v528, 32
    %v648 = vpop.permute.xlu0 %647
    %649 = vrot.lane.b32.xlu0 %v538, 32
    %v650 = vpop.permute.xlu0 %649
    %651 = vrot.lane.b32.xlu0 %v548, 32
    %v652 = vpop.permute.xlu0 %651
    %653 = vrot.lane.b32.xlu0 %v562, 32
    %v654 = vpop.permute.xlu0 %653
    %655 = vrot.lane.b32.xlu0 %v572, 32
    %v656 = vpop.permute.xlu0 %655
    %657 = vrot.lane.b32.xlu0 %v582, 32
    %v658 = vpop.permute.xlu0 %657
    %659 = vrot.lane.b32.xlu0 %v596, 32
    %v660 = vpop.permute.xlu0 %659
    %661 = vrot.lane.b32.xlu0 %v606, 32
    %v662 = vpop.permute.xlu0 %661
    %663 = vrot.lane.b32.xlu0 %v616, 32
    %v664 = vpop.permute.xlu0 %663
    %vm689 = vcmask 519424
    %690 = vst.msk [vmem:[#allocation3] sm:$0xf] %vm689, %v618
    %691 = vst.msk [vmem:[#allocation3 + $0x8] sm:$0xf] %vm689, %v620
    %692 = vst.msk [vmem:[#allocation3 + $0x10] sm:$0xf] %vm689, %v622
    %693 = vst.msk [vmem:[#allocation3 + $0x18] sm:$0xf] %vm689, %v624
    %694 = vst.msk [vmem:[#allocation3 + $0x20] sm:$0xf] %vm689, %v626
    %695 = vst.msk [vmem:[#allocation3 + $0x28] sm:$0xf] %vm689, %v628
    %696 = vst.msk [vmem:[#allocation3 + $0x30] sm:$0xf] %vm689, %v630
    %697 = vst.msk [vmem:[#allocation3 + $0x38] sm:$0xf] %vm689, %v632
    %698 = vst.msk [vmem:[#allocation3 + $0x40] sm:$0xf] %vm689, %v634
    %699 = vst.msk [vmem:[#allocation3 + $0x48] sm:$0xf] %vm689, %v636
    %700 = vst.msk [vmem:[#allocation3 + $0x50] sm:$0xf] %vm689, %v638
    %701 = vst.msk [vmem:[#allocation3 + $0x58] sm:$0xf] %vm689, %v640
    %702 = vst.msk [vmem:[#allocation3 + $0x60] sm:$0xf] %vm689, %v642
    %703 = vst.msk [vmem:[#allocation3 + $0x68] sm:$0xf] %vm689, %v644
    %704 = vst.msk [vmem:[#allocation3 + $0x70] sm:$0xf] %vm689, %v646
    %705 = vst.msk [vmem:[#allocation3 + $0x78] sm:$0xf] %vm689, %v648
    %706 = vst.msk [vmem:[#allocation3 + $0x80] sm:$0xf] %vm689, %v650
    %707 = vst.msk [vmem:[#allocation3 + $0x88] sm:$0xf] %vm689, %v652
    %708 = vst.msk [vmem:[#allocation3 + $0x90] sm:$0xf] %vm689, %v654
    %709 = vst.msk [vmem:[#allocation3 + $0x98] sm:$0xf] %vm689, %v656
    %710 = vst.msk [vmem:[#allocation3 + $0xa0] sm:$0xf] %vm689, %v658
    %711 = vst.msk [vmem:[#allocation3 + $0xa8] sm:$0xf] %vm689, %v660
    %712 = vst.msk [vmem:[#allocation3 + $0xb0] sm:$0xf] %vm689, %v662
    %713 = vst.msk [vmem:[#allocation3 + $0xb8] sm:$0xf] %vm689, %v664
    %vm714 = vcmask 1042432
    %vm715 = vcmask 1046532
    %vm716 = vmor %vm714, %vm715
    %v717 = vrot.slane %v253, 5
    %v718 = vrot.slane %v717, 4
    %v719 = vrot.slane %v254, 5
    %v720 = vsel %vm716, %v718, %v719
    %v721 = vrot.slane %v719, 4
    %v722 = vrot.slane %v255, 5
    %v723 = vsel %vm716, %v721, %v722
    %v724 = vrot.slane %v722, 4
    %v725 = vrot.slane %v334, 5
    %v726 = vsel %vm716, %v724, %v725
    %v727 = vrot.slane %v256, 5
    %v728 = vrot.slane %v727, 4
    %v729 = vrot.slane %v257, 5
    %v730 = vsel %vm716, %v728, %v729
    %v731 = vrot.slane %v729, 4
    %v732 = vrot.slane %v258, 5
    %v733 = vsel %vm716, %v731, %v732
    %v734 = vrot.slane %v732, 4
    %v735 = vrot.slane %v335, 5
    %v736 = vsel %vm716, %v734, %v735
    %v737 = vrot.slane %v259, 5
    %v738 = vrot.slane %v737, 4
    %v739 = vrot.slane %v260, 5
    %v740 = vsel %vm716, %v738, %v739
    %v741 = vrot.slane %v739, 4
    %v742 = vrot.slane %v261, 5
    %v743 = vsel %vm716, %v741, %v742
    %v744 = vrot.slane %v742, 4
    %v745 = vrot.slane %v336, 5
    %v746 = vsel %vm716, %v744, %v745
    %v747 = vrot.slane %v262, 5
    %v748 = vrot.slane %v747, 4
    %v749 = vrot.slane %v263, 5
    %v750 = vsel %vm716, %v748, %v749
    %v751 = vrot.slane %v749, 4
    %v752 = vrot.slane %v264, 5
    %v753 = vsel %vm716, %v751, %v752
    %v754 = vrot.slane %v752, 4
    %v755 = vrot.slane %v337, 5
    %v756 = vsel %vm716, %v754, %v755
    %v757 = vrot.slane %v265, 5
    %v758 = vrot.slane %v757, 4
    %v759 = vrot.slane %v266, 5
    %v760 = vsel %vm716, %v758, %v759
    %v761 = vrot.slane %v759, 4
    %v762 = vrot.slane %v267, 5
    %v763 = vsel %vm716, %v761, %v762
    %v764 = vrot.slane %v762, 4
    %v765 = vrot.slane %v338, 5
    %v766 = vsel %vm716, %v764, %v765
    %v767 = vrot.slane %v268, 5
    %v768 = vrot.slane %v767, 4
    %v769 = vrot.slane %v269, 5
    %v770 = vsel %vm716, %v768, %v769
    %v771 = vrot.slane %v769, 4
    %v772 = vrot.slane %v270, 5
    %v773 = vsel %vm716, %v771, %v772
    %v774 = vrot.slane %v772, 4
    %v775 = vrot.slane %v339, 5
    %v776 = vsel %vm716, %v774, %v775
    %v777 = vrot.slane %v271, 5
    %v778 = vrot.slane %v777, 4
    %v779 = vrot.slane %v272, 5
    %v780 = vsel %vm716, %v778, %v779
    %v781 = vrot.slane %v779, 4
    %v782 = vrot.slane %v273, 5
    %v783 = vsel %vm716, %v781, %v782
    %v784 = vrot.slane %v782, 4
    %v785 = vrot.slane %v340, 5
    %v786 = vsel %vm716, %v784, %v785
    %v787 = vrot.slane %v274, 5
    %v788 = vrot.slane %v787, 4
    %v789 = vrot.slane %v275, 5
    %v790 = vsel %vm716, %v788, %v789
    %v791 = vrot.slane %v789, 4
    %v792 = vrot.slane %v276, 5
    %v793 = vsel %vm716, %v791, %v792
    %v794 = vrot.slane %v792, 4
    %v795 = vrot.slane %v341, 5
    %v796 = vsel %vm716, %v794, %v795
    %797 = vrot.lane.b32.xlu0 %v720, 64
    %v798 = vpop.permute.xlu0 %797
    %799 = vrot.lane.b32.xlu0 %v723, 64
    %v800 = vpop.permute.xlu0 %799
    %801 = vrot.lane.b32.xlu0 %v726, 64
    %v802 = vpop.permute.xlu0 %801
    %803 = vrot.lane.b32.xlu0 %v730, 64
    %v804 = vpop.permute.xlu0 %803
    %805 = vrot.lane.b32.xlu0 %v733, 64
    %v806 = vpop.permute.xlu0 %805
    %807 = vrot.lane.b32.xlu0 %v736, 64
    %v808 = vpop.permute.xlu0 %807
    %809 = vrot.lane.b32.xlu0 %v740, 64
    %v810 = vpop.permute.xlu0 %809
    %811 = vrot.lane.b32.xlu0 %v743, 64
    %v812 = vpop.permute.xlu0 %811
    %813 = vrot.lane.b32.xlu0 %v746, 64
    %v814 = vpop.permute.xlu0 %813
    %815 = vrot.lane.b32.xlu0 %v750, 64
    %v816 = vpop.permute.xlu0 %815
    %817 = vrot.lane.b32.xlu0 %v753, 64
    %v818 = vpop.permute.xlu0 %817
    %819 = vrot.lane.b32.xlu0 %v756, 64
    %v820 = vpop.permute.xlu0 %819
    %821 = vrot.lane.b32.xlu0 %v760, 64
    %v822 = vpop.permute.xlu0 %821
    %823 = vrot.lane.b32.xlu0 %v763, 64
    %v824 = vpop.permute.xlu0 %823
    %825 = vrot.lane.b32.xlu0 %v766, 64
    %v826 = vpop.permute.xlu0 %825
    %827 = vrot.lane.b32.xlu0 %v770, 64
    %v828 = vpop.permute.xlu0 %827
    %829 = vrot.lane.b32.xlu0 %v773, 64
    %v830 = vpop.permute.xlu0 %829
    %831 = vrot.lane.b32.xlu0 %v776, 64
    %v832 = vpop.permute.xlu0 %831
    %833 = vrot.lane.b32.xlu0 %v780, 64
    %v834 = vpop.permute.xlu0 %833
    %835 = vrot.lane.b32.xlu0 %v783, 64
    %v836 = vpop.permute.xlu0 %835
    %837 = vrot.lane.b32.xlu0 %v786, 64
    %v838 = vpop.permute.xlu0 %837
    %839 = vrot.lane.b32.xlu0 %v790, 64
    %v840 = vpop.permute.xlu0 %839
    %841 = vrot.lane.b32.xlu0 %v793, 64
    %v842 = vpop.permute.xlu0 %841
    %843 = vrot.lane.b32.xlu0 %v796, 64
    %v844 = vpop.permute.xlu0 %843
    %vm869 = vcmask 781824
    %870 = vst.msk [vmem:[#allocation3] sm:$0xf] %vm869, %v798
    %871 = vst.msk [vmem:[#allocation3 + $0x8] sm:$0xf] %vm869, %v800
    %872 = vst.msk [vmem:[#allocation3 + $0x10] sm:$0xf] %vm869, %v802
    %873 = vst.msk [vmem:[#allocation3 + $0x18] sm:$0xf] %vm869, %v804
    %874 = vst.msk [vmem:[#allocation3 + $0x20] sm:$0xf] %vm869, %v806
    %875 = vst.msk [vmem:[#allocation3 + $0x28] sm:$0xf] %vm869, %v808
    %876 = vst.msk [vmem:[#allocation3 + $0x30] sm:$0xf] %vm869, %v810
    %877 = vst.msk [vmem:[#allocation3 + $0x38] sm:$0xf] %vm869, %v812
    %878 = vst.msk [vmem:[#allocation3 + $0x40] sm:$0xf] %vm869, %v814
    %879 = vst.msk [vmem:[#allocation3 + $0x48] sm:$0xf] %vm869, %v816
    %880 = vst.msk [vmem:[#allocation3 + $0x50] sm:$0xf] %vm869, %v818
    %881 = vst.msk [vmem:[#allocation3 + $0x58] sm:$0xf] %vm869, %v820
    %882 = vst.msk [vmem:[#allocation3 + $0x60] sm:$0xf] %vm869, %v822
    %883 = vst.msk [vmem:[#allocation3 + $0x68] sm:$0xf] %vm869, %v824
    %884 = vst.msk [vmem:[#allocation3 + $0x70] sm:$0xf] %vm869, %v826
    %885 = vst.msk [vmem:[#allocation3 + $0x78] sm:$0xf] %vm869, %v828
    %886 = vst.msk [vmem:[#allocation3 + $0x80] sm:$0xf] %vm869, %v830
    %887 = vst.msk [vmem:[#allocation3 + $0x88] sm:$0xf] %vm869, %v832
    %888 = vst.msk [vmem:[#allocation3 + $0x90] sm:$0xf] %vm869, %v834
    %889 = vst.msk [vmem:[#allocation3 + $0x98] sm:$0xf] %vm869, %v836
    %890 = vst.msk [vmem:[#allocation3 + $0xa0] sm:$0xf] %vm869, %v838
    %891 = vst.msk [vmem:[#allocation3 + $0xa8] sm:$0xf] %vm869, %v840
    %892 = vst.msk [vmem:[#allocation3 + $0xb0] sm:$0xf] %vm869, %v842
    %893 = vst.msk [vmem:[#allocation3 + $0xb8] sm:$0xf] %vm869, %v844
    %vm894 = vsmask.f32 2304
    %vm895 = vsmask.f32 6416
    %vm896 = vmor %vm894, %vm895
    %v897 = vrot.slane %v346, 5
    %v898 = vrot.slane %v349, 6
    %v899 = vor.u32 %v897, %v898
    %v900 = vrot.slane %v899, 4
    %v901 = vrot.slane %v359, 5
    %v902 = vrot.slane %v355, 6
    %v903 = vor.u32 %v901, %v902
    %v904 = vsel %vm896, %v900, %v903
    %v905 = vrot.slane %v903, 4
    %v906 = vrot.slane %v369, 5
    %v907 = vrot.slane %v365, 6
    %v908 = vor.u32 %v906, %v907
    %v909 = vsel %vm896, %v905, %v908
    %v910 = vrot.slane %v908, 4
    %v911 = vshrl.u32 %v334, 16
    %v913 = vrot.slane %v911, 5
    %v914 = vrot.slane %v375, 6
    %v915 = vor.u32 %v913, %v914
    %v916 = vsel %vm896, %v910, %v915
    %v917 = vrot.slane %v380, 5
    %v918 = vrot.slane %v383, 6
    %v919 = vor.u32 %v917, %v918
    %v920 = vrot.slane %v919, 4
    %v921 = vrot.slane %v393, 5
    %v922 = vrot.slane %v389, 6
    %v923 = vor.u32 %v921, %v922
    %v924 = vsel %vm896, %v920, %v923
    %v925 = vrot.slane %v923, 4
    %v926 = vrot.slane %v403, 5
    %v927 = vrot.slane %v399, 6
    %v928 = vor.u32 %v926, %v927
    %v929 = vsel %vm896, %v925, %v928
    %v930 = vrot.slane %v928, 4
    %v931 = vshrl.u32 %v335, 16
    %v933 = vrot.slane %v931, 5
    %v934 = vrot.slane %v409, 6
    %v935 = vor.u32 %v933, %v934
    %v936 = vsel %vm896, %v930, %v935
    %v937 = vrot.slane %v414, 5
    %v938 = vrot.slane %v417, 6
    %v939 = vor.u32 %v937, %v938
    %v940 = vrot.slane %v939, 4
    %v941 = vrot.slane %v427, 5
    %v942 = vrot.slane %v423, 6
    %v943 = vor.u32 %v941, %v942
    %v944 = vsel %vm896, %v940, %v943
    %v945 = vrot.slane %v943, 4
    %v946 = vrot.slane %v437, 5
    %v947 = vrot.slane %v433, 6
    %v948 = vor.u32 %v946, %v947
    %v949 = vsel %vm896, %v945, %v948
    %v950 = vrot.slane %v948, 4
    %v951 = vshrl.u32 %v336, 16
    %v953 = vrot.slane %v951, 5
    %v954 = vrot.slane %v443, 6
    %v955 = vor.u32 %v953, %v954
    %v956 = vsel %vm896, %v950, %v955
    %v957 = vrot.slane %v448, 5
    %v958 = vrot.slane %v451, 6
    %v959 = vor.u32 %v957, %v958
    %v960 = vrot.slane %v959, 4
    %v961 = vrot.slane %v461, 5
    %v962 = vrot.slane %v457, 6
    %v963 = vor.u32 %v961, %v962
    %v964 = vsel %vm896, %v960, %v963
    %v965 = vrot.slane %v963, 4
    %v966 = vrot.slane %v471, 5
    %v967 = vrot.slane %v467, 6
    %v968 = vor.u32 %v966, %v967
    %v969 = vsel %vm896, %v965, %v968
    %v970 = vrot.slane %v968, 4
    %v971 = vshrl.u32 %v337, 16
    %v973 = vrot.slane %v971, 5
    %v974 = vrot.slane %v477, 6
    %v975 = vor.u32 %v973, %v974
    %v976 = vsel %vm896, %v970, %v975
    %v977 = vrot.slane %v482, 5
    %v978 = vrot.slane %v485, 6
    %v979 = vor.u32 %v977, %v978
    %v980 = vrot.slane %v979, 4
    %v981 = vrot.slane %v495, 5
    %v982 = vrot.slane %v491, 6
    %v983 = vor.u32 %v981, %v982
    %v984 = vsel %vm896, %v980, %v983
    %v985 = vrot.slane %v983, 4
    %v986 = vrot.slane %v505, 5
    %v987 = vrot.slane %v501, 6
    %v988 = vor.u32 %v986, %v987
    %v989 = vsel %vm896, %v985, %v988
    %v990 = vrot.slane %v988, 4
    %v991 = vshrl.u32 %v338, 16
    %v993 = vrot.slane %v991, 5
    %v994 = vrot.slane %v511, 6
    %v995 = vor.u32 %v993, %v994
    %v996 = vsel %vm896, %v990, %v995
    %v997 = vrot.slane %v516, 5
    %v998 = vrot.slane %v519, 6
    %v999 = vor.u32 %v997, %v998
    %v1000 = vrot.slane %v999, 4
    %v1001 = vrot.slane %v529, 5
    %v1002 = vrot.slane %v525, 6
    %v1003 = vor.u32 %v1001, %v1002
    %v1004 = vsel %vm896, %v1000, %v1003
    %v1005 = vrot.slane %v1003, 4
    %v1006 = vrot.slane %v539, 5
    %v1007 = vrot.slane %v535, 6
    %v1008 = vor.u32 %v1006, %v1007
    %v1009 = vsel %vm896, %v1005, %v1008
    %v1010 = vrot.slane %v1008, 4
    %v1011 = vshrl.u32 %v339, 16
    %v1013 = vrot.slane %v1011, 5
    %v1014 = vrot.slane %v545, 6
    %v1015 = vor.u32 %v1013, %v1014
    %v1016 = vsel %vm896, %v1010, %v1015
    %v1017 = vrot.slane %v550, 5
    %v1018 = vrot.slane %v553, 6
    %v1019 = vor.u32 %v1017, %v1018
    %v1020 = vrot.slane %v1019, 4
    %v1021 = vrot.slane %v563, 5
    %v1022 = vrot.slane %v559, 6
    %v1023 = vor.u32 %v1021, %v1022
    %v1024 = vsel %vm896, %v1020, %v1023
    %v1025 = vrot.slane %v1023, 4
    %v1026 = vrot.slane %v573, 5
    %v1027 = vrot.slane %v569, 6
    %v1028 = vor.u32 %v1026, %v1027
    %v1029 = vsel %vm896, %v1025, %v1028
    %v1030 = vrot.slane %v1028, 4
    %v1031 = vshrl.u32 %v340, 16
    %v1033 = vrot.slane %v1031, 5
    %v1034 = vrot.slane %v579, 6
    %v1035 = vor.u32 %v1033, %v1034
    %v1036 = vsel %vm896, %v1030, %v1035
    %v1037 = vrot.slane %v584, 5
    %v1038 = vrot.slane %v587, 6
    %v1039 = vor.u32 %v1037, %v1038
    %v1040 = vrot.slane %v1039, 4
    %v1041 = vrot.slane %v597, 5
    %v1042 = vrot.slane %v593, 6
    %v1043 = vor.u32 %v1041, %v1042
    %v1044 = vsel %vm896, %v1040, %v1043
    %v1045 = vrot.slane %v1043, 4
    %v1046 = vrot.slane %v607, 5
    %v1047 = vrot.slane %v603, 6
    %v1048 = vor.u32 %v1046, %v1047
    %v1049 = vsel %vm896, %v1045, %v1048
    %v1050 = vrot.slane %v1048, 4
    %v1051 = vshrl.u32 %v341, 16
    %v1053 = vrot.slane %v1051, 5
    %v1054 = vrot.slane %v613, 6
    %v1055 = vor.u32 %v1053, %v1054
    %v1056 = vsel %vm896, %v1050, %v1055
    %1057 = vrot.lane.b32.xlu0 %v904, 96
    %v1058 = vpop.permute.xlu0 %1057
    %1059 = vrot.lane.b32.xlu0 %v909, 96
    %v1060 = vpop.permute.xlu0 %1059
    %1061 = vrot.lane.b32.xlu0 %v916, 96
    %v1062 = vpop.permute.xlu0 %1061
    %1063 = vrot.lane.b32.xlu0 %v924, 96
    %v1064 = vpop.permute.xlu0 %1063
    %1065 = vrot.lane.b32.xlu0 %v929, 96
    %v1066 = vpop.permute.xlu0 %1065
    %1067 = vrot.lane.b32.xlu0 %v936, 96
    %v1068 = vpop.permute.xlu0 %1067
    %1069 = vrot.lane.b32.xlu0 %v944, 96
    %v1070 = vpop.permute.xlu0 %1069
    %1071 = vrot.lane.b32.xlu0 %v949, 96
    %v1072 = vpop.permute.xlu0 %1071
    %1073 = vrot.lane.b32.xlu0 %v956, 96
    %v1074 = vpop.permute.xlu0 %1073
    %1075 = vrot.lane.b32.xlu0 %v964, 96
    %v1076 = vpop.permute.xlu0 %1075
    %1077 = vrot.lane.b32.xlu0 %v969, 96
    %v1078 = vpop.permute.xlu0 %1077
    %1079 = vrot.lane.b32.xlu0 %v976, 96
    %v1080 = vpop.permute.xlu0 %1079
    %1081 = vrot.lane.b32.xlu0 %v984, 96
    %v1082 = vpop.permute.xlu0 %1081
    %1083 = vrot.lane.b32.xlu0 %v989, 96
    %v1084 = vpop.permute.xlu0 %1083
    %1085 = vrot.lane.b32.xlu0 %v996, 96
    %v1086 = vpop.permute.xlu0 %1085
    %1087 = vrot.lane.b32.xlu0 %v1004, 96
    %v1088 = vpop.permute.xlu0 %1087
    %1089 = vrot.lane.b32.xlu0 %v1009, 96
    %v1090 = vpop.permute.xlu0 %1089
    %1091 = vrot.lane.b32.xlu0 %v1016, 96
    %v1092 = vpop.permute.xlu0 %1091
    %1093 = vrot.lane.b32.xlu0 %v1024, 96
    %v1094 = vpop.permute.xlu0 %1093
    %1095 = vrot.lane.b32.xlu0 %v1029, 96
    %v1096 = vpop.permute.xlu0 %1095
    %1097 = vrot.lane.b32.xlu0 %v1036, 96
    %v1098 = vpop.permute.xlu0 %1097
    %1099 = vrot.lane.b32.xlu0 %v1044, 96
    %v1100 = vpop.permute.xlu0 %1099
    %1101 = vrot.lane.b32.xlu0 %v1049, 96
    %v1102 = vpop.permute.xlu0 %1101
    %1103 = vrot.lane.b32.xlu0 %v1056, 96
    %v1104 = vpop.permute.xlu0 %1103
    %vm1129 = vcmask 1044224
    %1130 = vst.msk [vmem:[#allocation3] sm:$0xf] %vm1129, %v1058
    %1131 = vst.msk [vmem:[#allocation3 + $0x8] sm:$0xf] %vm1129, %v1060
    %1132 = vst.msk [vmem:[#allocation3 + $0x10] sm:$0xf] %vm1129, %v1062
    %1133 = vst.msk [vmem:[#allocation3 + $0x18] sm:$0xf] %vm1129, %v1064
    %1134 = vst.msk [vmem:[#allocation3 + $0x20] sm:$0xf] %vm1129, %v1066
    %1135 = vst.msk [vmem:[#allocation3 + $0x28] sm:$0xf] %vm1129, %v1068
    %1136 = vst.msk [vmem:[#allocation3 + $0x30] sm:$0xf] %vm1129, %v1070
    %1137 = vst.msk [vmem:[#allocation3 + $0x38] sm:$0xf] %vm1129, %v1072
    %1138 = vst.msk [vmem:[#allocation3 + $0x40] sm:$0xf] %vm1129, %v1074
    %1139 = vst.msk [vmem:[#allocation3 + $0x48] sm:$0xf] %vm1129, %v1076
    %1140 = vst.msk [vmem:[#allocation3 + $0x50] sm:$0xf] %vm1129, %v1078
    %1141 = vst.msk [vmem:[#allocation3 + $0x58] sm:$0xf] %vm1129, %v1080
    %1142 = vst.msk [vmem:[#allocation3 + $0x60] sm:$0xf] %vm1129, %v1082
    %1143 = vst.msk [vmem:[#allocation3 + $0x68] sm:$0xf] %vm1129, %v1084
    %1144 = vst.msk [vmem:[#allocation3 + $0x70] sm:$0xf] %vm1129, %v1086
    %1145 = vst.msk [vmem:[#allocation3 + $0x78] sm:$0xf] %vm1129, %v1088
    %1146 = vst.msk [vmem:[#allocation3 + $0x80] sm:$0xf] %vm1129, %v1090
    %1147 = vst.msk [vmem:[#allocation3 + $0x88] sm:$0xf] %vm1129, %v1092
    %1148 = vst.msk [vmem:[#allocation3 + $0x90] sm:$0xf] %vm1129, %v1094
    %1149 = vst.msk [vmem:[#allocation3 + $0x98] sm:$0xf] %vm1129, %v1096
    %1150 = vst.msk [vmem:[#allocation3 + $0xa0] sm:$0xf] %vm1129, %v1098
    %1151 = vst.msk [vmem:[#allocation3 + $0xa8] sm:$0xf] %vm1129, %v1100
    %1152 = vst.msk [vmem:[#allocation3 + $0xb0] sm:$0xf] %vm1129, %v1102
    %1153 = vst.msk [vmem:[#allocation3 + $0xb8] sm:$0xf] %vm1129, %v1104
    %vm1154 = vcmask 1041408
    %vm1155 = vcmask 1045508
    %vm1156 = vmor %vm1154, %vm1155
    %v1157 = vrot.slane %v253, 6
    %v1158 = vrot.slane %v1157, 4
    %v1159 = vrot.slane %v254, 6
    %v1160 = vsel %vm1156, %v1158, %v1159
    %v1161 = vrot.slane %v1159, 4
    %v1162 = vrot.slane %v255, 6
    %v1163 = vsel %vm1156, %v1161, %v1162
    %v1164 = vrot.slane %v1162, 4
    %v1165 = vrot.slane %v334, 6
    %v1166 = vsel %vm1156, %v1164, %v1165
    %v1167 = vrot.slane %v256, 6
    %v1168 = vrot.slane %v1167, 4
    %v1169 = vrot.slane %v257, 6
    %v1170 = vsel %vm1156, %v1168, %v1169
    %v1171 = vrot.slane %v1169, 4
    %v1172 = vrot.slane %v258, 6
    %v1173 = vsel %vm1156, %v1171, %v1172
    %v1174 = vrot.slane %v1172, 4
    %v1175 = vrot.slane %v335, 6
    %v1176 = vsel %vm1156, %v1174, %v1175
    %v1177 = vrot.slane %v259, 6
    %v1178 = vrot.slane %v1177, 4
    %v1179 = vrot.slane %v260, 6
    %v1180 = vsel %vm1156, %v1178, %v1179
    %v1181 = vrot.slane %v1179, 4
    %v1182 = vrot.slane %v261, 6
    %v1183 = vsel %vm1156, %v1181, %v1182
    %v1184 = vrot.slane %v1182, 4
    %v1185 = vrot.slane %v336, 6
    %v1186 = vsel %vm1156, %v1184, %v1185
    %v1187 = vrot.slane %v262, 6
    %v1188 = vrot.slane %v1187, 4
    %v1189 = vrot.slane %v263, 6
    %v1190 = vsel %vm1156, %v1188, %v1189
    %v1191 = vrot.slane %v1189, 4
    %v1192 = vrot.slane %v264, 6
    %v1193 = vsel %vm1156, %v1191, %v1192
    %v1194 = vrot.slane %v1192, 4
    %v1195 = vrot.slane %v337, 6
    %v1196 = vsel %vm1156, %v1194, %v1195
    %v1197 = vrot.slane %v265, 6
    %v1198 = vrot.slane %v1197, 4
    %v1199 = vrot.slane %v266, 6
    %v1200 = vsel %vm1156, %v1198, %v1199
    %v1201 = vrot.slane %v1199, 4
    %v1202 = vrot.slane %v267, 6
    %v1203 = vsel %vm1156, %v1201, %v1202
    %v1204 = vrot.slane %v1202, 4
    %v1205 = vrot.slane %v338, 6
    %v1206 = vsel %vm1156, %v1204, %v1205
    %v1207 = vrot.slane %v268, 6
    %v1208 = vrot.slane %v1207, 4
    %v1209 = vrot.slane %v269, 6
    %v1210 = vsel %vm1156, %v1208, %v1209
    %v1211 = vrot.slane %v1209, 4
    %v1212 = vrot.slane %v270, 6
    %v1213 = vsel %vm1156, %v1211, %v1212
    %v1214 = vrot.slane %v1212, 4
    %v1215 = vrot.slane %v339, 6
    %v1216 = vsel %vm1156, %v1214, %v1215
    %v1217 = vrot.slane %v271, 6
    %v1218 = vrot.slane %v1217, 4
    %v1219 = vrot.slane %v272, 6
    %v1220 = vsel %vm1156, %v1218, %v1219
    %v1221 = vrot.slane %v1219, 4
    %v1222 = vrot.slane %v273, 6
    %v1223 = vsel %vm1156, %v1221, %v1222
    %v1224 = vrot.slane %v1222, 4
    %v1225 = vrot.slane %v340, 6
    %v1226 = vsel %vm1156, %v1224, %v1225
    %v1227 = vrot.slane %v274, 6
    %v1228 = vrot.slane %v1227, 4
    %v1229 = vrot.slane %v275, 6
    %v1230 = vsel %vm1156, %v1228, %v1229
    %v1231 = vrot.slane %v1229, 4
    %v1232 = vrot.slane %v276, 6
    %v1233 = vsel %vm1156, %v1231, %v1232
    %v1234 = vrot.slane %v1232, 4
    %v1235 = vrot.slane %v341, 6
    %v1236 = vsel %vm1156, %v1234, %v1235
    %1261 = vst.msk [vmem:[#allocation3 + $0x4] sm:$0xf] %vm301, %v1160
    %1262 = vst.msk [vmem:[#allocation3 + $0xc] sm:$0xf] %vm301, %v1163
    %1263 = vst.msk [vmem:[#allocation3 + $0x14] sm:$0xf] %vm301, %v1166
    %1264 = vst.msk [vmem:[#allocation3 + $0x1c] sm:$0xf] %vm301, %v1170
    %1265 = vst.msk [vmem:[#allocation3 + $0x24] sm:$0xf] %vm301, %v1173
    %1266 = vst.msk [vmem:[#allocation3 + $0x2c] sm:$0xf] %vm301, %v1176
    %1267 = vst.msk [vmem:[#allocation3 + $0x34] sm:$0xf] %vm301, %v1180
    %1268 = vst.msk [vmem:[#allocation3 + $0x3c] sm:$0xf] %vm301, %v1183
    %1269 = vst.msk [vmem:[#allocation3 + $0x44] sm:$0xf] %vm301, %v1186
    %1270 = vst.msk [vmem:[#allocation3 + $0x4c] sm:$0xf] %vm301, %v1190
    %1271 = vst.msk [vmem:[#allocation3 + $0x54] sm:$0xf] %vm301, %v1193
    %1272 = vst.msk [vmem:[#allocation3 + $0x5c] sm:$0xf] %vm301, %v1196
    %1273 = vst.msk [vmem:[#allocation3 + $0x64] sm:$0xf] %vm301, %v1200
    %1274 = vst.msk [vmem:[#allocation3 + $0x6c] sm:$0xf] %vm301, %v1203
    %1275 = vst.msk [vmem:[#allocation3 + $0x74] sm:$0xf] %vm301, %v1206
    %1276 = vst.msk [vmem:[#allocation3 + $0x7c] sm:$0xf] %vm301, %v1210
    %1277 = vst.msk [vmem:[#allocation3 + $0x84] sm:$0xf] %vm301, %v1213
    %1278 = vst.msk [vmem:[#allocation3 + $0x8c] sm:$0xf] %vm301, %v1216
    %1279 = vst.msk [vmem:[#allocation3 + $0x94] sm:$0xf] %vm301, %v1220
    %1280 = vst.msk [vmem:[#allocation3 + $0x9c] sm:$0xf] %vm301, %v1223
    %1281 = vst.msk [vmem:[#allocation3 + $0xa4] sm:$0xf] %vm301, %v1226
    %1282 = vst.msk [vmem:[#allocation3 + $0xac] sm:$0xf] %vm301, %v1230
    %1283 = vst.msk [vmem:[#allocation3 + $0xb4] sm:$0xf] %vm301, %v1233
    %1284 = vst.msk [vmem:[#allocation3 + $0xbc] sm:$0xf] %vm301, %v1236
    %v1285 = vld [vmem:[#allocation3] sm:$0xff]
    %v1286 = vld [vmem:[#allocation3 + $0x8] sm:$0xff]
    %v1287 = vld [vmem:[#allocation3 + $0x10] sm:$0xff]
    %v1288 = vld [vmem:[#allocation3 + $0x18] sm:$0xff]
    %v1289 = vld [vmem:[#allocation3 + $0x20] sm:$0xff]
    %v1290 = vld [vmem:[#allocation3 + $0x28] sm:$0xff]
    %v1291 = vld [vmem:[#allocation3 + $0x30] sm:$0xff]
    %v1292 = vld [vmem:[#allocation3 + $0x38] sm:$0xff]
    %v1293 = vld [vmem:[#allocation3 + $0x40] sm:$0xff]
    %v1294 = vld [vmem:[#allocation3 + $0x48] sm:$0xff]
    %v1295 = vld [vmem:[#allocation3 + $0x50] sm:$0xff]
    %v1296 = vld [vmem:[#allocation3 + $0x58] sm:$0xff]
    %v1297 = vld [vmem:[#allocation3 + $0x60] sm:$0xff]
    %v1298 = vld [vmem:[#allocation3 + $0x68] sm:$0xff]
    %v1299 = vld [vmem:[#allocation3 + $0x70] sm:$0xff]
    %v1300 = vld [vmem:[#allocation3 + $0x78] sm:$0xff]
    %v1301 = vld [vmem:[#allocation3 + $0x80] sm:$0xff]
    %v1302 = vld [vmem:[#allocation3 + $0x88] sm:$0xff]
    %v1303 = vld [vmem:[#allocation3 + $0x90] sm:$0xff]
    %v1304 = vld [vmem:[#allocation3 + $0x98] sm:$0xff]
    %v1305 = vld [vmem:[#allocation3 + $0xa0] sm:$0xff]
    %v1306 = vld [vmem:[#allocation3 + $0xa8] sm:$0xff]
    %v1307 = vld [vmem:[#allocation3 + $0xb0] sm:$0xff]
    %v1308 = vld [vmem:[#allocation3 + $0xb8] sm:$0xff]
    %v1309 = vld [vmem:[#allocation9] sm:$0xff]
    %v1310 = vld [vmem:[#allocation9 + $0x8] sm:$0xff]
    %v1311 = vld [vmem:[#allocation9 + $0x10] sm:$0xff]
    %v1312 = vld [vmem:[#allocation9 + $0x18] sm:$0xff]
    %v1313 = vld [vmem:[#allocation9 + $0x20] sm:$0xff]
    %v1314 = vld [vmem:[#allocation9 + $0x28] sm:$0xff]
    %v1315 = vld [vmem:[#allocation9 + $0x30] sm:$0xff]
    %v1316 = vld [vmem:[#allocation9 + $0x38] sm:$0xff]
    %v1317 = vld [vmem:[#allocation9 + $0x40] sm:$0xff]
    %v1318 = vld [vmem:[#allocation9 + $0x48] sm:$0xff]
    %v1319 = vld [vmem:[#allocation9 + $0x50] sm:$0xff]
    %v1320 = vld [vmem:[#allocation9 + $0x58] sm:$0xff]
    %v1321 = vld [vmem:[#allocation9 + $0x60] sm:$0xff]
    %v1322 = vld [vmem:[#allocation9 + $0x68] sm:$0xff]
    %v1323 = vld [vmem:[#allocation9 + $0x70] sm:$0xff]
    %v1324 = vld [vmem:[#allocation9 + $0x78] sm:$0xff]
    %v1325 = vld [vmem:[#allocation9 + $0x80] sm:$0xff]
    %v1326 = vld [vmem:[#allocation9 + $0x88] sm:$0xff]
    %v1327 = vld [vmem:[#allocation9 + $0x90] sm:$0xff]
    %v1328 = vld [vmem:[#allocation9 + $0x98] sm:$0xff]
    %v1353 = vunpack.c.l.b16 %v1285
    %v1354 = vunpack.c.h.b16 %v1285
    %v1355 = vunpack.c.l.b16 %v1286
    %v1356 = vunpack.c.h.b16 %v1286
    %v1357 = vunpack.c.l.b16 %v1287
    %v1358 = vunpack.c.h.b16 %v1287
    %v1359 = vunpack.c.l.b16 %v1288
    %v1360 = vunpack.c.h.b16 %v1288
    %v1361 = vunpack.c.l.b16 %v1289
    %v1362 = vunpack.c.h.b16 %v1289
    %v1363 = vunpack.c.l.b16 %v1290
    %v1364 = vunpack.c.h.b16 %v1290
    %v1365 = vunpack.c.l.b16 %v1291
    %v1366 = vunpack.c.h.b16 %v1291
    %v1367 = vunpack.c.l.b16 %v1292
    %v1368 = vunpack.c.h.b16 %v1292
    %v1369 = vunpack.c.l.b16 %v1293
    %v1370 = vunpack.c.h.b16 %v1293
    %v1371 = vunpack.c.l.b16 %v1294
    %v1372 = vunpack.c.h.b16 %v1294
    %v1373 = vunpack.c.l.b16 %v1295
    %v1374 = vunpack.c.h.b16 %v1295
    %v1375 = vunpack.c.l.b16 %v1296
    %v1376 = vunpack.c.h.b16 %v1296
    %v1377 = vunpack.c.l.b16 %v1297
    %v1378 = vunpack.c.h.b16 %v1297
    %v1379 = vunpack.c.l.b16 %v1298
    %v1380 = vunpack.c.h.b16 %v1298
    %v1381 = vunpack.c.l.b16 %v1299
    %v1382 = vunpack.c.h.b16 %v1299
    %v1383 = vunpack.c.l.b16 %v1300
    %v1384 = vunpack.c.h.b16 %v1300
    %v1385 = vunpack.c.l.b16 %v1301
    %v1386 = vunpack.c.h.b16 %v1301
    %v1387 = vunpack.c.l.b16 %v1302
    %v1388 = vunpack.c.h.b16 %v1302
    %v1389 = vunpack.c.l.b16 %v1303
    %v1390 = vunpack.c.h.b16 %v1303
    %v1391 = vunpack.c.l.b16 %v1304
    %v1392 = vunpack.c.h.b16 %v1304
    %v1393 = vunpack.c.l.b16 %v1305
    %v1394 = vunpack.c.h.b16 %v1305
    %v1395 = vunpack.c.l.b16 %v1306
    %v1396 = vunpack.c.h.b16 %v1306
    %v1397 = vunpack.c.l.b16 %v1307
    %v1398 = vunpack.c.h.b16 %v1307
    %v1399 = vunpack.c.l.b16 %v1308
    %v1400 = vunpack.c.h.b16 %v1308
    %v1401 = vpack.c.b16 %v1355, %v1353
    %v1402 = vpack.c.b16 %v1356, %v1354
    %v1403 = vpack.c.b16 %v1359, %v1357
    %v1404 = vpack.c.b16 %v1360, %v1358
    %v1405 = vpack.c.b16 %v1363, %v1361
    %v1406 = vpack.c.b16 %v1364, %v1362
    %v1407 = vpack.c.b16 %v1367, %v1365
    %v1408 = vpack.c.b16 %v1368, %v1366
    %v1409 = vpack.c.b16 %v1371, %v1369
    %v1410 = vpack.c.b16 %v1372, %v1370
    %v1411 = vpack.c.b16 %v1375, %v1373
    %v1412 = vpack.c.b16 %v1376, %v1374
    %v1413 = vpack.c.b16 %v1379, %v1377
    %v1414 = vpack.c.b16 %v1380, %v1378
    %v1415 = vpack.c.b16 %v1383, %v1381
    %v1416 = vpack.c.b16 %v1384, %v1382
    %v1417 = vpack.c.b16 %v1387, %v1385
    %v1418 = vpack.c.b16 %v1388, %v1386
    %v1419 = vpack.c.b16 %v1391, %v1389
    %v1420 = vpack.c.b16 %v1392, %v1390
    %v1421 = vpack.c.b16 %v1395, %v1393
    %v1422 = vpack.c.b16 %v1396, %v1394
    %v1423 = vpack.c.b16 %v1399, %v1397
    %v1424 = vpack.c.b16 %v1400, %v1398
    %v1457 = vunpack.c.l.b16 %v1309
    %v1458 = vunpack.c.h.b16 %v1309
    %v1459 = vunpack.c.l.b16 %v1310
    %v1460 = vunpack.c.h.b16 %v1310
    %v1461 = vunpack.c.l.b16 %v1311
    %v1462 = vunpack.c.h.b16 %v1311
    %v1463 = vunpack.c.l.b16 %v1312
    %v1464 = vunpack.c.h.b16 %v1312
    %v1465 = vunpack.c.l.b16 %v1313
    %v1466 = vunpack.c.h.b16 %v1313
    %v1467 = vunpack.c.l.b16 %v1314
    %v1468 = vunpack.c.h.b16 %v1314
    %v1469 = vunpack.c.l.b16 %v1315
    %v1470 = vunpack.c.h.b16 %v1315
    %v1471 = vunpack.c.l.b16 %v1316
    %v1472 = vunpack.c.h.b16 %v1316
    %v1473 = vunpack.c.l.b16 %v1317
    %v1474 = vunpack.c.h.b16 %v1317
    %v1475 = vunpack.c.l.b16 %v1318
    %v1476 = vunpack.c.h.b16 %v1318
    %v1477 = vunpack.c.l.b16 %v1319
    %v1478 = vunpack.c.h.b16 %v1319
    %v1479 = vunpack.c.l.b16 %v1320
    %v1480 = vunpack.c.h.b16 %v1320
    %v1481 = vunpack.c.l.b16 %v1321
    %v1482 = vunpack.c.h.b16 %v1321
    %v1483 = vunpack.c.l.b16 %v1322
    %v1484 = vunpack.c.h.b16 %v1322
    %v1485 = vunpack.c.l.b16 %v1323
    %v1486 = vunpack.c.h.b16 %v1323
    %v1487 = vunpack.c.l.b16 %v1324
    %v1488 = vunpack.c.h.b16 %v1324
    %v1489 = vunpack.c.l.b16 %v1325
    %v1490 = vunpack.c.h.b16 %v1325
    %v1491 = vunpack.c.l.b16 %v1326
    %v1492 = vunpack.c.h.b16 %v1326
    %v1493 = vunpack.c.l.b16 %v1327
    %v1494 = vunpack.c.h.b16 %v1327
    %v1495 = vunpack.c.l.b16 %v1328
    %v1496 = vunpack.c.h.b16 %v1328
    %v1497 = vpack.c.b16 %v1459, %v1457
    %v1498 = vpack.c.b16 %v1460, %v1458
    %v1499 = vpack.c.b16 %v1463, %v1461
    %v1500 = vpack.c.b16 %v1464, %v1462
    %v1501 = vpack.c.b16 %v1467, %v1465
    %v1502 = vpack.c.b16 %v1468, %v1466
    %v1503 = vpack.c.b16 %v1471, %v1469
    %v1504 = vpack.c.b16 %v1472, %v1470
    %v1505 = vpack.c.b16 %v1475, %v1473
    %v1506 = vpack.c.b16 %v1476, %v1474
    %v1507 = vpack.c.b16 %v1479, %v1477
    %v1508 = vpack.c.b16 %v1480, %v1478
    %v1509 = vpack.c.b16 %v1483, %v1481
    %v1510 = vpack.c.b16 %v1484, %v1482
    %v1511 = vpack.c.b16 %v1487, %v1485
    %v1512 = vpack.c.b16 %v1488, %v1486
    %v1513 = vpack.c.b16 %v1491, %v1489
    %v1514 = vpack.c.b16 %v1492, %v1490
    %v1515 = vpack.c.b16 %v1495, %v1493
    %v1516 = vpack.c.b16 %v1496, %v1494
    %vm1537 = vcmask 261120
    %v1539 = vsel %vm1537, %v1402, 0
    %v1542 = vsel %vm1537, %v1404, 0
    %v1545 = vsel %vm1537, %v1406, 0
    %v1548 = vsel %vm1537, %v1408, 0
    %v1551 = vsel %vm1537, %v1410, 0
    %v1554 = vsel %vm1537, %v1412, 0
    %v1557 = vsel %vm1537, %v1414, 0
    %v1560 = vsel %vm1537, %v1416, 0
    %v1563 = vsel %vm1537, %v1418, 0
    %v1566 = vsel %vm1537, %v1420, 0
    %v1569 = vsel %vm1537, %v1422, 0
    %v1572 = vsel %vm1537, %v1424, 0
    %1574 = vmatprep.subr.bf16.mxu0 %v1512
    %1575 = vmatpush1.bf16.msra.mxu0 %v1511
    %1576 = vmatprep.subr.bf16.mxu0 %v1510
    %1577 = vmatpush1.bf16.msra.mxu0 %v1509
    %1578 = vmatprep.subr.bf16.mxu0 %v1508
    %1579 = vmatpush1.bf16.msra.mxu0 %v1507
    %1580 = vmatprep.subr.bf16.mxu0 %v1506
    %1581 = vmatpush1.bf16.msra.mxu0 %v1505
    %1582 = vmatprep.subr.bf16.mxu0 %v1504
    %1583 = vmatpush1.bf16.msra.mxu0 %v1503
    %1584 = vmatprep.subr.bf16.mxu0 %v1502
    %1585 = vmatpush1.bf16.msra.mxu0 %v1501
    %1586 = vmatprep.subr.bf16.mxu0 %v1500
    %1587 = vmatpush1.bf16.msra.mxu0 %v1499
    %1588 = vmatprep.subr.bf16.mxu0 %v1498
    %1589 = vmatpush1.bf16.msra.mxu0 %v1497
    %1590 = vmatprep.subr.bf16.mxu0 0
    %1591 = vmatpush2.bf16.msra.mxu0 0
    %1592 = vmatprep.subr.bf16.mxu0 0
    %1593 = vmatpush2.bf16.msra.mxu0 0
    %1594 = vmatprep.subr.bf16.mxu0 0
    %1595 = vmatpush2.bf16.msra.mxu0 0
    %1596 = vmatprep.subr.bf16.mxu0 0
    %1597 = vmatpush2.bf16.msra.mxu0 0
    %1598 = vmatprep.subr.bf16.mxu0 0
    %1599 = vmatpush2.bf16.msra.mxu0 0
    %1600 = vmatprep.subr.bf16.mxu0 0
    %1601 = vmatpush2.bf16.msra.mxu0 0
    %1602 = vmatprep.subr.bf16.mxu0 %v1516
    %1603 = vmatpush2.bf16.msra.mxu0 %v1515
    %1604 = vmatprep.subr.bf16.mxu0 %v1514
    %1605 = vmatpush2.bf16.msra.mxu0 %v1513
    %1606 = vmatprep.mubr.bf16.mxu0 %v1539
    %1607 = vmatmul.mubr.bf16.gmra.mxu0 %v1401
    %v1608 = vpop.f32.mrf.mxu0
    %v1609 = vadd.f32 0.0, %v1608
    %v1610 = vpop.f32.mrf.mxu0
    %v1611 = vadd.f32 0.0, %v1610
    %v1612 = vpop.f32.mrf.mxu0
    %v1613 = vadd.f32 0.0, %v1612
    %v1614 = vpop.f32.mrf.mxu0
    %v1615 = vadd.f32 0.0, %v1614
    %1616 = vmatprep.mubr.bf16.mxu0 %v1542
    %1617 = vmatmul.mubr.bf16.gmra.mxu0 %v1403
    %v1618 = vpop.f32.mrf.mxu0
    %v1619 = vadd.f32 0.0, %v1618
    %v1620 = vpop.f32.mrf.mxu0
    %v1621 = vadd.f32 0.0, %v1620
    %v1622 = vpop.f32.mrf.mxu0
    %v1623 = vadd.f32 0.0, %v1622
    %v1624 = vpop.f32.mrf.mxu0
    %v1625 = vadd.f32 0.0, %v1624
    %1626 = vmatprep.mubr.bf16.mxu0 %v1545
    %1627 = vmatmul.mubr.bf16.gmra.mxu0 %v1405
    %v1628 = vpop.f32.mrf.mxu0
    %v1629 = vadd.f32 0.0, %v1628
    %v1630 = vpop.f32.mrf.mxu0
    %v1631 = vadd.f32 0.0, %v1630
    %v1632 = vpop.f32.mrf.mxu0
    %v1633 = vadd.f32 0.0, %v1632
    %v1634 = vpop.f32.mrf.mxu0
    %v1635 = vadd.f32 0.0, %v1634
    %1636 = vmatprep.mubr.bf16.mxu0 %v1548
    %1637 = vmatmul.mubr.bf16.gmra.mxu0 %v1407
    %v1638 = vpop.f32.mrf.mxu0
    %v1639 = vadd.f32 0.0, %v1638
    %v1640 = vpop.f32.mrf.mxu0
    %v1641 = vadd.f32 0.0, %v1640
    %v1642 = vpop.f32.mrf.mxu0
    %v1643 = vadd.f32 0.0, %v1642
    %v1644 = vpop.f32.mrf.mxu0
    %v1645 = vadd.f32 0.0, %v1644
    %1646 = vmatprep.mubr.bf16.mxu0 %v1551
    %1647 = vmatmul.mubr.bf16.gmra.mxu0 %v1409
    %v1648 = vpop.f32.mrf.mxu0
    %v1649 = vadd.f32 0.0, %v1648
    %v1650 = vpop.f32.mrf.mxu0
    %v1651 = vadd.f32 0.0, %v1650
    %v1652 = vpop.f32.mrf.mxu0
    %v1653 = vadd.f32 0.0, %v1652
    %v1654 = vpop.f32.mrf.mxu0
    %v1655 = vadd.f32 0.0, %v1654
    %1656 = vmatprep.mubr.bf16.mxu0 %v1554
    %1657 = vmatmul.mubr.bf16.gmra.mxu0 %v1411
    %v1658 = vpop.f32.mrf.mxu0
    %v1659 = vadd.f32 0.0, %v1658
    %v1660 = vpop.f32.mrf.mxu0
    %v1661 = vadd.f32 0.0, %v1660
    %v1662 = vpop.f32.mrf.mxu0
    %v1663 = vadd.f32 0.0, %v1662
    %v1664 = vpop.f32.mrf.mxu0
    %v1665 = vadd.f32 0.0, %v1664
    %1666 = vmatprep.mubr.bf16.mxu0 %v1557
    %1667 = vmatmul.mubr.bf16.gmra.mxu0 %v1413
    %v1668 = vpop.f32.mrf.mxu0
    %v1669 = vadd.f32 0.0, %v1668
    %v1670 = vpop.f32.mrf.mxu0
    %v1671 = vadd.f32 0.0, %v1670
    %v1672 = vpop.f32.mrf.mxu0
    %v1673 = vadd.f32 0.0, %v1672
    %v1674 = vpop.f32.mrf.mxu0
    %v1675 = vadd.f32 0.0, %v1674
    %1676 = vmatprep.mubr.bf16.mxu0 %v1560
    %1677 = vmatmul.mubr.bf16.gmra.mxu0 %v1415
    %v1678 = vpop.f32.mrf.mxu0
    %v1679 = vadd.f32 0.0, %v1678
    %v1680 = vpop.f32.mrf.mxu0
    %v1681 = vadd.f32 0.0, %v1680
    %v1682 = vpop.f32.mrf.mxu0
    %v1683 = vadd.f32 0.0, %v1682
    %v1684 = vpop.f32.mrf.mxu0
    %v1685 = vadd.f32 0.0, %v1684
    %1686 = vmatprep.mubr.bf16.mxu0 %v1563
    %1687 = vmatmul.mubr.bf16.gmra.mxu0 %v1417
    %v1688 = vpop.f32.mrf.mxu0
    %v1689 = vadd.f32 0.0, %v1688
    %v1690 = vpop.f32.mrf.mxu0
    %v1691 = vadd.f32 0.0, %v1690
    %v1692 = vpop.f32.mrf.mxu0
    %v1693 = vadd.f32 0.0, %v1692
    %v1694 = vpop.f32.mrf.mxu0
    %v1695 = vadd.f32 0.0, %v1694
    %1696 = vmatprep.mubr.bf16.mxu0 %v1566
    %1697 = vmatmul.mubr.bf16.gmra.mxu0 %v1419
    %v1698 = vpop.f32.mrf.mxu0
    %v1699 = vadd.f32 0.0, %v1698
    %v1700 = vpop.f32.mrf.mxu0
    %v1701 = vadd.f32 0.0, %v1700
    %v1702 = vpop.f32.mrf.mxu0
    %v1703 = vadd.f32 0.0, %v1702
    %v1704 = vpop.f32.mrf.mxu0
    %v1705 = vadd.f32 0.0, %v1704
    %1706 = vmatprep.mubr.bf16.mxu0 %v1569
    %1707 = vmatmul.mubr.bf16.gmra.mxu0 %v1421
    %v1708 = vpop.f32.mrf.mxu0
    %v1709 = vadd.f32 0.0, %v1708
    %v1710 = vpop.f32.mrf.mxu0
    %v1711 = vadd.f32 0.0, %v1710
    %v1712 = vpop.f32.mrf.mxu0
    %v1713 = vadd.f32 0.0, %v1712
    %v1714 = vpop.f32.mrf.mxu0
    %v1715 = vadd.f32 0.0, %v1714
    %1716 = vmatprep.mubr.bf16.mxu0 %v1572
    %1717 = vmatmul.mubr.bf16.gmra.mxu0 %v1423
    %v1718 = vpop.f32.mrf.mxu0
    %v1719 = vadd.f32 0.0, %v1718
    %v1720 = vpop.f32.mrf.mxu0
    %v1721 = vadd.f32 0.0, %v1720
    %v1722 = vpop.f32.mrf.mxu0
    %v1723 = vadd.f32 0.0, %v1722
    %v1724 = vpop.f32.mrf.mxu0
    %v1725 = vadd.f32 0.0, %v1724
    %1726 = vdwg.mxu0
    %s1727 = sadd.s32 0, 1
    %s1728 = smul.u32 %s1727, 24
    %p1729 = scmp.gt.s32.totalorder %s1728, 18
    // Predicated region
    $region38: #{tpu_custom_call.1} parent=1 // pred_check
      %p1730 = pneg %p1729
    $region39: #{tpu_custom_call.1} parent=1 // pred_check_branch
      %1732 = sbr.rel (%p1730) target = $region41
    $region40: #{tpu_custom_call.1} parent=1 // pred_region
      %s1733 = smul.u32 0, 24
      %v1734 = vlaneseq
      %v1735 = vshrl.u32 %v1734, 7
      %v1736 = vadd.s32 %v1735, 8
      %v1737 = vadd.s32 %v1735, 16
      %v1738 = vstv %s1733
      %v1739 = vadd.s32 %v1738, %v1735
      %v1740 = vadd.s32 %v1738, %v1736
      %v1741 = vadd.s32 %v1738, %v1737
      %v1742 = vld [vmem:[%s4] sm:$0x3]
      %v1743 = vlaneseq
      %v1744 = vshrl.u32 %v1743, 7
      %v1745 = vsub.s32 0, %v1744
      %v1746 = vrot.slane %v1742, %v1745
      %v1747 = vlaneseq
      %v1748 = vshrl.u32 %v1747, 7
      %v1749 = vsub.s32 1, %v1748
      %v1750 = vrot.slane %v1742, %v1749
      %vm1751 = vcmp.lt.s32.totalorder %v1739, %v1746
      %vm1752 = vcmp.lt.s32.totalorder %v1739, %v1750
      %vm1753 = vcmp.lt.s32.totalorder %v1740, %v1746
      %vm1754 = vcmp.lt.s32.totalorder %v1740, %v1750
      %vm1755 = vcmp.lt.s32.totalorder %v1741, %v1746
      %vm1756 = vcmp.lt.s32.totalorder %v1741, %v1750
      %v1757 = vsel %vm1751, 1, 0
      %v1758 = vsel %vm1752, 1, 0
      %v1759 = vsel %vm1753, 1, 0
      %v1760 = vsel %vm1754, 1, 0
      %v1761 = vsel %vm1755, 1, 0
      %v1762 = vsel %vm1756, 1, 0
      %vm1763 = vcmp.eq.s32.totalorder %v1757, 1
      %vm1764 = vcmp.eq.s32.totalorder %v1758, 1
      %vm1765 = vcmp.eq.s32.totalorder %v1759, 1
      %vm1766 = vcmp.eq.s32.totalorder %v1760, 1
      %vm1767 = vcmp.eq.s32.totalorder %v1761, 1
      %vm1768 = vcmp.eq.s32.totalorder %v1762, 1
      %v1769 = vsel %vm1763, %v1609, -inf
      %v1770 = vsel %vm1764, %v1611, -inf
      %v1771 = vsel %vm1765, %v1613, -inf
      %v1772 = vsel %vm1766, %v1615, -inf
      %v1773 = vsel %vm1767, %v1619, -inf
      %v1774 = vsel %vm1768, %v1621, -inf
      %v1775 = vsel %vm1763, %v1623, -inf
      %v1776 = vsel %vm1764, %v1625, -inf
      %v1777 = vsel %vm1765, %v1629, -inf
      %v1778 = vsel %vm1766, %v1631, -inf
      %v1779 = vsel %vm1767, %v1633, -inf
      %v1780 = vsel %vm1768, %v1635, -inf
      %v1781 = vsel %vm1763, %v1639, -inf
      %v1782 = vsel %vm1764, %v1641, -inf
      %v1783 = vsel %vm1765, %v1643, -inf
      %v1784 = vsel %vm1766, %v1645, -inf
      %v1785 = vsel %vm1767, %v1649, -inf
      %v1786 = vsel %vm1768, %v1651, -inf
      %v1787 = vsel %vm1763, %v1653, -inf
      %v1788 = vsel %vm1764, %v1655, -inf
      %v1789 = vsel %vm1765, %v1659, -inf
      %v1790 = vsel %vm1766, %v1661, -inf
      %v1791 = vsel %vm1767, %v1663, -inf
      %v1792 = vsel %vm1768, %v1665, -inf
      %v1793 = vsel %vm1763, %v1669, -inf
      %v1794 = vsel %vm1764, %v1671, -inf
      %v1795 = vsel %vm1765, %v1673, -inf
      %v1796 = vsel %vm1766, %v1675, -inf
      %v1797 = vsel %vm1767, %v1679, -inf
      %v1798 = vsel %vm1768, %v1681, -inf
      %v1799 = vsel %vm1763, %v1683, -inf
      %v1800 = vsel %vm1764, %v1685, -inf
      %v1801 = vsel %vm1765, %v1689, -inf
      %v1802 = vsel %vm1766, %v1691, -inf
      %v1803 = vsel %vm1767, %v1693, -inf
      %v1804 = vsel %vm1768, %v1695, -inf
      %v1805 = vsel %vm1763, %v1699, -inf
      %v1806 = vsel %vm1764, %v1701, -inf
      %v1807 = vsel %vm1765, %v1703, -inf
      %v1808 = vsel %vm1766, %v1705, -inf
      %v1809 = vsel %vm1767, %v1709, -inf
      %v1810 = vsel %vm1768, %v1711, -inf
      %v1811 = vsel %vm1763, %v1713, -inf
      %v1812 = vsel %vm1764, %v1715, -inf
      %v1813 = vsel %vm1765, %v1719, -inf
      %v1814 = vsel %vm1766, %v1721, -inf
      %v1815 = vsel %vm1767, %v1723, -inf
      %v1816 = vsel %vm1768, %v1725, -inf
      %v1817 = vld [vmem:[#allocation2] sm:$0xff]
      %v1818 = vld [vmem:[#allocation2 + $0x8] sm:$0xff]
      %v1819 = vmax.f32 %v1769, %v1771
      %v1820 = vmax.f32 %v1819, %v1773
      %v1821 = vrot.slane %v1820, 4
      %v1822 = vmax.f32 %v1820, %v1821
      %v1823 = vrot.slane %v1822, 2
      %v1824 = vmax.f32 %v1822, %v1823
      %v1825 = vrot.slane %v1824, 1
      %v1826 = vmax.f32 %v1824, %v1825
      %v1827 = vmax.f32 %v1770, %v1772
      %v1828 = vmax.f32 %v1827, %v1774
      %v1829 = vrot.slane %v1828, 4
      %v1830 = vmax.f32 %v1828, %v1829
      %v1831 = vrot.slane %v1830, 2
      %v1832 = vmax.f32 %v1830, %v1831
      %v1833 = vrot.slane %v1832, 1
      %v1834 = vmax.f32 %v1832, %v1833
      %v1835 = vmax.f32 %v1775, %v1777
      %v1836 = vmax.f32 %v1835, %v1779
      %v1837 = vrot.slane %v1836, 4
      %v1838 = vmax.f32 %v1836, %v1837
      %v1839 = vrot.slane %v1838, 2
      %v1840 = vmax.f32 %v1838, %v1839
      %v1841 = vrot.slane %v1840, 1
      %v1842 = vmax.f32 %v1840, %v1841
      %v1843 = vmax.f32 %v1776, %v1778
      %v1844 = vmax.f32 %v1843, %v1780
      %v1845 = vrot.slane %v1844, 4
      %v1846 = vmax.f32 %v1844, %v1845
      %v1847 = vrot.slane %v1846, 2
      %v1848 = vmax.f32 %v1846, %v1847
      %v1849 = vrot.slane %v1848, 1
      %v1850 = vmax.f32 %v1848, %v1849
      %v1851 = vmax.f32 %v1781, %v1783
      %v1852 = vmax.f32 %v1851, %v1785
      %v1853 = vrot.slane %v1852, 4
      %v1854 = vmax.f32 %v1852, %v1853
      %v1855 = vrot.slane %v1854, 2
      %v1856 = vmax.f32 %v1854, %v1855
      %v1857 = vrot.slane %v1856, 1
      %v1858 = vmax.f32 %v1856, %v1857
      %v1859 = vmax.f32 %v1782, %v1784
      %v1860 = vmax.f32 %v1859, %v1786
      %v1861 = vrot.slane %v1860, 4
      %v1862 = vmax.f32 %v1860, %v1861
      %v1863 = vrot.slane %v1862, 2
      %v1864 = vmax.f32 %v1862, %v1863
      %v1865 = vrot.slane %v1864, 1
      %v1866 = vmax.f32 %v1864, %v1865
      %v1867 = vmax.f32 %v1787, %v1789
      %v1868 = vmax.f32 %v1867, %v1791
      %v1869 = vrot.slane %v1868, 4
      %v1870 = vmax.f32 %v1868, %v1869
      %v1871 = vrot.slane %v1870, 2
      %v1872 = vmax.f32 %v1870, %v1871
      %v1873 = vrot.slane %v1872, 1
      %v1874 = vmax.f32 %v1872, %v1873
      %v1875 = vmax.f32 %v1788, %v1790
      %v1876 = vmax.f32 %v1875, %v1792
      %v1877 = vrot.slane %v1876, 4
      %v1878 = vmax.f32 %v1876, %v1877
      %v1879 = vrot.slane %v1878, 2
      %v1880 = vmax.f32 %v1878, %v1879
      %v1881 = vrot.slane %v1880, 1
      %v1882 = vmax.f32 %v1880, %v1881
      %v1883 = vmax.f32 %v1793, %v1795
      %v1884 = vmax.f32 %v1883, %v1797
      %v1885 = vrot.slane %v1884, 4
      %v1886 = vmax.f32 %v1884, %v1885
      %v1887 = vrot.slane %v1886, 2
      %v1888 = vmax.f32 %v1886, %v1887
      %v1889 = vrot.slane %v1888, 1
      %v1890 = vmax.f32 %v1888, %v1889
      %v1891 = vmax.f32 %v1794, %v1796
      %v1892 = vmax.f32 %v1891, %v1798
      %v1893 = vrot.slane %v1892, 4
      %v1894 = vmax.f32 %v1892, %v1893
      %v1895 = vrot.slane %v1894, 2
      %v1896 = vmax.f32 %v1894, %v1895
      %v1897 = vrot.slane %v1896, 1
      %v1898 = vmax.f32 %v1896, %v1897
      %v1899 = vmax.f32 %v1799, %v1801
      %v1900 = vmax.f32 %v1899, %v1803
      %v1901 = vrot.slane %v1900, 4
      %v1902 = vmax.f32 %v1900, %v1901
      %v1903 = vrot.slane %v1902, 2
      %v1904 = vmax.f32 %v1902, %v1903
      %v1905 = vrot.slane %v1904, 1
      %v1906 = vmax.f32 %v1904, %v1905
      %v1907 = vmax.f32 %v1800, %v1802
      %v1908 = vmax.f32 %v1907, %v1804
      %v1909 = vrot.slane %v1908, 4
      %v1910 = vmax.f32 %v1908, %v1909
      %v1911 = vrot.slane %v1910, 2
      %v1912 = vmax.f32 %v1910, %v1911
      %v1913 = vrot.slane %v1912, 1
      %v1914 = vmax.f32 %v1912, %v1913
      %v1915 = vmax.f32 %v1805, %v1807
      %v1916 = vmax.f32 %v1915, %v1809
      %v1917 = vrot.slane %v1916, 4
      %v1918 = vmax.f32 %v1916, %v1917
      %v1919 = vrot.slane %v1918, 2
      %v1920 = vmax.f32 %v1918, %v1919
      %v1921 = vrot.slane %v1920, 1
      %v1922 = vmax.f32 %v1920, %v1921
      %v1923 = vmax.f32 %v1806, %v1808
      %v1924 = vmax.f32 %v1923, %v1810
      %v1925 = vrot.slane %v1924, 4
      %v1926 = vmax.f32 %v1924, %v1925
      %v1927 = vrot.slane %v1926, 2
      %v1928 = vmax.f32 %v1926, %v1927
      %v1929 = vrot.slane %v1928, 1
      %v1930 = vmax.f32 %v1928, %v1929
      %v1931 = vmax.f32 %v1811, %v1813
      %v1932 = vmax.f32 %v1931, %v1815
      %v1933 = vrot.slane %v1932, 4
      %v1934 = vmax.f32 %v1932, %v1933
      %v1935 = vrot.slane %v1934, 2
      %v1936 = vmax.f32 %v1934, %v1935
      %v1937 = vrot.slane %v1936, 1
      %v1938 = vmax.f32 %v1936, %v1937
      %v1939 = vmax.f32 %v1812, %v1814
      %v1940 = vmax.f32 %v1939, %v1816
      %v1941 = vrot.slane %v1940, 4
      %v1942 = vmax.f32 %v1940, %v1941
      %v1943 = vrot.slane %v1942, 2
      %v1944 = vmax.f32 %v1942, %v1943
      %v1945 = vrot.slane %v1944, 1
      %v1946 = vmax.f32 %v1944, %v1945
      %vm1963 = vcmask 1041409
      %v1964 = vsel %vm1963, %v1842, %v1826
      %vm1965 = vcmask 1042434
      %v1966 = vsel %vm1965, %v1858, %v1964
      %vm1967 = vcmask 1043459
      %v1968 = vsel %vm1967, %v1874, %v1966
      %vm1969 = vcmask 1044484
      %v1970 = vsel %vm1969, %v1890, %v1968
      %vm1971 = vcmask 1045509
      %v1972 = vsel %vm1971, %v1906, %v1970
      %vm1973 = vcmask 1046534
      %v1974 = vsel %vm1973, %v1922, %v1972
      %vm1975 = vcmask 1047559
      %v1976 = vsel %vm1975, %v1938, %v1974
      %v1977 = vsel %vm1963, %v1850, %v1834
      %v1978 = vsel %vm1965, %v1866, %v1977
      %v1979 = vsel %vm1967, %v1882, %v1978
      %v1980 = vsel %vm1969, %v1898, %v1979
      %v1981 = vsel %vm1971, %v1914, %v1980
      %v1982 = vsel %vm1973, %v1930, %v1981
      %v1983 = vsel %vm1975, %v1946, %v1982
      %v1986 = vmax.f32 %v1817, %v1976
      %v1987 = vmax.f32 %v1818, %v1983
      %1988 = vst [vmem:[#allocation2] sm:$0xff] %v1986
      %1989 = vst [vmem:[#allocation2 + $0x8] sm:$0xff] %v1987
    $region41: #{tpu_custom_call.1} parent=1 // pred_fallthru
      _
    %p1990 = scmp.le.s32.totalorder %s1728, 18
    // Predicated region
    $region42: #{tpu_custom_call.1} parent=1 // pred_check
      %p1991 = pneg %p1990
    $region43: #{tpu_custom_call.1} parent=1 // pred_check_branch
      %1993 = sbr.rel (%p1991) target = $region45
    $region44: #{tpu_custom_call.1} parent=1 // pred_region
      %v1994 = vld [vmem:[#allocation2] sm:$0xff]
      %v1995 = vld [vmem:[#allocation2 + $0x8] sm:$0xff]
      %v1996 = vmax.f32 %v1609, %v1613
      %v1997 = vmax.f32 %v1996, %v1619
      %v1998 = vrot.slane %v1997, 4
      %v1999 = vmax.f32 %v1997, %v1998
      %v2000 = vrot.slane %v1999, 2
      %v2001 = vmax.f32 %v1999, %v2000
      %v2002 = vrot.slane %v2001, 1
      %v2003 = vmax.f32 %v2001, %v2002
      %v2004 = vmax.f32 %v1611, %v1615
      %v2005 = vmax.f32 %v2004, %v1621
      %v2006 = vrot.slane %v2005, 4
      %v2007 = vmax.f32 %v2005, %v2006
      %v2008 = vrot.slane %v2007, 2
      %v2009 = vmax.f32 %v2007, %v2008
      %v2010 = vrot.slane %v2009, 1
      %v2011 = vmax.f32 %v2009, %v2010
      %v2012 = vmax.f32 %v1623, %v1629
      %v2013 = vmax.f32 %v2012, %v1633
      %v2014 = vrot.slane %v2013, 4
      %v2015 = vmax.f32 %v2013, %v2014
      %v2016 = vrot.slane %v2015, 2
      %v2017 = vmax.f32 %v2015, %v2016
      %v2018 = vrot.slane %v2017, 1
      %v2019 = vmax.f32 %v2017, %v2018
      %v2020 = vmax.f32 %v1625, %v1631
      %v2021 = vmax.f32 %v2020, %v1635
      %v2022 = vrot.slane %v2021, 4
      %v2023 = vmax.f32 %v2021, %v2022
      %v2024 = vrot.slane %v2023, 2
      %v2025 = vmax.f32 %v2023, %v2024
      %v2026 = vrot.slane %v2025, 1
      %v2027 = vmax.f32 %v2025, %v2026
      %v2028 = vmax.f32 %v1639, %v1643
      %v2029 = vmax.f32 %v2028, %v1649
      %v2030 = vrot.slane %v2029, 4
      %v2031 = vmax.f32 %v2029, %v2030
      %v2032 = vrot.slane %v2031, 2
      %v2033 = vmax.f32 %v2031, %v2032
      %v2034 = vrot.slane %v2033, 1
      %v2035 = vmax.f32 %v2033, %v2034
      %v2036 = vmax.f32 %v1641, %v1645
      %v2037 = vmax.f32 %v2036, %v1651
      %v2038 = vrot.slane %v2037, 4
      %v2039 = vmax.f32 %v2037, %v2038
      %v2040 = vrot.slane %v2039, 2
      %v2041 = vmax.f32 %v2039, %v2040
      %v2042 = vrot.slane %v2041, 1
      %v2043 = vmax.f32 %v2041, %v2042
      %v2044 = vmax.f32 %v1653, %v1659
      %v2045 = vmax.f32 %v2044, %v1663
      %v2046 = vrot.slane %v2045, 4
      %v2047 = vmax.f32 %v2045, %v2046
      %v2048 = vrot.slane %v2047, 2
      %v2049 = vmax.f32 %v2047, %v2048
      %v2050 = vrot.slane %v2049, 1
      %v2051 = vmax.f32 %v2049, %v2050
      %v2052 = vmax.f32 %v1655, %v1661
      %v2053 = vmax.f32 %v2052, %v1665
      %v2054 = vrot.slane %v2053, 4
      %v2055 = vmax.f32 %v2053, %v2054
      %v2056 = vrot.slane %v2055, 2
      %v2057 = vmax.f32 %v2055, %v2056
      %v2058 = vrot.slane %v2057, 1
      %v2059 = vmax.f32 %v2057, %v2058
      %v2060 = vmax.f32 %v1669, %v1673
      %v2061 = vmax.f32 %v2060, %v1679
      %v2062 = vrot.slane %v2061, 4
      %v2063 = vmax.f32 %v2061, %v2062
      %v2064 = vrot.slane %v2063, 2
      %v2065 = vmax.f32 %v2063, %v2064
      %v2066 = vrot.slane %v2065, 1
      %v2067 = vmax.f32 %v2065, %v2066
      %v2068 = vmax.f32 %v1671, %v1675
      %v2069 = vmax.f32 %v2068, %v1681
      %v2070 = vrot.slane %v2069, 4
      %v2071 = vmax.f32 %v2069, %v2070
      %v2072 = vrot.slane %v2071, 2
      %v2073 = vmax.f32 %v2071, %v2072
      %v2074 = vrot.slane %v2073, 1
      %v2075 = vmax.f32 %v2073, %v2074
      %v2076 = vmax.f32 %v1683, %v1689
      %v2077 = vmax.f32 %v2076, %v1693
      %v2078 = vrot.slane %v2077, 4
      %v2079 = vmax.f32 %v2077, %v2078
      %v2080 = vrot.slane %v2079, 2
      %v2081 = vmax.f32 %v2079, %v2080
      %v2082 = vrot.slane %v2081, 1
      %v2083 = vmax.f32 %v2081, %v2082
      %v2084 = vmax.f32 %v1685, %v1691
      %v2085 = vmax.f32 %v2084, %v1695
      %v2086 = vrot.slane %v2085, 4
      %v2087 = vmax.f32 %v2085, %v2086
      %v2088 = vrot.slane %v2087, 2
      %v2089 = vmax.f32 %v2087, %v2088
      %v2090 = vrot.slane %v2089, 1
      %v2091 = vmax.f32 %v2089, %v2090
      %v2092 = vmax.f32 %v1699, %v1703
      %v2093 = vmax.f32 %v2092, %v1709
      %v2094 = vrot.slane %v2093, 4
      %v2095 = vmax.f32 %v2093, %v2094
      %v2096 = vrot.slane %v2095, 2
      %v2097 = vmax.f32 %v2095, %v2096
      %v2098 = vrot.slane %v2097, 1
      %v2099 = vmax.f32 %v2097, %v2098
      %v2100 = vmax.f32 %v1701, %v1705
      %v2101 = vmax.f32 %v2100, %v1711
      %v2102 = vrot.slane %v2101, 4
      %v2103 = vmax.f32 %v2101, %v2102
      %v2104 = vrot.slane %v2103, 2
      %v2105 = vmax.f32 %v2103, %v2104
      %v2106 = vrot.slane %v2105, 1
      %v2107 = vmax.f32 %v2105, %v2106
      %v2108 = vmax.f32 %v1713, %v1719
      %v2109 = vmax.f32 %v2108, %v1723
      %v2110 = vrot.slane %v2109, 4
      %v2111 = vmax.f32 %v2109, %v2110
      %v2112 = vrot.slane %v2111, 2
      %v2113 = vmax.f32 %v2111, %v2112
      %v2114 = vrot.slane %v2113, 1
      %v2115 = vmax.f32 %v2113, %v2114
      %v2116 = vmax.f32 %v1715, %v1721
      %v2117 = vmax.f32 %v2116, %v1725
      %v2118 = vrot.slane %v2117, 4
      %v2119 = vmax.f32 %v2117, %v2118
      %v2120 = vrot.slane %v2119, 2
      %v2121 = vmax.f32 %v2119, %v2120
      %v2122 = vrot.slane %v2121, 1
      %v2123 = vmax.f32 %v2121, %v2122
      %vm2140 = vcmask 1041409
      %v2141 = vsel %vm2140, %v2019, %v2003
      %vm2142 = vcmask 1042434
      %v2143 = vsel %vm2142, %v2035, %v2141
      %vm2144 = vcmask 1043459
      %v2145 = vsel %vm2144, %v2051, %v2143
      %vm2146 = vcmask 1044484
      %v2147 = vsel %vm2146, %v2067, %v2145
      %vm2148 = vcmask 1045509
      %v2149 = vsel %vm2148, %v2083, %v2147
      %vm2150 = vcmask 1046534
      %v2151 = vsel %vm2150, %v2099, %v2149
      %vm2152 = vcmask 1047559
      %v2153 = vsel %vm2152, %v2115, %v2151
      %v2154 = vsel %vm2140, %v2027, %v2011
      %v2155 = vsel %vm2142, %v2043, %v2154
      %v2156 = vsel %vm2144, %v2059, %v2155
      %v2157 = vsel %vm2146, %v2075, %v2156
      %v2158 = vsel %vm2148, %v2091, %v2157
      %v2159 = vsel %vm2150, %v2107, %v2158
      %v2160 = vsel %vm2152, %v2123, %v2159
      %v2163 = vmax.f32 %v1994, %v2153
      %v2164 = vmax.f32 %v1995, %v2160
      %2165 = vst [vmem:[#allocation2] sm:$0xff] %v2163
      %2166 = vst [vmem:[#allocation2 + $0x8] sm:$0xff] %v2164
    $region45: #{tpu_custom_call.1} parent=1 // pred_fallthru
      _
    // Predicated region
    $region46: #{tpu_custom_call.1} parent=1 // pred_check
      %p2167 = pneg %p94
    $region47: #{tpu_custom_call.1} parent=1 // pred_check_branch
      %2169 = sbr.rel (%p2167) target = $region49
    $region48: #{tpu_custom_call.1} parent=1 // pred_region
      %v2170 = vld [vmem:[#allocation2] sm:$0xff]
      %v2171 = vld [vmem:[#allocation2 + $0x8] sm:$0xff]
      %v2172 = vld [vmem:[%s3] sm:$0x3]
      %v2174 = vlaneseq
      %v2175 = vshrl.u32 %v2174, 7
      %v2176 = vsub.s32 0, %v2175
      %v2177 = vrot.slane %v2172, %v2176
      %v2178 = vlaneseq
      %v2179 = vshrl.u32 %v2178, 7
      %v2180 = vsub.s32 1, %v2179
      %v2181 = vrot.slane %v2172, %v2180
      %v2184 = vadd.f32 %v2170, %v2177
      %v2185 = vadd.f32 %v2171, %v2181
      %2186 = vst [vmem:[#allocation10] sm:$0xff] %v2184
      %2187 = vst [vmem:[#allocation10 + $0x8] sm:$0xff] %v2185
    $region49: #{tpu_custom_call.1} parent=1 // pred_fallthru
      _
    // Predicated region
    $region50: #{tpu_custom_call.1} parent=1 // pred_check
      _
    $region51: #{tpu_custom_call.1} parent=1 // pred_check_branch
      %2189 = sbr.rel (0) target = $region53
    $region52: #{tpu_custom_call.1} parent=1 // pred_region
      %s2191 = ssub.s32 256, 256
      %2192 = vsyncadd [#allocation6], %s2191
      %s2194 = sshll.u32 [#allocation10], 4
      %s2195 = int_to_ptr.vmem [resolvable:$true] %s2194
      %2197 = dma.vmem_to_hbm [thread:$0]  %s2195, 256, %s5, [#allocation6]
    $region53: #{tpu_custom_call.1} parent=1 // pred_fallthru
      _
    // Predicated region
    $region54: #{tpu_custom_call.1} parent=1 // pred_check
      _
    $region55: #{tpu_custom_call.1} parent=1 // pred_check_branch
      %2199 = sbr.rel (0) target = $region57
    $region56: #{tpu_custom_call.1} parent=1 // pred_region
      %2200 = dma.done [#allocation6], 256
    $region57: #{tpu_custom_call.1} parent=1 // pred_fallthru
      _
    %2201 = vsyncpa [#allocation5], 1
    %2202 = vsyncpa [#allocation8], 1
    %2203 = vsyncpa [#allocation6], 1

</llo_original>
